<compile_context>
chip_gen: v5e
topology: v5e:2x2
jax: 0.10.0
libtpu: 0.0.40
codegen_flags: <defaults>
</compile_context>

<pallas_src>
from functools import partial

import jax
import jax.numpy as jnp
from jax.experimental import pallas as pl
from jax.experimental.pallas import tpu as pltpu


def spatial_attention_kernel(x_ref, ste_ref,
                             wq_ref, bq_ref,
                             wk_ref, bk_ref,
                             wv_ref, bv_ref,
                             w10_ref, b10_ref,
                             w11_ref, b11_ref,
                             out_ref, *, G, N, K, d):
    D = K * d
    R = G * N

    xb = x_ref[...].astype(jnp.bfloat16)      # [R, D]
    sb = ste_ref[...].astype(jnp.bfloat16)    # [R, D]

    def project(w_ref, b_ref, h):
        # Per-head projection straight from the packed weights: no lane slicing
        # of activations anywhere.  w_ref[h] is [2D, d]; rows [:D] multiply X,
        # rows [D:] multiply STE (sublane-aligned, free slices).
        w = w_ref[h]
        pre = (jnp.dot(xb, w[:D], preferred_element_type=jnp.float32)
               + jnp.dot(sb, w[D:], preferred_element_type=jnp.float32)
               + b_ref[h])                    # [R, d] f32
        return jnp.maximum(pre, 0.0).astype(jnp.bfloat16)

    qs, ks, vs = [], [], []
    for h in range(K):                        # static unroll, K tiny
        qs.append(project(wq_ref, bq_ref, h))
        ks.append(project(wk_ref, bk_ref, h))
        vs.append(project(wv_ref, bv_ref, h))

    # [K, R, d] -> [K*G, N, d]; pure major-dim reshapes (free for N % 8 == 0).
    q = jnp.stack(qs, axis=0).reshape(K * G, N, d)
    k = jnp.stack(ks, axis=0).reshape(K * G, N, d)
    v = jnp.stack(vs, axis=0).reshape(K * G, N, d)

    # Scores: the 1/sqrt(d) scale is already folded into wq/bq host-side.
    s = jnp.einsum('bnd,bmd->bnm', q, k,
                   preferred_element_type=jnp.float32)       # [K*G, N, N] f32
    p = jnp.exp(s - jnp.max(s, axis=-1, keepdims=True))
    denom = jnp.sum(p, axis=-1, keepdims=True)                # [K*G, N, 1]
    o = jnp.einsum('bnm,bmd->bnd', p.astype(jnp.bfloat16), v,
                   preferred_element_type=jnp.float32)        # [K*G, N, d]
    o = o * pl.reciprocal(denom, approx=True)                 # EUP, not VALU

    # fc10 with per-head weight rows: the head merge (K-way lane concat in the
    # PyTorch code) is folded into a sum of per-head [R, d] @ [d, D] matmuls.
    o_heads = o.reshape(K, R, d)                              # free reshape
    h10 = jnp.dot(o_heads[0].astype(jnp.bfloat16), w10_ref[0],
                  preferred_element_type=jnp.float32)
    for h in range(1, K):
        h10 = h10 + jnp.dot(o_heads[h].astype(jnp.bfloat16), w10_ref[h],
                            preferred_element_type=jnp.float32)
    h10 = jnp.maximum(h10 + b10_ref[...], 0.0)                # [R, D] f32

    out = jnp.dot(h10.astype(jnp.bfloat16), w11_ref[...],
                  preferred_element_type=jnp.float32) + b11_ref[...]

    # [R, D] -> [G, N, D] is a free major-dim split; the wrapper reshape of the
    # [steps, G, N, D] HBM output back to [B, T, N, D] is also free.
    out_ref[...] = out.reshape(G, N, D)


def _pick_block_bt(BT, N, K, d, *, vmem_budget_bytes=24 * 1024 * 1024,
                   min_steps=1):
    """Largest divisor G of B*T whose per-step working set fits the budget.

    Budget defaults are chosen to stay well inside v7x's 64 MiB VMEM; v5e/v6e
    simply get the same (safe) choice.  min_steps=1 drops the old ">= 2 grid
    steps" constraint on single-TC chips; pass min_steps=2 on v7x.
    """
    D = K * d

    def per_step_bytes(G):
        ins = 2 * 2 * (G * N * D * 4)          # X, STE f32, double-buffered
        outs = 2 * (G * N * D * 4)             # output f32, double-buffered
        qkv = 3 * (G * N * D * 4)              # q/k/v stacks (f32 upper bound)
        score = 2 * (K * G * N * N * 4)        # s and p, f32
        return ins + outs + qkv + score

    best = 1
    for g in range(1, BT + 1):
        if BT % g == 0 and BT // g >= max(1, min_steps) \
                and per_step_bytes(g) <= vmem_budget_bytes:
            best = g
    return best


def spatial_attention(X, STE, packed_params, *, K, d, block_bt=None,
                      min_steps=1):
    B, T, N, D = X.shape
    assert D == K * d
    assert N % 8 == 0, "free head reshapes assume N is a multiple of 8"
    BT = B * T
    G = (_pick_block_bt(BT, N, K, d, min_steps=min_steps)
         if block_bt is None else block_bt)
    assert BT % G == 0
    steps = BT // G

    (wq, bq, wk, bk, wv, bv, w10h, b10, w11, b11) = packed_params

    # Free reshapes only -- no concat(X, STE) and no cast pass in HBM.
    Xr = X.reshape(steps, G * N, D)
    Sr = STE.reshape(steps, G * N, D)

    def const_spec(shape):
        # NOTE: constant-index weight blocks are still double-buffered by the
        # pipeline; negligible at these sizes (pl.Buffered(1) if D grows).
        return pl.BlockSpec(shape, lambda i: (0,) * len(shape))

    out = pl.pallas_call(
        partial(spatial_attention_kernel, G=G, N=N, K=K, d=d),
        out_shape=jax.ShapeDtypeStruct((steps, G, N, D), jnp.float32),
        grid=(steps,),
        in_specs=[
            pl.BlockSpec((pl.Squeezed(), G * N, D), lambda i: (i, 0, 0)),  # X
            pl.BlockSpec((pl.Squeezed(), G * N, D), lambda i: (i, 0, 0)),  # STE
            const_spec((K, 2 * D, d)), const_spec((K, 1, d)),   # fc7 (Q, scaled)
            const_spec((K, 2 * D, d)), const_spec((K, 1, d)),   # fc8 (K)
            const_spec((K, 2 * D, d)), const_spec((K, 1, d)),   # fc9 (V)
            const_spec((K, d, D)), const_spec((1, D)),          # fc10 (per-head rows)
            const_spec((D, D)), const_spec((1, D)),             # fc11
        ],
        out_specs=pl.BlockSpec((pl.Squeezed(), G, N, D),
                               lambda i: (i, 0, 0, 0)),
        compiler_params=pltpu.CompilerParams(
            dimension_semantics=("parallel",),
            vmem_limit_bytes=32 * 1024 * 1024),
    )(Xr, Sr, wq, bq, wk, bk, wv, bv, w10h, b10, w11, b11)

    return out.reshape(B, T, N, D)      # free (steps * G == B * T)


def pack_params(params, *, K, d):
    """Host-side packing: per-head weight slices, scale folding, bf16 cast."""
    w7, b7, w8, b8, w9, b9, w10, b10, w11, b11 = params
    D = K * d
    scale = 1.0 / (d ** 0.5)

    def per_head(w, b, s=1.0):
        # [2D, D] -> [K, 2D, d], [1, D] -> [K, 1, d]
        wh = (w * s).reshape(2 * D, K, d).transpose(1, 0, 2).astype(jnp.bfloat16)
        bh = (b * s).reshape(1, K, d).transpose(1, 0, 2)        # stays f32
        return wh, bh

    # Fold 1/sqrt(d) into Q weights AND bias (exact: ReLU is pos. homogeneous).
    wq, bq = per_head(w7, b7, scale)
    wk, bk = per_head(w8, b8)
    wv, bv = per_head(w9, b9)
    w10h = w10.reshape(K, d, D).astype(jnp.bfloat16)            # per-head rows
    return (wq, bq, wk, bk, wv, bv, w10h, b10,
            w11.astype(jnp.bfloat16), b11)


def reference(X, STE, params, *, K, d):
    """Pure-JAX (f32) mirror of the PyTorch forward pass."""
    w7, b7, w8, b8, w9, b9, w10, b10, w11, b11 = params
    xs = jnp.concatenate([X, STE], axis=-1)
    q = jax.nn.relu(xs @ w7 + b7)
    k = jax.nn.relu(xs @ w8 + b8)
    v = jax.nn.relu(xs @ w9 + b9)
    outs = []
    for h in range(K):
        qh = q[..., h * d:(h + 1) * d]
        kh = k[..., h * d:(h + 1) * d]
        vh = v[..., h * d:(h + 1) * d]
        s = jnp.einsum('btnd,btmd->btnm', qh, kh) / (d ** 0.5)
        p = jax.nn.softmax(s, axis=-1)
        outs.append(jnp.einsum('btnm,btmd->btnd', p, vh))
    o = jnp.concatenate(outs, axis=-1)
    h10 = jax.nn.relu(o @ w10 + b10)
    return h10 @ w11 + b11


def make_params(key, K, d):
    D = K * d
    shapes = [
        ((2 * D, D), (1, D)),  # fc7
        ((2 * D, D), (1, D)),  # fc8
        ((2 * D, D), (1, D)),  # fc9
        ((D, D), (1, D)),      # fc10
        ((D, D), (1, D)),      # fc11
    ]
    params = []
    for (w_shape, b_shape) in shapes:
        key, kw, kb = jax.random.split(key, 3)
        bound = 1.0 / (w_shape[0] ** 0.5)
        params.append(jax.random.uniform(kw, w_shape, jnp.float32, -bound, bound))
        params.append(jax.random.uniform(kb, b_shape, jnp.float32, -bound, bound))
    return tuple(params)


if __name__ == "__main__":
    K, d = 4, 8
    D = K * d            # 32
    B, T, N = 2, 4, 16   # B*T = 8 -> G = 8, grid = (1,) on single-TC chips

    key = jax.random.PRNGKey(0)
    kx, kste, kp = jax.random.split(key, 3)
    X = jax.random.normal(kx, (B, T, N, D), jnp.float32)
    STE = jax.random.normal(kste, (B, T, N, D), jnp.float32)
    params = make_params(kp, K, d)

    out = spatial_attention(X, STE, pack_params(params, K=K, d=d), K=K, d=d)
    out = jax.block_until_ready(out)

    ref = reference(X, STE, params, K=K, d=d)
    assert out.shape == (B, T, N, D)
    # bf16 matmul operands + approximate EUP reciprocal on the softmax
    # denominator -> inference-grade accuracy.
    assert jnp.allclose(out, ref, rtol=5e-2, atol=5e-2), "mismatch vs reference"

    print("KERNEL_OK")
</pallas_src>

<mosaic_0001>
module attributes {stable_mosaic.version = 11 : i64} {
  func.func @spatial_attention_kernel(%arg0: i32, %arg1: memref<1x128x32xf32, #tpu.memory_space<vmem>>, %arg2: memref<1x128x32xf32, #tpu.memory_space<vmem>>, %arg3: memref<4x64x8xbf16, #tpu.memory_space<vmem>>, %arg4: memref<4x1x8xf32, #tpu.memory_space<vmem>>, %arg5: memref<4x64x8xbf16, #tpu.memory_space<vmem>>, %arg6: memref<4x1x8xf32, #tpu.memory_space<vmem>>, %arg7: memref<4x64x8xbf16, #tpu.memory_space<vmem>>, %arg8: memref<4x1x8xf32, #tpu.memory_space<vmem>>, %arg9: memref<4x8x32xbf16, #tpu.memory_space<vmem>>, %arg10: memref<1x32xf32, #tpu.memory_space<vmem>>, %arg11: memref<32x32xbf16, #tpu.memory_space<vmem>>, %arg12: memref<1x32xf32, #tpu.memory_space<vmem>>, %arg13: memref<1x8x16x32xf32, #tpu.memory_space<vmem>>) attributes {dimension_semantics = [#tpu.dimension_semantics<parallel>], iteration_bounds = array<i64: 1>, scalar_prefetch = 0 : i64, scratch_operands = 0 : i64, tpu.core_type = #tpu.core_type<tc>, window_params = [{transform_indices = @transform_0, window_bounds = array<i64: 1, 128, 32>}, {transform_indices = @transform_1, window_bounds = array<i64: 1, 128, 32>}, {pipeline_mode = #tpu.pipeline_mode<synchronous>, transform_indices = @transform_2, window_bounds = array<i64: 4, 64, 8>}, {pipeline_mode = #tpu.pipeline_mode<synchronous>, transform_indices = @transform_3, window_bounds = array<i64: 4, 1, 8>}, {pipeline_mode = #tpu.pipeline_mode<synchronous>, transform_indices = @transform_4, window_bounds = array<i64: 4, 64, 8>}, {pipeline_mode = #tpu.pipeline_mode<synchronous>, transform_indices = @transform_5, window_bounds = array<i64: 4, 1, 8>}, {pipeline_mode = #tpu.pipeline_mode<synchronous>, transform_indices = @transform_6, window_bounds = array<i64: 4, 64, 8>}, {pipeline_mode = #tpu.pipeline_mode<synchronous>, transform_indices = @transform_7, window_bounds = array<i64: 4, 1, 8>}, {pipeline_mode = #tpu.pipeline_mode<synchronous>, transform_indices = @transform_8, window_bounds = array<i64: 4, 8, 32>}, {pipeline_mode = #tpu.pipeline_mode<synchronous>, transform_indices = @transform_9, window_bounds = array<i64: 1, 32>}, {pipeline_mode = #tpu.pipeline_mode<synchronous>, transform_indices = @transform_10, window_bounds = array<i64: 32, 32>}, {pipeline_mode = #tpu.pipeline_mode<synchronous>, transform_indices = @transform_11, window_bounds = array<i64: 1, 32>}, {transform_indices = @transform_12, window_bounds = array<i64: 1, 8, 16, 32>}]} {
    %c0 = arith.constant 0 : index
    %c0_0 = arith.constant 0 : index
    %c0_1 = arith.constant 0 : index
    %0 = vector.load %arg1[%c0, %c0_0, %c0_1] : memref<1x128x32xf32, #tpu.memory_space<vmem>>, vector<1x128x32xf32>
    %1 = vector.shape_cast %0 : vector<1x128x32xf32> to vector<128x32xf32>
    %2 = arith.truncf %1 : vector<128x32xf32> to vector<128x32xbf16>
    %c0_2 = arith.constant 0 : index
    %c0_3 = arith.constant 0 : index
    %c0_4 = arith.constant 0 : index
    %3 = vector.load %arg2[%c0_2, %c0_3, %c0_4] : memref<1x128x32xf32, #tpu.memory_space<vmem>>, vector<1x128x32xf32>
    %4 = vector.shape_cast %3 : vector<1x128x32xf32> to vector<128x32xf32>
    %5 = arith.truncf %4 : vector<128x32xf32> to vector<128x32xbf16>
    %c0_5 = arith.constant 0 : index
    %c0_6 = arith.constant 0 : index
    %c0_7 = arith.constant 0 : index
    %6 = vector.load %arg3[%c0_5, %c0_6, %c0_7] : memref<4x64x8xbf16, #tpu.memory_space<vmem>>, vector<1x64x8xbf16>
    %7 = vector.shape_cast %6 : vector<1x64x8xbf16> to vector<64x8xbf16>
    %8 = vector.extract_strided_slice %7 {offsets = [0, 0], sizes = [32, 8], strides = [1, 1]} : vector<64x8xbf16> to vector<32x8xbf16>
    %cst = arith.constant dense<0.000000e+00> : vector<128x8xf32>
    %9 = tpu.matmul %2, %8, %cst {dimension_numbers = #tpu.dot_dimension_numbers<[1], [0], [0], [1], [0, 0, 1, 1], [], []>} : vector<128x32xbf16>, vector<32x8xbf16>, vector<128x8xf32> -> vector<128x8xf32>
    %10 = vector.extract_strided_slice %7 {offsets = [32, 0], sizes = [32, 8], strides = [1, 1]} : vector<64x8xbf16> to vector<32x8xbf16>
    %cst_8 = arith.constant dense<0.000000e+00> : vector<128x8xf32>
    %11 = tpu.matmul %5, %10, %cst_8 {dimension_numbers = #tpu.dot_dimension_numbers<[1], [0], [0], [1], [0, 0, 1, 1], [], []>} : vector<128x32xbf16>, vector<32x8xbf16>, vector<128x8xf32> -> vector<128x8xf32>
    %12 = arith.addf %9, %11 : vector<128x8xf32>
    %c0_9 = arith.constant 0 : index
    %c0_10 = arith.constant 0 : index
    %c0_11 = arith.constant 0 : index
    %13 = vector.load %arg4[%c0_9, %c0_10, %c0_11] : memref<4x1x8xf32, #tpu.memory_space<vmem>>, vector<1x1x8xf32>
    %14 = vector.shape_cast %13 : vector<1x1x8xf32> to vector<1x8xf32>
    %15 = vector.broadcast %14 : vector<1x8xf32> to vector<128x8xf32>
    %16 = arith.addf %12, %15 : vector<128x8xf32>
    %cst_12 = arith.constant 0.000000e+00 : f32
    %17 = vector.broadcast %cst_12 : f32 to vector<128x8xf32>
    %18 = arith.maximumf %16, %17 : vector<128x8xf32>
    %19 = arith.truncf %18 : vector<128x8xf32> to vector<128x8xbf16>
    %c0_13 = arith.constant 0 : index
    %c0_14 = arith.constant 0 : index
    %c0_15 = arith.constant 0 : index
    %20 = vector.load %arg5[%c0_13, %c0_14, %c0_15] : memref<4x64x8xbf16, #tpu.memory_space<vmem>>, vector<1x64x8xbf16>
    %21 = vector.shape_cast %20 : vector<1x64x8xbf16> to vector<64x8xbf16>
    %22 = vector.extract_strided_slice %21 {offsets = [0, 0], sizes = [32, 8], strides = [1, 1]} : vector<64x8xbf16> to vector<32x8xbf16>
    %cst_16 = arith.constant dense<0.000000e+00> : vector<128x8xf32>
    %23 = tpu.matmul %2, %22, %cst_16 {dimension_numbers = #tpu.dot_dimension_numbers<[1], [0], [0], [1], [0, 0, 1, 1], [], []>} : vector<128x32xbf16>, vector<32x8xbf16>, vector<128x8xf32> -> vector<128x8xf32>
    %24 = vector.extract_strided_slice %21 {offsets = [32, 0], sizes = [32, 8], strides = [1, 1]} : vector<64x8xbf16> to vector<32x8xbf16>
    %cst_17 = arith.constant dense<0.000000e+00> : vector<128x8xf32>
    %25 = tpu.matmul %5, %24, %cst_17 {dimension_numbers = #tpu.dot_dimension_numbers<[1], [0], [0], [1], [0, 0, 1, 1], [], []>} : vector<128x32xbf16>, vector<32x8xbf16>, vector<128x8xf32> -> vector<128x8xf32>
    %26 = arith.addf %23, %25 : vector<128x8xf32>
    %c0_18 = arith.constant 0 : index
    %c0_19 = arith.constant 0 : index
    %c0_20 = arith.constant 0 : index
    %27 = vector.load %arg6[%c0_18, %c0_19, %c0_20] : memref<4x1x8xf32, #tpu.memory_space<vmem>>, vector<1x1x8xf32>
    %28 = vector.shape_cast %27 : vector<1x1x8xf32> to vector<1x8xf32>
    %29 = vector.broadcast %28 : vector<1x8xf32> to vector<128x8xf32>
    %30 = arith.addf %26, %29 : vector<128x8xf32>
    %cst_21 = arith.constant 0.000000e+00 : f32
    %31 = vector.broadcast %cst_21 : f32 to vector<128x8xf32>
    %32 = arith.maximumf %30, %31 : vector<128x8xf32>
    %33 = arith.truncf %32 : vector<128x8xf32> to vector<128x8xbf16>
    %c0_22 = arith.constant 0 : index
    %c0_23 = arith.constant 0 : index
    %c0_24 = arith.constant 0 : index
    %34 = vector.load %arg7[%c0_22, %c0_23, %c0_24] : memref<4x64x8xbf16, #tpu.memory_space<vmem>>, vector<1x64x8xbf16>
    %35 = vector.shape_cast %34 : vector<1x64x8xbf16> to vector<64x8xbf16>
    %36 = vector.extract_strided_slice %35 {offsets = [0, 0], sizes = [32, 8], strides = [1, 1]} : vector<64x8xbf16> to vector<32x8xbf16>
    %cst_25 = arith.constant dense<0.000000e+00> : vector<128x8xf32>
    %37 = tpu.matmul %2, %36, %cst_25 {dimension_numbers = #tpu.dot_dimension_numbers<[1], [0], [0], [1], [0, 0, 1, 1], [], []>} : vector<128x32xbf16>, vector<32x8xbf16>, vector<128x8xf32> -> vector<128x8xf32>
    %38 = vector.extract_strided_slice %35 {offsets = [32, 0], sizes = [32, 8], strides = [1, 1]} : vector<64x8xbf16> to vector<32x8xbf16>
    %cst_26 = arith.constant dense<0.000000e+00> : vector<128x8xf32>
    %39 = tpu.matmul %5, %38, %cst_26 {dimension_numbers = #tpu.dot_dimension_numbers<[1], [0], [0], [1], [0, 0, 1, 1], [], []>} : vector<128x32xbf16>, vector<32x8xbf16>, vector<128x8xf32> -> vector<128x8xf32>
    %40 = arith.addf %37, %39 : vector<128x8xf32>
    %c0_27 = arith.constant 0 : index
    %c0_28 = arith.constant 0 : index
    %c0_29 = arith.constant 0 : index
    %41 = vector.load %arg8[%c0_27, %c0_28, %c0_29] : memref<4x1x8xf32, #tpu.memory_space<vmem>>, vector<1x1x8xf32>
    %42 = vector.shape_cast %41 : vector<1x1x8xf32> to vector<1x8xf32>
    %43 = vector.broadcast %42 : vector<1x8xf32> to vector<128x8xf32>
    %44 = arith.addf %40, %43 : vector<128x8xf32>
    %cst_30 = arith.constant 0.000000e+00 : f32
    %45 = vector.broadcast %cst_30 : f32 to vector<128x8xf32>
    %46 = arith.maximumf %44, %45 : vector<128x8xf32>
    %47 = arith.truncf %46 : vector<128x8xf32> to vector<128x8xbf16>
    %c1 = arith.constant 1 : index
    %c0_31 = arith.constant 0 : index
    %c0_32 = arith.constant 0 : index
    %48 = vector.load %arg3[%c1, %c0_31, %c0_32] : memref<4x64x8xbf16, #tpu.memory_space<vmem>>, vector<1x64x8xbf16>
    %49 = vector.shape_cast %48 : vector<1x64x8xbf16> to vector<64x8xbf16>
    %50 = vector.extract_strided_slice %49 {offsets = [0, 0], sizes = [32, 8], strides = [1, 1]} : vector<64x8xbf16> to vector<32x8xbf16>
    %cst_33 = arith.constant dense<0.000000e+00> : vector<128x8xf32>
    %51 = tpu.matmul %2, %50, %cst_33 {dimension_numbers = #tpu.dot_dimension_numbers<[1], [0], [0], [1], [0, 0, 1, 1], [], []>} : vector<128x32xbf16>, vector<32x8xbf16>, vector<128x8xf32> -> vector<128x8xf32>
    %52 = vector.extract_strided_slice %49 {offsets = [32, 0], sizes = [32, 8], strides = [1, 1]} : vector<64x8xbf16> to vector<32x8xbf16>
    %cst_34 = arith.constant dense<0.000000e+00> : vector<128x8xf32>
    %53 = tpu.matmul %5, %52, %cst_34 {dimension_numbers = #tpu.dot_dimension_numbers<[1], [0], [0], [1], [0, 0, 1, 1], [], []>} : vector<128x32xbf16>, vector<32x8xbf16>, vector<128x8xf32> -> vector<128x8xf32>
    %54 = arith.addf %51, %53 : vector<128x8xf32>
    %c1_35 = arith.constant 1 : index
    %c0_36 = arith.constant 0 : index
    %c0_37 = arith.constant 0 : index
    %55 = vector.load %arg4[%c1_35, %c0_36, %c0_37] : memref<4x1x8xf32, #tpu.memory_space<vmem>>, vector<1x1x8xf32>
    %56 = vector.shape_cast %55 : vector<1x1x8xf32> to vector<1x8xf32>
    %57 = vector.broadcast %56 : vector<1x8xf32> to vector<128x8xf32>
    %58 = arith.addf %54, %57 : vector<128x8xf32>
    %cst_38 = arith.constant 0.000000e+00 : f32
    %59 = vector.broadcast %cst_38 : f32 to vector<128x8xf32>
    %60 = arith.maximumf %58, %59 : vector<128x8xf32>
    %61 = arith.truncf %60 : vector<128x8xf32> to vector<128x8xbf16>
    %c1_39 = arith.constant 1 : index
    %c0_40 = arith.constant 0 : index
    %c0_41 = arith.constant 0 : index
    %62 = vector.load %arg5[%c1_39, %c0_40, %c0_41] : memref<4x64x8xbf16, #tpu.memory_space<vmem>>, vector<1x64x8xbf16>
    %63 = vector.shape_cast %62 : vector<1x64x8xbf16> to vector<64x8xbf16>
    %64 = vector.extract_strided_slice %63 {offsets = [0, 0], sizes = [32, 8], strides = [1, 1]} : vector<64x8xbf16> to vector<32x8xbf16>
    %cst_42 = arith.constant dense<0.000000e+00> : vector<128x8xf32>
    %65 = tpu.matmul %2, %64, %cst_42 {dimension_numbers = #tpu.dot_dimension_numbers<[1], [0], [0], [1], [0, 0, 1, 1], [], []>} : vector<128x32xbf16>, vector<32x8xbf16>, vector<128x8xf32> -> vector<128x8xf32>
    %66 = vector.extract_strided_slice %63 {offsets = [32, 0], sizes = [32, 8], strides = [1, 1]} : vector<64x8xbf16> to vector<32x8xbf16>
    %cst_43 = arith.constant dense<0.000000e+00> : vector<128x8xf32>
    %67 = tpu.matmul %5, %66, %cst_43 {dimension_numbers = #tpu.dot_dimension_numbers<[1], [0], [0], [1], [0, 0, 1, 1], [], []>} : vector<128x32xbf16>, vector<32x8xbf16>, vector<128x8xf32> -> vector<128x8xf32>
    %68 = arith.addf %65, %67 : vector<128x8xf32>
    %c1_44 = arith.constant 1 : index
    %c0_45 = arith.constant 0 : index
    %c0_46 = arith.constant 0 : index
    %69 = vector.load %arg6[%c1_44, %c0_45, %c0_46] : memref<4x1x8xf32, #tpu.memory_space<vmem>>, vector<1x1x8xf32>
    %70 = vector.shape_cast %69 : vector<1x1x8xf32> to vector<1x8xf32>
    %71 = vector.broadcast %70 : vector<1x8xf32> to vector<128x8xf32>
    %72 = arith.addf %68, %71 : vector<128x8xf32>
    %cst_47 = arith.constant 0.000000e+00 : f32
    %73 = vector.broadcast %cst_47 : f32 to vector<128x8xf32>
    %74 = arith.maximumf %72, %73 : vector<128x8xf32>
    %75 = arith.truncf %74 : vector<128x8xf32> to vector<128x8xbf16>
    %c1_48 = arith.constant 1 : index
    %c0_49 = arith.constant 0 : index
    %c0_50 = arith.constant 0 : index
    %76 = vector.load %arg7[%c1_48, %c0_49, %c0_50] : memref<4x64x8xbf16, #tpu.memory_space<vmem>>, vector<1x64x8xbf16>
    %77 = vector.shape_cast %76 : vector<1x64x8xbf16> to vector<64x8xbf16>
    %78 = vector.extract_strided_slice %77 {offsets = [0, 0], sizes = [32, 8], strides = [1, 1]} : vector<64x8xbf16> to vector<32x8xbf16>
    %cst_51 = arith.constant dense<0.000000e+00> : vector<128x8xf32>
    %79 = tpu.matmul %2, %78, %cst_51 {dimension_numbers = #tpu.dot_dimension_numbers<[1], [0], [0], [1], [0, 0, 1, 1], [], []>} : vector<128x32xbf16>, vector<32x8xbf16>, vector<128x8xf32> -> vector<128x8xf32>
    %80 = vector.extract_strided_slice %77 {offsets = [32, 0], sizes = [32, 8], strides = [1, 1]} : vector<64x8xbf16> to vector<32x8xbf16>
    %cst_52 = arith.constant dense<0.000000e+00> : vector<128x8xf32>
    %81 = tpu.matmul %5, %80, %cst_52 {dimension_numbers = #tpu.dot_dimension_numbers<[1], [0], [0], [1], [0, 0, 1, 1], [], []>} : vector<128x32xbf16>, vector<32x8xbf16>, vector<128x8xf32> -> vector<128x8xf32>
    %82 = arith.addf %79, %81 : vector<128x8xf32>
    %c1_53 = arith.constant 1 : index
    %c0_54 = arith.constant 0 : index
    %c0_55 = arith.constant 0 : index
    %83 = vector.load %arg8[%c1_53, %c0_54, %c0_55] : memref<4x1x8xf32, #tpu.memory_space<vmem>>, vector<1x1x8xf32>
    %84 = vector.shape_cast %83 : vector<1x1x8xf32> to vector<1x8xf32>
    %85 = vector.broadcast %84 : vector<1x8xf32> to vector<128x8xf32>
    %86 = arith.addf %82, %85 : vector<128x8xf32>
    %cst_56 = arith.constant 0.000000e+00 : f32
    %87 = vector.broadcast %cst_56 : f32 to vector<128x8xf32>
    %88 = arith.maximumf %86, %87 : vector<128x8xf32>
    %89 = arith.truncf %88 : vector<128x8xf32> to vector<128x8xbf16>
    %c2 = arith.constant 2 : index
    %c0_57 = arith.constant 0 : index
    %c0_58 = arith.constant 0 : index
    %90 = vector.load %arg3[%c2, %c0_57, %c0_58] : memref<4x64x8xbf16, #tpu.memory_space<vmem>>, vector<1x64x8xbf16>
    %91 = vector.shape_cast %90 : vector<1x64x8xbf16> to vector<64x8xbf16>
    %92 = vector.extract_strided_slice %91 {offsets = [0, 0], sizes = [32, 8], strides = [1, 1]} : vector<64x8xbf16> to vector<32x8xbf16>
    %cst_59 = arith.constant dense<0.000000e+00> : vector<128x8xf32>
    %93 = tpu.matmul %2, %92, %cst_59 {dimension_numbers = #tpu.dot_dimension_numbers<[1], [0], [0], [1], [0, 0, 1, 1], [], []>} : vector<128x32xbf16>, vector<32x8xbf16>, vector<128x8xf32> -> vector<128x8xf32>
    %94 = vector.extract_strided_slice %91 {offsets = [32, 0], sizes = [32, 8], strides = [1, 1]} : vector<64x8xbf16> to vector<32x8xbf16>
    %cst_60 = arith.constant dense<0.000000e+00> : vector<128x8xf32>
    %95 = tpu.matmul %5, %94, %cst_60 {dimension_numbers = #tpu.dot_dimension_numbers<[1], [0], [0], [1], [0, 0, 1, 1], [], []>} : vector<128x32xbf16>, vector<32x8xbf16>, vector<128x8xf32> -> vector<128x8xf32>
    %96 = arith.addf %93, %95 : vector<128x8xf32>
    %c2_61 = arith.constant 2 : index
    %c0_62 = arith.constant 0 : index
    %c0_63 = arith.constant 0 : index
    %97 = vector.load %arg4[%c2_61, %c0_62, %c0_63] : memref<4x1x8xf32, #tpu.memory_space<vmem>>, vector<1x1x8xf32>
    %98 = vector.shape_cast %97 : vector<1x1x8xf32> to vector<1x8xf32>
    %99 = vector.broadcast %98 : vector<1x8xf32> to vector<128x8xf32>
    %100 = arith.addf %96, %99 : vector<128x8xf32>
    %cst_64 = arith.constant 0.000000e+00 : f32
    %101 = vector.broadcast %cst_64 : f32 to vector<128x8xf32>
    %102 = arith.maximumf %100, %101 : vector<128x8xf32>
    %103 = arith.truncf %102 : vector<128x8xf32> to vector<128x8xbf16>
    %c2_65 = arith.constant 2 : index
    %c0_66 = arith.constant 0 : index
    %c0_67 = arith.constant 0 : index
    %104 = vector.load %arg5[%c2_65, %c0_66, %c0_67] : memref<4x64x8xbf16, #tpu.memory_space<vmem>>, vector<1x64x8xbf16>
    %105 = vector.shape_cast %104 : vector<1x64x8xbf16> to vector<64x8xbf16>
    %106 = vector.extract_strided_slice %105 {offsets = [0, 0], sizes = [32, 8], strides = [1, 1]} : vector<64x8xbf16> to vector<32x8xbf16>
    %cst_68 = arith.constant dense<0.000000e+00> : vector<128x8xf32>
    %107 = tpu.matmul %2, %106, %cst_68 {dimension_numbers = #tpu.dot_dimension_numbers<[1], [0], [0], [1], [0, 0, 1, 1], [], []>} : vector<128x32xbf16>, vector<32x8xbf16>, vector<128x8xf32> -> vector<128x8xf32>
    %108 = vector.extract_strided_slice %105 {offsets = [32, 0], sizes = [32, 8], strides = [1, 1]} : vector<64x8xbf16> to vector<32x8xbf16>
    %cst_69 = arith.constant dense<0.000000e+00> : vector<128x8xf32>
    %109 = tpu.matmul %5, %108, %cst_69 {dimension_numbers = #tpu.dot_dimension_numbers<[1], [0], [0], [1], [0, 0, 1, 1], [], []>} : vector<128x32xbf16>, vector<32x8xbf16>, vector<128x8xf32> -> vector<128x8xf32>
    %110 = arith.addf %107, %109 : vector<128x8xf32>
    %c2_70 = arith.constant 2 : index
    %c0_71 = arith.constant 0 : index
    %c0_72 = arith.constant 0 : index
    %111 = vector.load %arg6[%c2_70, %c0_71, %c0_72] : memref<4x1x8xf32, #tpu.memory_space<vmem>>, vector<1x1x8xf32>
    %112 = vector.shape_cast %111 : vector<1x1x8xf32> to vector<1x8xf32>
    %113 = vector.broadcast %112 : vector<1x8xf32> to vector<128x8xf32>
    %114 = arith.addf %110, %113 : vector<128x8xf32>
    %cst_73 = arith.constant 0.000000e+00 : f32
    %115 = vector.broadcast %cst_73 : f32 to vector<128x8xf32>
    %116 = arith.maximumf %114, %115 : vector<128x8xf32>
    %117 = arith.truncf %116 : vector<128x8xf32> to vector<128x8xbf16>
    %c2_74 = arith.constant 2 : index
    %c0_75 = arith.constant 0 : index
    %c0_76 = arith.constant 0 : index
    %118 = vector.load %arg7[%c2_74, %c0_75, %c0_76] : memref<4x64x8xbf16, #tpu.memory_space<vmem>>, vector<1x64x8xbf16>
    %119 = vector.shape_cast %118 : vector<1x64x8xbf16> to vector<64x8xbf16>
    %120 = vector.extract_strided_slice %119 {offsets = [0, 0], sizes = [32, 8], strides = [1, 1]} : vector<64x8xbf16> to vector<32x8xbf16>
    %cst_77 = arith.constant dense<0.000000e+00> : vector<128x8xf32>
    %121 = tpu.matmul %2, %120, %cst_77 {dimension_numbers = #tpu.dot_dimension_numbers<[1], [0], [0], [1], [0, 0, 1, 1], [], []>} : vector<128x32xbf16>, vector<32x8xbf16>, vector<128x8xf32> -> vector<128x8xf32>
    %122 = vector.extract_strided_slice %119 {offsets = [32, 0], sizes = [32, 8], strides = [1, 1]} : vector<64x8xbf16> to vector<32x8xbf16>
    %cst_78 = arith.constant dense<0.000000e+00> : vector<128x8xf32>
    %123 = tpu.matmul %5, %122, %cst_78 {dimension_numbers = #tpu.dot_dimension_numbers<[1], [0], [0], [1], [0, 0, 1, 1], [], []>} : vector<128x32xbf16>, vector<32x8xbf16>, vector<128x8xf32> -> vector<128x8xf32>
    %124 = arith.addf %121, %123 : vector<128x8xf32>
    %c2_79 = arith.constant 2 : index
    %c0_80 = arith.constant 0 : index
    %c0_81 = arith.constant 0 : index
    %125 = vector.load %arg8[%c2_79, %c0_80, %c0_81] : memref<4x1x8xf32, #tpu.memory_space<vmem>>, vector<1x1x8xf32>
    %126 = vector.shape_cast %125 : vector<1x1x8xf32> to vector<1x8xf32>
    %127 = vector.broadcast %126 : vector<1x8xf32> to vector<128x8xf32>
    %128 = arith.addf %124, %127 : vector<128x8xf32>
    %cst_82 = arith.constant 0.000000e+00 : f32
    %129 = vector.broadcast %cst_82 : f32 to vector<128x8xf32>
    %130 = arith.maximumf %128, %129 : vector<128x8xf32>
    %131 = arith.truncf %130 : vector<128x8xf32> to vector<128x8xbf16>
    %c3 = arith.constant 3 : index
    %c0_83 = arith.constant 0 : index
    %c0_84 = arith.constant 0 : index
    %132 = vector.load %arg3[%c3, %c0_83, %c0_84] : memref<4x64x8xbf16, #tpu.memory_space<vmem>>, vector<1x64x8xbf16>
    %133 = vector.shape_cast %132 : vector<1x64x8xbf16> to vector<64x8xbf16>
    %134 = vector.extract_strided_slice %133 {offsets = [0, 0], sizes = [32, 8], strides = [1, 1]} : vector<64x8xbf16> to vector<32x8xbf16>
    %cst_85 = arith.constant dense<0.000000e+00> : vector<128x8xf32>
    %135 = tpu.matmul %2, %134, %cst_85 {dimension_numbers = #tpu.dot_dimension_numbers<[1], [0], [0], [1], [0, 0, 1, 1], [], []>} : vector<128x32xbf16>, vector<32x8xbf16>, vector<128x8xf32> -> vector<128x8xf32>
    %136 = vector.extract_strided_slice %133 {offsets = [32, 0], sizes = [32, 8], strides = [1, 1]} : vector<64x8xbf16> to vector<32x8xbf16>
    %cst_86 = arith.constant dense<0.000000e+00> : vector<128x8xf32>
    %137 = tpu.matmul %5, %136, %cst_86 {dimension_numbers = #tpu.dot_dimension_numbers<[1], [0], [0], [1], [0, 0, 1, 1], [], []>} : vector<128x32xbf16>, vector<32x8xbf16>, vector<128x8xf32> -> vector<128x8xf32>
    %138 = arith.addf %135, %137 : vector<128x8xf32>
    %c3_87 = arith.constant 3 : index
    %c0_88 = arith.constant 0 : index
    %c0_89 = arith.constant 0 : index
    %139 = vector.load %arg4[%c3_87, %c0_88, %c0_89] : memref<4x1x8xf32, #tpu.memory_space<vmem>>, vector<1x1x8xf32>
    %140 = vector.shape_cast %139 : vector<1x1x8xf32> to vector<1x8xf32>
    %141 = vector.broadcast %140 : vector<1x8xf32> to vector<128x8xf32>
    %142 = arith.addf %138, %141 : vector<128x8xf32>
    %cst_90 = arith.constant 0.000000e+00 : f32
    %143 = vector.broadcast %cst_90 : f32 to vector<128x8xf32>
    %144 = arith.maximumf %142, %143 : vector<128x8xf32>
    %145 = arith.truncf %144 : vector<128x8xf32> to vector<128x8xbf16>
    %c3_91 = arith.constant 3 : index
    %c0_92 = arith.constant 0 : index
    %c0_93 = arith.constant 0 : index
    %146 = vector.load %arg5[%c3_91, %c0_92, %c0_93] : memref<4x64x8xbf16, #tpu.memory_space<vmem>>, vector<1x64x8xbf16>
    %147 = vector.shape_cast %146 : vector<1x64x8xbf16> to vector<64x8xbf16>
    %148 = vector.extract_strided_slice %147 {offsets = [0, 0], sizes = [32, 8], strides = [1, 1]} : vector<64x8xbf16> to vector<32x8xbf16>
    %cst_94 = arith.constant dense<0.000000e+00> : vector<128x8xf32>
    %149 = tpu.matmul %2, %148, %cst_94 {dimension_numbers = #tpu.dot_dimension_numbers<[1], [0], [0], [1], [0, 0, 1, 1], [], []>} : vector<128x32xbf16>, vector<32x8xbf16>, vector<128x8xf32> -> vector<128x8xf32>
    %150 = vector.extract_strided_slice %147 {offsets = [32, 0], sizes = [32, 8], strides = [1, 1]} : vector<64x8xbf16> to vector<32x8xbf16>
    %cst_95 = arith.constant dense<0.000000e+00> : vector<128x8xf32>
    %151 = tpu.matmul %5, %150, %cst_95 {dimension_numbers = #tpu.dot_dimension_numbers<[1], [0], [0], [1], [0, 0, 1, 1], [], []>} : vector<128x32xbf16>, vector<32x8xbf16>, vector<128x8xf32> -> vector<128x8xf32>
    %152 = arith.addf %149, %151 : vector<128x8xf32>
    %c3_96 = arith.constant 3 : index
    %c0_97 = arith.constant 0 : index
    %c0_98 = arith.constant 0 : index
    %153 = vector.load %arg6[%c3_96, %c0_97, %c0_98] : memref<4x1x8xf32, #tpu.memory_space<vmem>>, vector<1x1x8xf32>
    %154 = vector.shape_cast %153 : vector<1x1x8xf32> to vector<1x8xf32>
    %155 = vector.broadcast %154 : vector<1x8xf32> to vector<128x8xf32>
    %156 = arith.addf %152, %155 : vector<128x8xf32>
    %cst_99 = arith.constant 0.000000e+00 : f32
    %157 = vector.broadcast %cst_99 : f32 to vector<128x8xf32>
    %158 = arith.maximumf %156, %157 : vector<128x8xf32>
    %159 = arith.truncf %158 : vector<128x8xf32> to vector<128x8xbf16>
    %c3_100 = arith.constant 3 : index
    %c0_101 = arith.constant 0 : index
    %c0_102 = arith.constant 0 : index
    %160 = vector.load %arg7[%c3_100, %c0_101, %c0_102] : memref<4x64x8xbf16, #tpu.memory_space<vmem>>, vector<1x64x8xbf16>
    %161 = vector.shape_cast %160 : vector<1x64x8xbf16> to vector<64x8xbf16>
    %162 = vector.extract_strided_slice %161 {offsets = [0, 0], sizes = [32, 8], strides = [1, 1]} : vector<64x8xbf16> to vector<32x8xbf16>
    %cst_103 = arith.constant dense<0.000000e+00> : vector<128x8xf32>
    %163 = tpu.matmul %2, %162, %cst_103 {dimension_numbers = #tpu.dot_dimension_numbers<[1], [0], [0], [1], [0, 0, 1, 1], [], []>} : vector<128x32xbf16>, vector<32x8xbf16>, vector<128x8xf32> -> vector<128x8xf32>
    %164 = vector.extract_strided_slice %161 {offsets = [32, 0], sizes = [32, 8], strides = [1, 1]} : vector<64x8xbf16> to vector<32x8xbf16>
    %cst_104 = arith.constant dense<0.000000e+00> : vector<128x8xf32>
    %165 = tpu.matmul %5, %164, %cst_104 {dimension_numbers = #tpu.dot_dimension_numbers<[1], [0], [0], [1], [0, 0, 1, 1], [], []>} : vector<128x32xbf16>, vector<32x8xbf16>, vector<128x8xf32> -> vector<128x8xf32>
    %166 = arith.addf %163, %165 : vector<128x8xf32>
    %c3_105 = arith.constant 3 : index
    %c0_106 = arith.constant 0 : index
    %c0_107 = arith.constant 0 : index
    %167 = vector.load %arg8[%c3_105, %c0_106, %c0_107] : memref<4x1x8xf32, #tpu.memory_space<vmem>>, vector<1x1x8xf32>
    %168 = vector.shape_cast %167 : vector<1x1x8xf32> to vector<1x8xf32>
    %169 = vector.broadcast %168 : vector<1x8xf32> to vector<128x8xf32>
    %170 = arith.addf %166, %169 : vector<128x8xf32>
    %cst_108 = arith.constant 0.000000e+00 : f32
    %171 = vector.broadcast %cst_108 : f32 to vector<128x8xf32>
    %172 = arith.maximumf %170, %171 : vector<128x8xf32>
    %173 = arith.truncf %172 : vector<128x8xf32> to vector<128x8xbf16>
    %174 = vector.shape_cast %19 : vector<128x8xbf16> to vector<1x128x8xbf16>
    %175 = vector.shape_cast %61 : vector<128x8xbf16> to vector<1x128x8xbf16>
    %176 = vector.shape_cast %103 : vector<128x8xbf16> to vector<1x128x8xbf16>
    %177 = vector.shape_cast %145 : vector<128x8xbf16> to vector<1x128x8xbf16>
    %178 = tpu.concatenate %174, %175, %176, %177 in 0 : vector<1x128x8xbf16>, vector<1x128x8xbf16>, vector<1x128x8xbf16>, vector<1x128x8xbf16> -> vector<4x128x8xbf16>
    %179 = vector.shape_cast %178 : vector<4x128x8xbf16> to vector<32x16x8xbf16>
    %180 = vector.shape_cast %33 : vector<128x8xbf16> to vector<1x128x8xbf16>
    %181 = vector.shape_cast %75 : vector<128x8xbf16> to vector<1x128x8xbf16>
    %182 = vector.shape_cast %117 : vector<128x8xbf16> to vector<1x128x8xbf16>
    %183 = vector.shape_cast %159 : vector<128x8xbf16> to vector<1x128x8xbf16>
    %184 = tpu.concatenate %180, %181, %182, %183 in 0 : vector<1x128x8xbf16>, vector<1x128x8xbf16>, vector<1x128x8xbf16>, vector<1x128x8xbf16> -> vector<4x128x8xbf16>
    %185 = vector.shape_cast %184 : vector<4x128x8xbf16> to vector<32x16x8xbf16>
    %186 = vector.shape_cast %47 : vector<128x8xbf16> to vector<1x128x8xbf16>
    %187 = vector.shape_cast %89 : vector<128x8xbf16> to vector<1x128x8xbf16>
    %188 = vector.shape_cast %131 : vector<128x8xbf16> to vector<1x128x8xbf16>
    %189 = vector.shape_cast %173 : vector<128x8xbf16> to vector<1x128x8xbf16>
    %190 = tpu.concatenate %186, %187, %188, %189 in 0 : vector<1x128x8xbf16>, vector<1x128x8xbf16>, vector<1x128x8xbf16>, vector<1x128x8xbf16> -> vector<4x128x8xbf16>
    %191 = vector.shape_cast %190 : vector<4x128x8xbf16> to vector<32x16x8xbf16>
    "tpu.trace_start"() <{level = 10 : i32, message = "bnd,bmd->bnm"}> : () -> ()
    %cst_109 = arith.constant dense<0.000000e+00> : vector<32x16x16xf32>
    %192 = tpu.matmul %179, %185, %cst_109 {dimension_numbers = #tpu.dot_dimension_numbers<[2], [2], [1], [1], [0, 0, 0, 1, 1, 1], [0], [0]>} : vector<32x16x8xbf16>, vector<32x16x8xbf16>, vector<32x16x16xf32> -> vector<32x16x16xf32>
    "tpu.trace_stop"() : () -> ()
    %cst_110 = arith.constant dense<0xFF800000> : vector<32x16xf32>
    %193 = vector.multi_reduction <maximumf>, %192, %cst_110 [2] : vector<32x16x16xf32> to vector<32x16xf32>
    %194 = vector.shape_cast %193 : vector<32x16xf32> to vector<32x16x1xf32>
    %195 = vector.broadcast %194 : vector<32x16x1xf32> to vector<32x16x16xf32>
    %196 = arith.subf %192, %195 : vector<32x16x16xf32>
    %197 = math.exp %196 : vector<32x16x16xf32>
    %cst_111 = arith.constant dense<0.000000e+00> : vector<32x16xf32>
    %198 = vector.multi_reduction <add>, %197, %cst_111 [2] : vector<32x16x16xf32> to vector<32x16xf32>
    %199 = vector.shape_cast %198 : vector<32x16xf32> to vector<32x16x1xf32>
    %200 = arith.truncf %197 : vector<32x16x16xf32> to vector<32x16x16xbf16>
    "tpu.trace_start"() <{level = 10 : i32, message = "bnm,bmd->bnd"}> : () -> ()
    %cst_112 = arith.constant dense<0.000000e+00> : vector<32x16x8xf32>
    %201 = tpu.matmul %200, %191, %cst_112 {dimension_numbers = #tpu.dot_dimension_numbers<[2], [1], [1], [2], [0, 0, 0, 1, 1, 2], [0], [0]>} : vector<32x16x16xbf16>, vector<32x16x8xbf16>, vector<32x16x8xf32> -> vector<32x16x8xf32>
    "tpu.trace_stop"() : () -> ()
    %202 = tpu.reciprocal %199 {approx = true} : vector<32x16x1xf32> -> vector<32x16x1xf32>
    %203 = vector.broadcast %202 : vector<32x16x1xf32> to vector<32x16x8xf32>
    %204 = arith.mulf %201, %203 : vector<32x16x8xf32>
    %205 = vector.shape_cast %204 : vector<32x16x8xf32> to vector<4x128x8xf32>
    %206 = vector.extract_strided_slice %205 {offsets = [0, 0, 0], sizes = [1, 128, 8], strides = [1, 1, 1]} : vector<4x128x8xf32> to vector<1x128x8xf32>
    %207 = vector.shape_cast %206 : vector<1x128x8xf32> to vector<128x8xf32>
    %208 = arith.truncf %207 : vector<128x8xf32> to vector<128x8xbf16>
    %c0_113 = arith.constant 0 : index
    %c0_114 = arith.constant 0 : index
    %c0_115 = arith.constant 0 : index
    %209 = vector.load %arg9[%c0_113, %c0_114, %c0_115] : memref<4x8x32xbf16, #tpu.memory_space<vmem>>, vector<1x8x32xbf16>
    %210 = vector.shape_cast %209 : vector<1x8x32xbf16> to vector<8x32xbf16>
    %cst_116 = arith.constant dense<0.000000e+00> : vector<128x32xf32>
    %211 = tpu.matmul %208, %210, %cst_116 {dimension_numbers = #tpu.dot_dimension_numbers<[1], [0], [0], [1], [0, 0, 1, 1], [], []>} : vector<128x8xbf16>, vector<8x32xbf16>, vector<128x32xf32> -> vector<128x32xf32>
    %212 = vector.extract_strided_slice %205 {offsets = [1, 0, 0], sizes = [1, 128, 8], strides = [1, 1, 1]} : vector<4x128x8xf32> to vector<1x128x8xf32>
    %213 = vector.shape_cast %212 : vector<1x128x8xf32> to vector<128x8xf32>
    %214 = arith.truncf %213 : vector<128x8xf32> to vector<128x8xbf16>
    %c1_117 = arith.constant 1 : index
    %c0_118 = arith.constant 0 : index
    %c0_119 = arith.constant 0 : index
    %215 = vector.load %arg9[%c1_117, %c0_118, %c0_119] : memref<4x8x32xbf16, #tpu.memory_space<vmem>>, vector<1x8x32xbf16>
    %216 = vector.shape_cast %215 : vector<1x8x32xbf16> to vector<8x32xbf16>
    %cst_120 = arith.constant dense<0.000000e+00> : vector<128x32xf32>
    %217 = tpu.matmul %214, %216, %cst_120 {dimension_numbers = #tpu.dot_dimension_numbers<[1], [0], [0], [1], [0, 0, 1, 1], [], []>} : vector<128x8xbf16>, vector<8x32xbf16>, vector<128x32xf32> -> vector<128x32xf32>
    %218 = arith.addf %211, %217 : vector<128x32xf32>
    %219 = vector.extract_strided_slice %205 {offsets = [2, 0, 0], sizes = [1, 128, 8], strides = [1, 1, 1]} : vector<4x128x8xf32> to vector<1x128x8xf32>
    %220 = vector.shape_cast %219 : vector<1x128x8xf32> to vector<128x8xf32>
    %221 = arith.truncf %220 : vector<128x8xf32> to vector<128x8xbf16>
    %c2_121 = arith.constant 2 : index
    %c0_122 = arith.constant 0 : index
    %c0_123 = arith.constant 0 : index
    %222 = vector.load %arg9[%c2_121, %c0_122, %c0_123] : memref<4x8x32xbf16, #tpu.memory_space<vmem>>, vector<1x8x32xbf16>
    %223 = vector.shape_cast %222 : vector<1x8x32xbf16> to vector<8x32xbf16>
    %cst_124 = arith.constant dense<0.000000e+00> : vector<128x32xf32>
    %224 = tpu.matmul %221, %223, %cst_124 {dimension_numbers = #tpu.dot_dimension_numbers<[1], [0], [0], [1], [0, 0, 1, 1], [], []>} : vector<128x8xbf16>, vector<8x32xbf16>, vector<128x32xf32> -> vector<128x32xf32>
    %225 = arith.addf %218, %224 : vector<128x32xf32>
    %226 = vector.extract_strided_slice %205 {offsets = [3, 0, 0], sizes = [1, 128, 8], strides = [1, 1, 1]} : vector<4x128x8xf32> to vector<1x128x8xf32>
    %227 = vector.shape_cast %226 : vector<1x128x8xf32> to vector<128x8xf32>
    %228 = arith.truncf %227 : vector<128x8xf32> to vector<128x8xbf16>
    %c3_125 = arith.constant 3 : index
    %c0_126 = arith.constant 0 : index
    %c0_127 = arith.constant 0 : index
    %229 = vector.load %arg9[%c3_125, %c0_126, %c0_127] : memref<4x8x32xbf16, #tpu.memory_space<vmem>>, vector<1x8x32xbf16>
    %230 = vector.shape_cast %229 : vector<1x8x32xbf16> to vector<8x32xbf16>
    %cst_128 = arith.constant dense<0.000000e+00> : vector<128x32xf32>
    %231 = tpu.matmul %228, %230, %cst_128 {dimension_numbers = #tpu.dot_dimension_numbers<[1], [0], [0], [1], [0, 0, 1, 1], [], []>} : vector<128x8xbf16>, vector<8x32xbf16>, vector<128x32xf32> -> vector<128x32xf32>
    %232 = arith.addf %225, %231 : vector<128x32xf32>
    %c0_129 = arith.constant 0 : index
    %c0_130 = arith.constant 0 : index
    %233 = vector.load %arg10[%c0_129, %c0_130] : memref<1x32xf32, #tpu.memory_space<vmem>>, vector<1x32xf32>
    %234 = vector.broadcast %233 : vector<1x32xf32> to vector<128x32xf32>
    %235 = arith.addf %232, %234 : vector<128x32xf32>
    %cst_131 = arith.constant 0.000000e+00 : f32
    %236 = vector.broadcast %cst_131 : f32 to vector<128x32xf32>
    %237 = arith.maximumf %235, %236 : vector<128x32xf32>
    %238 = arith.truncf %237 : vector<128x32xf32> to vector<128x32xbf16>
    %c0_132 = arith.constant 0 : index
    %c0_133 = arith.constant 0 : index
    %239 = vector.load %arg11[%c0_132, %c0_133] : memref<32x32xbf16, #tpu.memory_space<vmem>>, vector<32x32xbf16>
    %cst_134 = arith.constant dense<0.000000e+00> : vector<128x32xf32>
    %240 = tpu.matmul %238, %239, %cst_134 {dimension_numbers = #tpu.dot_dimension_numbers<[1], [0], [0], [1], [0, 0, 1, 1], [], []>} : vector<128x32xbf16>, vector<32x32xbf16>, vector<128x32xf32> -> vector<128x32xf32>
    %c0_135 = arith.constant 0 : index
    %c0_136 = arith.constant 0 : index
    %241 = vector.load %arg12[%c0_135, %c0_136] : memref<1x32xf32, #tpu.memory_space<vmem>>, vector<1x32xf32>
    %242 = vector.broadcast %241 : vector<1x32xf32> to vector<128x32xf32>
    %243 = arith.addf %240, %242 : vector<128x32xf32>
    %244 = vector.shape_cast %243 : vector<128x32xf32> to vector<8x16x32xf32>
    %c0_137 = arith.constant 0 : index
    %c0_138 = arith.constant 0 : index
    %c0_139 = arith.constant 0 : index
    %c0_140 = arith.constant 0 : index
    %245 = vector.load %arg13[%c0_137, %c0_138, %c0_139, %c0_140] : memref<1x8x16x32xf32, #tpu.memory_space<vmem>>, vector<1x8x16x32xf32>
    %246 = vector.shape_cast %245 : vector<1x8x16x32xf32> to vector<8x16x32xf32>
    %247 = vector.shape_cast %244 : vector<8x16x32xf32> to vector<1x8x16x32xf32>
    tpu.vector_store %arg13[%c0_137, %c0_138, %c0_139, %c0_140], %247 {strides = array<i32>} : memref<1x8x16x32xf32, #tpu.memory_space<vmem>>, vector<1x8x16x32xf32>,
    return
  }
  func.func @transform_0(%arg0: i32) -> (i32, i32, i32) {
    %c0_i32 = arith.constant 0 : i32
    %c0_i32_0 = arith.constant 0 : i32
    %c0_i32_1 = arith.constant 0 : i32
    return %arg0, %c0_i32, %c0_i32_0 : i32, i32, i32
  }
  func.func @transform_1(%arg0: i32) -> (i32, i32, i32) {
    %c0_i32 = arith.constant 0 : i32
    %c0_i32_0 = arith.constant 0 : i32
    %c0_i32_1 = arith.constant 0 : i32
    return %arg0, %c0_i32, %c0_i32_0 : i32, i32, i32
  }
  func.func @transform_2(%arg0: i32) -> (i32, i32, i32) {
    %c0_i32 = arith.constant 0 : i32
    %c0_i32_0 = arith.constant 0 : i32
    %c0_i32_1 = arith.constant 0 : i32
    %c0_i32_2 = arith.constant 0 : i32
    return %c0_i32, %c0_i32_0, %c0_i32_1 : i32, i32, i32
  }
  func.func @transform_3(%arg0: i32) -> (i32, i32, i32) {
    %c0_i32 = arith.constant 0 : i32
    %c0_i32_0 = arith.constant 0 : i32
    %c0_i32_1 = arith.constant 0 : i32
    %c0_i32_2 = arith.constant 0 : i32
    return %c0_i32, %c0_i32_0, %c0_i32_1 : i32, i32, i32
  }
  func.func @transform_4(%arg0: i32) -> (i32, i32, i32) {
    %c0_i32 = arith.constant 0 : i32
    %c0_i32_0 = arith.constant 0 : i32
    %c0_i32_1 = arith.constant 0 : i32
    %c0_i32_2 = arith.constant 0 : i32
    return %c0_i32, %c0_i32_0, %c0_i32_1 : i32, i32, i32
  }
  func.func @transform_5(%arg0: i32) -> (i32, i32, i32) {
    %c0_i32 = arith.constant 0 : i32
    %c0_i32_0 = arith.constant 0 : i32
    %c0_i32_1 = arith.constant 0 : i32
    %c0_i32_2 = arith.constant 0 : i32
    return %c0_i32, %c0_i32_0, %c0_i32_1 : i32, i32, i32
  }
  func.func @transform_6(%arg0: i32) -> (i32, i32, i32) {
    %c0_i32 = arith.constant 0 : i32
    %c0_i32_0 = arith.constant 0 : i32
    %c0_i32_1 = arith.constant 0 : i32
    %c0_i32_2 = arith.constant 0 : i32
    return %c0_i32, %c0_i32_0, %c0_i32_1 : i32, i32, i32
  }
  func.func @transform_7(%arg0: i32) -> (i32, i32, i32) {
    %c0_i32 = arith.constant 0 : i32
    %c0_i32_0 = arith.constant 0 : i32
    %c0_i32_1 = arith.constant 0 : i32
    %c0_i32_2 = arith.constant 0 : i32
    return %c0_i32, %c0_i32_0, %c0_i32_1 : i32, i32, i32
  }
  func.func @transform_8(%arg0: i32) -> (i32, i32, i32) {
    %c0_i32 = arith.constant 0 : i32
    %c0_i32_0 = arith.constant 0 : i32
    %c0_i32_1 = arith.constant 0 : i32
    %c0_i32_2 = arith.constant 0 : i32
    return %c0_i32, %c0_i32_0, %c0_i32_1 : i32, i32, i32
  }
  func.func @transform_9(%arg0: i32) -> (i32, i32) {
    %c0_i32 = arith.constant 0 : i32
    %c0_i32_0 = arith.constant 0 : i32
    %c0_i32_1 = arith.constant 0 : i32
    return %c0_i32, %c0_i32_0 : i32, i32
  }
  func.func @transform_10(%arg0: i32) -> (i32, i32) {
    %c0_i32 = arith.constant 0 : i32
    %c0_i32_0 = arith.constant 0 : i32
    %c0_i32_1 = arith.constant 0 : i32
    return %c0_i32, %c0_i32_0 : i32, i32
  }
  func.func @transform_11(%arg0: i32) -> (i32, i32) {
    %c0_i32 = arith.constant 0 : i32
    %c0_i32_0 = arith.constant 0 : i32
    %c0_i32_1 = arith.constant 0 : i32
    return %c0_i32, %c0_i32_0 : i32, i32
  }
  func.func @transform_12(%arg0: i32) -> (i32, i32, i32, i32) {
    %c0_i32 = arith.constant 0 : i32
    %c0_i32_0 = arith.constant 0 : i32
    %c0_i32_1 = arith.constant 0 : i32
    %c0_i32_2 = arith.constant 0 : i32
    return %arg0, %c0_i32, %c0_i32_0, %c0_i32_1 : i32, i32, i32, i32
  }
}

</mosaic_0001>

<llo_original>
// kernel: tpu_custom_call.1
$region0: #{tpu_custom_call.1}
  #allocation0 [shape = 'u32[]', space=smem, size = 0x4, offset = 0x4, fixed_abs, tag = 'smem constant byte address 0x4 - core index']
  #allocation1 [shape = 'u32[72,128]{1,0:T(1,128)}', space=vmem, size = 0x9000, scoped, tag = 'internal scratch']
  %s0 = inlined_call_operand.vmem [shape: f32[1,128,32], index: 0, kind: input, shape index: {}]
  %s1 = inlined_call_operand.vmem [shape: f32[1,128,32], index: 1, kind: input, shape index: {}]
  %s2 = inlined_call_operand.vmem [shape: bf16[4,64,8], index: 2, kind: input, shape index: {}]
  %s3 = inlined_call_operand.vmem [shape: f32[4,1,8], index: 3, kind: input, shape index: {}]
  %s4 = inlined_call_operand.vmem [shape: bf16[4,64,8], index: 4, kind: input, shape index: {}]
  %s5 = inlined_call_operand.vmem [shape: f32[4,1,8], index: 5, kind: input, shape index: {}]
  %s6 = inlined_call_operand.vmem [shape: bf16[4,64,8], index: 6, kind: input, shape index: {}]
  %s7 = inlined_call_operand.vmem [shape: f32[4,1,8], index: 7, kind: input, shape index: {}]
  %s8 = inlined_call_operand.vmem [shape: bf16[4,8,32], index: 8, kind: input, shape index: {}]
  %s9 = inlined_call_operand.vmem [shape: f32[1,32], index: 9, kind: input, shape index: {}]
  %s10 = inlined_call_operand.vmem [shape: bf16[32,32], index: 10, kind: input, shape index: {}]
  %s11 = inlined_call_operand.vmem [shape: f32[1,32], index: 11, kind: input, shape index: {}]
  %s12 = inlined_call_operand.hbm [shape: f32[1,8,16,32], index: 12, kind: output, shape index: {}]
  %s13 = sld [smem:[#allocation0]]
  $region58: #{tpu_custom_call.1} parent=0
    _
  %s15 = ssub.s32 1, %s13
  %s16 = scalar_select 0, %s15, %s13
  $region1: #{tpu_custom_call.1} parent=0
    #allocation2 [shape = 'u8[65536]{0}', space=vmem, size = 0x10000, scoped, tag = 'output window, operand 0, single buffered']
    #allocation3 [shape = 's32[1]{0}', space=sflag, size = 0x4, scoped, tag = 'scoped memory for tpu_custom_call.1']
    %17 = vsyncpa [#allocation3], 0
    // Predicated region
    $region2: #{tpu_custom_call.1} parent=1 // pred_check
      _
    $region3: #{tpu_custom_call.1} parent=1 // pred_check_branch
      %19 = sbr.rel (0) target = $region5
    $region4: #{tpu_custom_call.1} parent=1 // pred_region
      _
    $region5: #{tpu_custom_call.1} parent=1 // pred_fallthru
      _
    // Predicated region
    $region6: #{tpu_custom_call.1} parent=1 // pred_check
      _
    $region7: #{tpu_custom_call.1} parent=1 // pred_check_branch
      %21 = sbr.rel (0) target = $region9
    $region8: #{tpu_custom_call.1} parent=1 // pred_region
      _
    $region9: #{tpu_custom_call.1} parent=1 // pred_fallthru
      _
    // Predicated region
    $region10: #{tpu_custom_call.1} parent=1 // pred_check
      _
    $region11: #{tpu_custom_call.1} parent=1 // pred_check_branch
      %23 = sbr.rel (0) target = $region13
    $region12: #{tpu_custom_call.1} parent=1 // pred_region
      _
    $region13: #{tpu_custom_call.1} parent=1 // pred_fallthru
      _
    // Predicated region
    $region14: #{tpu_custom_call.1} parent=1 // pred_check
      _
    $region15: #{tpu_custom_call.1} parent=1 // pred_check_branch
      %25 = sbr.rel (0) target = $region17
    $region16: #{tpu_custom_call.1} parent=1 // pred_region
      _
    $region17: #{tpu_custom_call.1} parent=1 // pred_fallthru
      _
    // Predicated region
    $region18: #{tpu_custom_call.1} parent=1 // pred_check
      _
    $region19: #{tpu_custom_call.1} parent=1 // pred_check_branch
      %27 = sbr.rel (0) target = $region21
    $region20: #{tpu_custom_call.1} parent=1 // pred_region
      _
    $region21: #{tpu_custom_call.1} parent=1 // pred_fallthru
      _
    // Predicated region
    $region22: #{tpu_custom_call.1} parent=1 // pred_check
      _
    $region23: #{tpu_custom_call.1} parent=1 // pred_check_branch
      %29 = sbr.rel (0) target = $region25
    $region24: #{tpu_custom_call.1} parent=1 // pred_region
      _
    $region25: #{tpu_custom_call.1} parent=1 // pred_fallthru
      _
    // Predicated region
    $region26: #{tpu_custom_call.1} parent=1 // pred_check
      _
    $region27: #{tpu_custom_call.1} parent=1 // pred_check_branch
      %31 = sbr.rel (0) target = $region29
    $region28: #{tpu_custom_call.1} parent=1 // pred_region
      _
    $region29: #{tpu_custom_call.1} parent=1 // pred_fallthru
      _
    // Predicated region
    $region30: #{tpu_custom_call.1} parent=1 // pred_check
      _
    $region31: #{tpu_custom_call.1} parent=1 // pred_check_branch
      %33 = sbr.rel (0) target = $region33
    $region32: #{tpu_custom_call.1} parent=1 // pred_region
      _
    $region33: #{tpu_custom_call.1} parent=1 // pred_fallthru
      _
    // Predicated region
    $region34: #{tpu_custom_call.1} parent=1 // pred_check
      _
    $region35: #{tpu_custom_call.1} parent=1 // pred_check_branch
      %35 = sbr.rel (0) target = $region37
    $region36: #{tpu_custom_call.1} parent=1 // pred_region
      _
    $region37: #{tpu_custom_call.1} parent=1 // pred_fallthru
      _
    // Predicated region
    $region38: #{tpu_custom_call.1} parent=1 // pred_check
      _
    $region39: #{tpu_custom_call.1} parent=1 // pred_check_branch
      %37 = sbr.rel (0) target = $region41
    $region40: #{tpu_custom_call.1} parent=1 // pred_region
      _
    $region41: #{tpu_custom_call.1} parent=1 // pred_fallthru
      _
    // Predicated region
    $region42: #{tpu_custom_call.1} parent=1 // pred_check
      _
    $region43: #{tpu_custom_call.1} parent=1 // pred_check_branch
      %39 = sbr.rel (0) target = $region45
    $region44: #{tpu_custom_call.1} parent=1 // pred_region
      _
    $region45: #{tpu_custom_call.1} parent=1 // pred_fallthru
      _
    // Predicated region
    $region46: #{tpu_custom_call.1} parent=1 // pred_check
      _
    $region47: #{tpu_custom_call.1} parent=1 // pred_check_branch
      %41 = sbr.rel (0) target = $region49
    $region48: #{tpu_custom_call.1} parent=1 // pred_region
      _
    $region49: #{tpu_custom_call.1} parent=1 // pred_fallthru
      _
    %v43 = vld [vmem:[%s0] sm:$0xff]
    %v44 = vld [vmem:[%s0 + $0x8] sm:$0xff]
    %v45 = vld [vmem:[%s0 + $0x10] sm:$0xff]
    %v46 = vld [vmem:[%s0 + $0x18] sm:$0xff]
    %v47 = vld [vmem:[%s0 + $0x20] sm:$0xff]
    %v48 = vld [vmem:[%s0 + $0x28] sm:$0xff]
    %v49 = vld [vmem:[%s0 + $0x30] sm:$0xff]
    %v50 = vld [vmem:[%s0 + $0x38] sm:$0xff]
    %v51 = vld [vmem:[%s0 + $0x40] sm:$0xff]
    %v52 = vld [vmem:[%s0 + $0x48] sm:$0xff]
    %v53 = vld [vmem:[%s0 + $0x50] sm:$0xff]
    %v54 = vld [vmem:[%s0 + $0x58] sm:$0xff]
    %v55 = vld [vmem:[%s0 + $0x60] sm:$0xff]
    %v56 = vld [vmem:[%s0 + $0x68] sm:$0xff]
    %v57 = vld [vmem:[%s0 + $0x70] sm:$0xff]
    %v58 = vld [vmem:[%s0 + $0x78] sm:$0xff]
    %v59 = vpack.c.bf16 %v44, %v43
    %v60 = vpack.c.bf16 %v46, %v45
    %v61 = vpack.c.bf16 %v48, %v47
    %v62 = vpack.c.bf16 %v50, %v49
    %v63 = vpack.c.bf16 %v52, %v51
    %v64 = vpack.c.bf16 %v54, %v53
    %v65 = vpack.c.bf16 %v56, %v55
    %v66 = vpack.c.bf16 %v58, %v57
    %v67 = vld [vmem:[%s1] sm:$0xff]
    %v68 = vld [vmem:[%s1 + $0x8] sm:$0xff]
    %v69 = vld [vmem:[%s1 + $0x10] sm:$0xff]
    %v70 = vld [vmem:[%s1 + $0x18] sm:$0xff]
    %v71 = vld [vmem:[%s1 + $0x20] sm:$0xff]
    %v72 = vld [vmem:[%s1 + $0x28] sm:$0xff]
    %v73 = vld [vmem:[%s1 + $0x30] sm:$0xff]
    %v74 = vld [vmem:[%s1 + $0x38] sm:$0xff]
    %v75 = vld [vmem:[%s1 + $0x40] sm:$0xff]
    %v76 = vld [vmem:[%s1 + $0x48] sm:$0xff]
    %v77 = vld [vmem:[%s1 + $0x50] sm:$0xff]
    %v78 = vld [vmem:[%s1 + $0x58] sm:$0xff]
    %v79 = vld [vmem:[%s1 + $0x60] sm:$0xff]
    %v80 = vld [vmem:[%s1 + $0x68] sm:$0xff]
    %v81 = vld [vmem:[%s1 + $0x70] sm:$0xff]
    %v82 = vld [vmem:[%s1 + $0x78] sm:$0xff]
    %v83 = vpack.c.bf16 %v68, %v67
    %v84 = vpack.c.bf16 %v70, %v69
    %v85 = vpack.c.bf16 %v72, %v71
    %v86 = vpack.c.bf16 %v74, %v73
    %v87 = vpack.c.bf16 %v76, %v75
    %v88 = vpack.c.bf16 %v78, %v77
    %v89 = vpack.c.bf16 %v80, %v79
    %v90 = vpack.c.bf16 %v82, %v81
    %v91 = vld [vmem:[%s2] sm:$0xf]
    %v92 = vld [vmem:[%s2 + $0x4] sm:$0xf]
    %v93 = vld [vmem:[%s2 + $0x8] sm:$0xf]
    %v94 = vld [vmem:[%s2 + $0xc] sm:$0xf]
    %v95 = vld [vmem:[%s2 + $0x10] sm:$0xf]
    %v96 = vld [vmem:[%s2 + $0x14] sm:$0xf]
    %v97 = vld [vmem:[%s2 + $0x18] sm:$0xf]
    %v98 = vld [vmem:[%s2 + $0x1c] sm:$0xf]
    %v103 = vunpack.c.l.b16 %v95
    %v104 = vunpack.c.l.b16 %v96
    %v105 = vunpack.c.l.b16 %v97
    %v106 = vunpack.c.l.b16 %v98
    %v107 = vpack.c.b16 %v104, %v103
    %v108 = vpack.c.b16 %v106, %v105
    %vm111 = vcmask 261120
    %v113 = vsel %vm111, %v83, 0
    %v116 = vsel %vm111, %v84, 0
    %v119 = vsel %vm111, %v85, 0
    %v122 = vsel %vm111, %v86, 0
    %v125 = vsel %vm111, %v87, 0
    %v128 = vsel %vm111, %v88, 0
    %v131 = vsel %vm111, %v89, 0
    %v134 = vsel %vm111, %v90, 0
    %136 = vmatpush.bf16.msra.mxu0 0
    %137 = vmatpush.bf16.msra.mxu0 0
    %138 = vmatpush.bf16.msra.mxu0 0
    %139 = vmatpush.bf16.msra.mxu0 0
    %140 = vmatpush.bf16.msra.mxu0 0
    %141 = vmatpush.bf16.msra.mxu0 0
    %142 = vmatpush.bf16.msra.mxu0 %v108
    %143 = vmatpush.bf16.msra.mxu0 %v107
    %144 = vmatmul.bf16.gmra.mxu0 %v113
    %v145 = vpop.f32.mrf.mxu0
    %v146 = vadd.f32 0.0, %v145
    %v147 = vpop.f32.mrf.mxu0
    %v148 = vadd.f32 0.0, %v147
    %149 = vmatmul.bf16.gmra.mxu0 %v116
    %v150 = vpop.f32.mrf.mxu0
    %v151 = vadd.f32 0.0, %v150
    %v152 = vpop.f32.mrf.mxu0
    %v153 = vadd.f32 0.0, %v152
    %154 = vmatmul.bf16.gmra.mxu0 %v119
    %v155 = vpop.f32.mrf.mxu0
    %v156 = vadd.f32 0.0, %v155
    %v157 = vpop.f32.mrf.mxu0
    %v158 = vadd.f32 0.0, %v157
    %159 = vmatmul.bf16.gmra.mxu0 %v122
    %v160 = vpop.f32.mrf.mxu0
    %v161 = vadd.f32 0.0, %v160
    %v162 = vpop.f32.mrf.mxu0
    %v163 = vadd.f32 0.0, %v162
    %164 = vmatmul.bf16.gmra.mxu0 %v125
    %v165 = vpop.f32.mrf.mxu0
    %v166 = vadd.f32 0.0, %v165
    %v167 = vpop.f32.mrf.mxu0
    %v168 = vadd.f32 0.0, %v167
    %169 = vmatmul.bf16.gmra.mxu0 %v128
    %v170 = vpop.f32.mrf.mxu0
    %v171 = vadd.f32 0.0, %v170
    %v172 = vpop.f32.mrf.mxu0
    %v173 = vadd.f32 0.0, %v172
    %174 = vmatmul.bf16.gmra.mxu0 %v131
    %v175 = vpop.f32.mrf.mxu0
    %v176 = vadd.f32 0.0, %v175
    %v177 = vpop.f32.mrf.mxu0
    %v178 = vadd.f32 0.0, %v177
    %179 = vmatmul.bf16.gmra.mxu0 %v134
    %v180 = vpop.f32.mrf.mxu0
    %v181 = vadd.f32 0.0, %v180
    %v182 = vpop.f32.mrf.mxu0
    %v183 = vadd.f32 0.0, %v182
    %184 = vdwg.mxu0
    %v189 = vunpack.c.l.b16 %v91
    %v190 = vunpack.c.l.b16 %v92
    %v191 = vunpack.c.l.b16 %v93
    %v192 = vunpack.c.l.b16 %v94
    %v193 = vpack.c.b16 %v190, %v189
    %v194 = vpack.c.b16 %v192, %v191
    %v198 = vsel %vm111, %v59, 0
    %v201 = vsel %vm111, %v60, 0
    %v204 = vsel %vm111, %v61, 0
    %v207 = vsel %vm111, %v62, 0
    %v210 = vsel %vm111, %v63, 0
    %v213 = vsel %vm111, %v64, 0
    %v216 = vsel %vm111, %v65, 0
    %v219 = vsel %vm111, %v66, 0
    %221 = vmatpush.bf16.msra.mxu0 0
    %222 = vmatpush.bf16.msra.mxu0 0
    %223 = vmatpush.bf16.msra.mxu0 0
    %224 = vmatpush.bf16.msra.mxu0 0
    %225 = vmatpush.bf16.msra.mxu0 0
    %226 = vmatpush.bf16.msra.mxu0 0
    %227 = vmatpush.bf16.msra.mxu0 %v194
    %228 = vmatpush.bf16.msra.mxu0 %v193
    %229 = vmatmul.bf16.gmra.mxu0 %v198
    %v230 = vpop.f32.mrf.mxu0
    %v231 = vadd.f32 %v146, %v230
    %v232 = vpop.f32.mrf.mxu0
    %v233 = vadd.f32 %v148, %v232
    %234 = vmatmul.bf16.gmra.mxu0 %v201
    %v235 = vpop.f32.mrf.mxu0
    %v236 = vadd.f32 %v151, %v235
    %v237 = vpop.f32.mrf.mxu0
    %v238 = vadd.f32 %v153, %v237
    %239 = vmatmul.bf16.gmra.mxu0 %v204
    %v240 = vpop.f32.mrf.mxu0
    %v241 = vadd.f32 %v156, %v240
    %v242 = vpop.f32.mrf.mxu0
    %v243 = vadd.f32 %v158, %v242
    %244 = vmatmul.bf16.gmra.mxu0 %v207
    %v245 = vpop.f32.mrf.mxu0
    %v246 = vadd.f32 %v161, %v245
    %v247 = vpop.f32.mrf.mxu0
    %v248 = vadd.f32 %v163, %v247
    %249 = vmatmul.bf16.gmra.mxu0 %v210
    %v250 = vpop.f32.mrf.mxu0
    %v251 = vadd.f32 %v166, %v250
    %v252 = vpop.f32.mrf.mxu0
    %v253 = vadd.f32 %v168, %v252
    %254 = vmatmul.bf16.gmra.mxu0 %v213
    %v255 = vpop.f32.mrf.mxu0
    %v256 = vadd.f32 %v171, %v255
    %v257 = vpop.f32.mrf.mxu0
    %v258 = vadd.f32 %v173, %v257
    %259 = vmatmul.bf16.gmra.mxu0 %v216
    %v260 = vpop.f32.mrf.mxu0
    %v261 = vadd.f32 %v176, %v260
    %v262 = vpop.f32.mrf.mxu0
    %v263 = vadd.f32 %v178, %v262
    %264 = vmatmul.bf16.gmra.mxu0 %v219
    %v265 = vpop.f32.mrf.mxu0
    %v266 = vadd.f32 %v181, %v265
    %v267 = vpop.f32.mrf.mxu0
    %v268 = vadd.f32 %v183, %v267
    %269 = vdwg.mxu0
    %v270 = vld [vmem:[%s3] sm:$0x1]
    %v272 = vperm.slane %v270, 0
    %v274 = vadd.f32 %v231, %v272
    %v275 = vadd.f32 %v233, %v272
    %v276 = vadd.f32 %v236, %v272
    %v277 = vadd.f32 %v238, %v272
    %v278 = vadd.f32 %v241, %v272
    %v279 = vadd.f32 %v243, %v272
    %v280 = vadd.f32 %v246, %v272
    %v281 = vadd.f32 %v248, %v272
    %v282 = vadd.f32 %v251, %v272
    %v283 = vadd.f32 %v253, %v272
    %v284 = vadd.f32 %v256, %v272
    %v285 = vadd.f32 %v258, %v272
    %v286 = vadd.f32 %v261, %v272
    %v287 = vadd.f32 %v263, %v272
    %v288 = vadd.f32 %v266, %v272
    %v289 = vadd.f32 %v268, %v272
    %v290 = vmax.f32 %v274, 0.0
    %v291 = vmax.f32 %v275, 0.0
    %v292 = vmax.f32 %v276, 0.0
    %v293 = vmax.f32 %v277, 0.0
    %v294 = vmax.f32 %v278, 0.0
    %v295 = vmax.f32 %v279, 0.0
    %v296 = vmax.f32 %v280, 0.0
    %v297 = vmax.f32 %v281, 0.0
    %v298 = vmax.f32 %v282, 0.0
    %v299 = vmax.f32 %v283, 0.0
    %v300 = vmax.f32 %v284, 0.0
    %v301 = vmax.f32 %v285, 0.0
    %v302 = vmax.f32 %v286, 0.0
    %v303 = vmax.f32 %v287, 0.0
    %v304 = vmax.f32 %v288, 0.0
    %v305 = vmax.f32 %v289, 0.0
    %v306 = vpack.c.bf16 %v290, %v290
    %v307 = vpack.c.bf16 %v291, %v291
    %v308 = vpack.c.bf16 %v292, %v292
    %v309 = vpack.c.bf16 %v293, %v293
    %v310 = vpack.c.bf16 %v294, %v294
    %v311 = vpack.c.bf16 %v295, %v295
    %v312 = vpack.c.bf16 %v296, %v296
    %v313 = vpack.c.bf16 %v297, %v297
    %v314 = vpack.c.bf16 %v298, %v298
    %v315 = vpack.c.bf16 %v299, %v299
    %v316 = vpack.c.bf16 %v300, %v300
    %v317 = vpack.c.bf16 %v301, %v301
    %v318 = vpack.c.bf16 %v302, %v302
    %v319 = vpack.c.bf16 %v303, %v303
    %v320 = vpack.c.bf16 %v304, %v304
    %v321 = vpack.c.bf16 %v305, %v305
    %v322 = vld [vmem:[%s4] sm:$0xf]
    %v323 = vld [vmem:[%s4 + $0x4] sm:$0xf]
    %v324 = vld [vmem:[%s4 + $0x8] sm:$0xf]
    %v325 = vld [vmem:[%s4 + $0xc] sm:$0xf]
    %v326 = vld [vmem:[%s4 + $0x10] sm:$0xf]
    %v327 = vld [vmem:[%s4 + $0x14] sm:$0xf]
    %v328 = vld [vmem:[%s4 + $0x18] sm:$0xf]
    %v329 = vld [vmem:[%s4 + $0x1c] sm:$0xf]
    %v334 = vunpack.c.l.b16 %v326
    %v335 = vunpack.c.l.b16 %v327
    %v336 = vunpack.c.l.b16 %v328
    %v337 = vunpack.c.l.b16 %v329
    %v338 = vpack.c.b16 %v335, %v334
    %v339 = vpack.c.b16 %v337, %v336
    %342 = vmatpush.bf16.msra.mxu0 0
    %343 = vmatpush.bf16.msra.mxu0 0
    %344 = vmatpush.bf16.msra.mxu0 0
    %345 = vmatpush.bf16.msra.mxu0 0
    %346 = vmatpush.bf16.msra.mxu0 0
    %347 = vmatpush.bf16.msra.mxu0 0
    %348 = vmatpush.bf16.msra.mxu0 %v339
    %349 = vmatpush.bf16.msra.mxu0 %v338
    %350 = vmatmul.bf16.gmra.mxu0 %v113
    %v351 = vpop.f32.mrf.mxu0
    %v352 = vadd.f32 0.0, %v351
    %v353 = vpop.f32.mrf.mxu0
    %v354 = vadd.f32 0.0, %v353
    %355 = vmatmul.bf16.gmra.mxu0 %v116
    %v356 = vpop.f32.mrf.mxu0
    %v357 = vadd.f32 0.0, %v356
    %v358 = vpop.f32.mrf.mxu0
    %v359 = vadd.f32 0.0, %v358
    %360 = vmatmul.bf16.gmra.mxu0 %v119
    %v361 = vpop.f32.mrf.mxu0
    %v362 = vadd.f32 0.0, %v361
    %v363 = vpop.f32.mrf.mxu0
    %v364 = vadd.f32 0.0, %v363
    %365 = vmatmul.bf16.gmra.mxu0 %v122
    %v366 = vpop.f32.mrf.mxu0
    %v367 = vadd.f32 0.0, %v366
    %v368 = vpop.f32.mrf.mxu0
    %v369 = vadd.f32 0.0, %v368
    %370 = vmatmul.bf16.gmra.mxu0 %v125
    %v371 = vpop.f32.mrf.mxu0
    %v372 = vadd.f32 0.0, %v371
    %v373 = vpop.f32.mrf.mxu0
    %v374 = vadd.f32 0.0, %v373
    %375 = vmatmul.bf16.gmra.mxu0 %v128
    %v376 = vpop.f32.mrf.mxu0
    %v377 = vadd.f32 0.0, %v376
    %v378 = vpop.f32.mrf.mxu0
    %v379 = vadd.f32 0.0, %v378
    %380 = vmatmul.bf16.gmra.mxu0 %v131
    %v381 = vpop.f32.mrf.mxu0
    %v382 = vadd.f32 0.0, %v381
    %v383 = vpop.f32.mrf.mxu0
    %v384 = vadd.f32 0.0, %v383
    %385 = vmatmul.bf16.gmra.mxu0 %v134
    %v386 = vpop.f32.mrf.mxu0
    %v387 = vadd.f32 0.0, %v386
    %v388 = vpop.f32.mrf.mxu0
    %v389 = vadd.f32 0.0, %v388
    %390 = vdwg.mxu0
    %v395 = vunpack.c.l.b16 %v322
    %v396 = vunpack.c.l.b16 %v323
    %v397 = vunpack.c.l.b16 %v324
    %v398 = vunpack.c.l.b16 %v325
    %v399 = vpack.c.b16 %v396, %v395
    %v400 = vpack.c.b16 %v398, %v397
    %403 = vmatpush.bf16.msra.mxu0 0
    %404 = vmatpush.bf16.msra.mxu0 0
    %405 = vmatpush.bf16.msra.mxu0 0
    %406 = vmatpush.bf16.msra.mxu0 0
    %407 = vmatpush.bf16.msra.mxu0 0
    %408 = vmatpush.bf16.msra.mxu0 0
    %409 = vmatpush.bf16.msra.mxu0 %v400
    %410 = vmatpush.bf16.msra.mxu0 %v399
    %411 = vmatmul.bf16.gmra.mxu0 %v198
    %v412 = vpop.f32.mrf.mxu0
    %v413 = vadd.f32 %v352, %v412
    %v414 = vpop.f32.mrf.mxu0
    %v415 = vadd.f32 %v354, %v414
    %416 = vmatmul.bf16.gmra.mxu0 %v201
    %v417 = vpop.f32.mrf.mxu0
    %v418 = vadd.f32 %v357, %v417
    %v419 = vpop.f32.mrf.mxu0
    %v420 = vadd.f32 %v359, %v419
    %421 = vmatmul.bf16.gmra.mxu0 %v204
    %v422 = vpop.f32.mrf.mxu0
    %v423 = vadd.f32 %v362, %v422
    %v424 = vpop.f32.mrf.mxu0
    %v425 = vadd.f32 %v364, %v424
    %426 = vmatmul.bf16.gmra.mxu0 %v207
    %v427 = vpop.f32.mrf.mxu0
    %v428 = vadd.f32 %v367, %v427
    %v429 = vpop.f32.mrf.mxu0
    %v430 = vadd.f32 %v369, %v429
    %431 = vmatmul.bf16.gmra.mxu0 %v210
    %v432 = vpop.f32.mrf.mxu0
    %v433 = vadd.f32 %v372, %v432
    %v434 = vpop.f32.mrf.mxu0
    %v435 = vadd.f32 %v374, %v434
    %436 = vmatmul.bf16.gmra.mxu0 %v213
    %v437 = vpop.f32.mrf.mxu0
    %v438 = vadd.f32 %v377, %v437
    %v439 = vpop.f32.mrf.mxu0
    %v440 = vadd.f32 %v379, %v439
    %441 = vmatmul.bf16.gmra.mxu0 %v216
    %v442 = vpop.f32.mrf.mxu0
    %v443 = vadd.f32 %v382, %v442
    %v444 = vpop.f32.mrf.mxu0
    %v445 = vadd.f32 %v384, %v444
    %446 = vmatmul.bf16.gmra.mxu0 %v219
    %v447 = vpop.f32.mrf.mxu0
    %v448 = vadd.f32 %v387, %v447
    %v449 = vpop.f32.mrf.mxu0
    %v450 = vadd.f32 %v389, %v449
    %451 = vdwg.mxu0
    %v452 = vld [vmem:[%s5] sm:$0x1]
    %v454 = vperm.slane %v452, 0
    %v456 = vadd.f32 %v413, %v454
    %v457 = vadd.f32 %v415, %v454
    %v458 = vadd.f32 %v418, %v454
    %v459 = vadd.f32 %v420, %v454
    %v460 = vadd.f32 %v423, %v454
    %v461 = vadd.f32 %v425, %v454
    %v462 = vadd.f32 %v428, %v454
    %v463 = vadd.f32 %v430, %v454
    %v464 = vadd.f32 %v433, %v454
    %v465 = vadd.f32 %v435, %v454
    %v466 = vadd.f32 %v438, %v454
    %v467 = vadd.f32 %v440, %v454
    %v468 = vadd.f32 %v443, %v454
    %v469 = vadd.f32 %v445, %v454
    %v470 = vadd.f32 %v448, %v454
    %v471 = vadd.f32 %v450, %v454
    %v472 = vmax.f32 %v456, 0.0
    %v473 = vmax.f32 %v457, 0.0
    %v474 = vmax.f32 %v458, 0.0
    %v475 = vmax.f32 %v459, 0.0
    %v476 = vmax.f32 %v460, 0.0
    %v477 = vmax.f32 %v461, 0.0
    %v478 = vmax.f32 %v462, 0.0
    %v479 = vmax.f32 %v463, 0.0
    %v480 = vmax.f32 %v464, 0.0
    %v481 = vmax.f32 %v465, 0.0
    %v482 = vmax.f32 %v466, 0.0
    %v483 = vmax.f32 %v467, 0.0
    %v484 = vmax.f32 %v468, 0.0
    %v485 = vmax.f32 %v469, 0.0
    %v486 = vmax.f32 %v470, 0.0
    %v487 = vmax.f32 %v471, 0.0
    %v488 = vpack.c.bf16 %v472, %v472
    %v489 = vpack.c.bf16 %v473, %v473
    %v490 = vpack.c.bf16 %v474, %v474
    %v491 = vpack.c.bf16 %v475, %v475
    %v492 = vpack.c.bf16 %v476, %v476
    %v493 = vpack.c.bf16 %v477, %v477
    %v494 = vpack.c.bf16 %v478, %v478
    %v495 = vpack.c.bf16 %v479, %v479
    %v496 = vpack.c.bf16 %v480, %v480
    %v497 = vpack.c.bf16 %v481, %v481
    %v498 = vpack.c.bf16 %v482, %v482
    %v499 = vpack.c.bf16 %v483, %v483
    %v500 = vpack.c.bf16 %v484, %v484
    %v501 = vpack.c.bf16 %v485, %v485
    %v502 = vpack.c.bf16 %v486, %v486
    %v503 = vpack.c.bf16 %v487, %v487
    %v504 = vld [vmem:[%s6] sm:$0xf]
    %v505 = vld [vmem:[%s6 + $0x4] sm:$0xf]
    %v506 = vld [vmem:[%s6 + $0x8] sm:$0xf]
    %v507 = vld [vmem:[%s6 + $0xc] sm:$0xf]
    %v508 = vld [vmem:[%s6 + $0x10] sm:$0xf]
    %v509 = vld [vmem:[%s6 + $0x14] sm:$0xf]
    %v510 = vld [vmem:[%s6 + $0x18] sm:$0xf]
    %v511 = vld [vmem:[%s6 + $0x1c] sm:$0xf]
    %v516 = vunpack.c.l.b16 %v508
    %v517 = vunpack.c.l.b16 %v509
    %v518 = vunpack.c.l.b16 %v510
    %v519 = vunpack.c.l.b16 %v511
    %v520 = vpack.c.b16 %v517, %v516
    %v521 = vpack.c.b16 %v519, %v518
    %524 = vmatpush.bf16.msra.mxu0 0
    %525 = vmatpush.bf16.msra.mxu0 0
    %526 = vmatpush.bf16.msra.mxu0 0
    %527 = vmatpush.bf16.msra.mxu0 0
    %528 = vmatpush.bf16.msra.mxu0 0
    %529 = vmatpush.bf16.msra.mxu0 0
    %530 = vmatpush.bf16.msra.mxu0 %v521
    %531 = vmatpush.bf16.msra.mxu0 %v520
    %532 = vmatmul.bf16.gmra.mxu0 %v113
    %v533 = vpop.f32.mrf.mxu0
    %v534 = vadd.f32 0.0, %v533
    %v535 = vpop.f32.mrf.mxu0
    %v536 = vadd.f32 0.0, %v535
    %537 = vmatmul.bf16.gmra.mxu0 %v116
    %v538 = vpop.f32.mrf.mxu0
    %v539 = vadd.f32 0.0, %v538
    %v540 = vpop.f32.mrf.mxu0
    %v541 = vadd.f32 0.0, %v540
    %542 = vmatmul.bf16.gmra.mxu0 %v119
    %v543 = vpop.f32.mrf.mxu0
    %v544 = vadd.f32 0.0, %v543
    %v545 = vpop.f32.mrf.mxu0
    %v546 = vadd.f32 0.0, %v545
    %547 = vmatmul.bf16.gmra.mxu0 %v122
    %v548 = vpop.f32.mrf.mxu0
    %v549 = vadd.f32 0.0, %v548
    %v550 = vpop.f32.mrf.mxu0
    %v551 = vadd.f32 0.0, %v550
    %552 = vmatmul.bf16.gmra.mxu0 %v125
    %v553 = vpop.f32.mrf.mxu0
    %v554 = vadd.f32 0.0, %v553
    %v555 = vpop.f32.mrf.mxu0
    %v556 = vadd.f32 0.0, %v555
    %557 = vmatmul.bf16.gmra.mxu0 %v128
    %v558 = vpop.f32.mrf.mxu0
    %v559 = vadd.f32 0.0, %v558
    %v560 = vpop.f32.mrf.mxu0
    %v561 = vadd.f32 0.0, %v560
    %562 = vmatmul.bf16.gmra.mxu0 %v131
    %v563 = vpop.f32.mrf.mxu0
    %v564 = vadd.f32 0.0, %v563
    %v565 = vpop.f32.mrf.mxu0
    %v566 = vadd.f32 0.0, %v565
    %567 = vmatmul.bf16.gmra.mxu0 %v134
    %v568 = vpop.f32.mrf.mxu0
    %v569 = vadd.f32 0.0, %v568
    %v570 = vpop.f32.mrf.mxu0
    %v571 = vadd.f32 0.0, %v570
    %572 = vdwg.mxu0
    %v577 = vunpack.c.l.b16 %v504
    %v578 = vunpack.c.l.b16 %v505
    %v579 = vunpack.c.l.b16 %v506
    %v580 = vunpack.c.l.b16 %v507
    %v581 = vpack.c.b16 %v578, %v577
    %v582 = vpack.c.b16 %v580, %v579
    %585 = vmatpush.bf16.msra.mxu0 0
    %586 = vmatpush.bf16.msra.mxu0 0
    %587 = vmatpush.bf16.msra.mxu0 0
    %588 = vmatpush.bf16.msra.mxu0 0
    %589 = vmatpush.bf16.msra.mxu0 0
    %590 = vmatpush.bf16.msra.mxu0 0
    %591 = vmatpush.bf16.msra.mxu0 %v582
    %592 = vmatpush.bf16.msra.mxu0 %v581
    %593 = vmatmul.bf16.gmra.mxu0 %v198
    %v594 = vpop.f32.mrf.mxu0
    %v595 = vadd.f32 %v534, %v594
    %v596 = vpop.f32.mrf.mxu0
    %v597 = vadd.f32 %v536, %v596
    %598 = vmatmul.bf16.gmra.mxu0 %v201
    %v599 = vpop.f32.mrf.mxu0
    %v600 = vadd.f32 %v539, %v599
    %v601 = vpop.f32.mrf.mxu0
    %v602 = vadd.f32 %v541, %v601
    %603 = vmatmul.bf16.gmra.mxu0 %v204
    %v604 = vpop.f32.mrf.mxu0
    %v605 = vadd.f32 %v544, %v604
    %v606 = vpop.f32.mrf.mxu0
    %v607 = vadd.f32 %v546, %v606
    %608 = vmatmul.bf16.gmra.mxu0 %v207
    %v609 = vpop.f32.mrf.mxu0
    %v610 = vadd.f32 %v549, %v609
    %v611 = vpop.f32.mrf.mxu0
    %v612 = vadd.f32 %v551, %v611
    %613 = vmatmul.bf16.gmra.mxu0 %v210
    %v614 = vpop.f32.mrf.mxu0
    %v615 = vadd.f32 %v554, %v614
    %v616 = vpop.f32.mrf.mxu0
    %v617 = vadd.f32 %v556, %v616
    %618 = vmatmul.bf16.gmra.mxu0 %v213
    %v619 = vpop.f32.mrf.mxu0
    %v620 = vadd.f32 %v559, %v619
    %v621 = vpop.f32.mrf.mxu0
    %v622 = vadd.f32 %v561, %v621
    %623 = vmatmul.bf16.gmra.mxu0 %v216
    %v624 = vpop.f32.mrf.mxu0
    %v625 = vadd.f32 %v564, %v624
    %v626 = vpop.f32.mrf.mxu0
    %v627 = vadd.f32 %v566, %v626
    %628 = vmatmul.bf16.gmra.mxu0 %v219
    %v629 = vpop.f32.mrf.mxu0
    %v630 = vadd.f32 %v569, %v629
    %v631 = vpop.f32.mrf.mxu0
    %v632 = vadd.f32 %v571, %v631
    %633 = vdwg.mxu0
    %v634 = vld [vmem:[%s7] sm:$0x1]
    %v636 = vperm.slane %v634, 0
    %v638 = vadd.f32 %v595, %v636
    %v639 = vadd.f32 %v597, %v636
    %v640 = vadd.f32 %v600, %v636
    %v641 = vadd.f32 %v602, %v636
    %v642 = vadd.f32 %v605, %v636
    %v643 = vadd.f32 %v607, %v636
    %v644 = vadd.f32 %v610, %v636
    %v645 = vadd.f32 %v612, %v636
    %v646 = vadd.f32 %v615, %v636
    %v647 = vadd.f32 %v617, %v636
    %v648 = vadd.f32 %v620, %v636
    %v649 = vadd.f32 %v622, %v636
    %v650 = vadd.f32 %v625, %v636
    %v651 = vadd.f32 %v627, %v636
    %v652 = vadd.f32 %v630, %v636
    %v653 = vadd.f32 %v632, %v636
    %v654 = vmax.f32 %v638, 0.0
    %v655 = vmax.f32 %v639, 0.0
    %v656 = vmax.f32 %v640, 0.0
    %v657 = vmax.f32 %v641, 0.0
    %v658 = vmax.f32 %v642, 0.0
    %v659 = vmax.f32 %v643, 0.0
    %v660 = vmax.f32 %v644, 0.0
    %v661 = vmax.f32 %v645, 0.0
    %v662 = vmax.f32 %v646, 0.0
    %v663 = vmax.f32 %v647, 0.0
    %v664 = vmax.f32 %v648, 0.0
    %v665 = vmax.f32 %v649, 0.0
    %v666 = vmax.f32 %v650, 0.0
    %v667 = vmax.f32 %v651, 0.0
    %v668 = vmax.f32 %v652, 0.0
    %v669 = vmax.f32 %v653, 0.0
    %v670 = vpack.c.bf16 %v654, %v654
    %v671 = vpack.c.bf16 %v655, %v655
    %v672 = vpack.c.bf16 %v656, %v656
    %v673 = vpack.c.bf16 %v657, %v657
    %v674 = vpack.c.bf16 %v658, %v658
    %v675 = vpack.c.bf16 %v659, %v659
    %v676 = vpack.c.bf16 %v660, %v660
    %v677 = vpack.c.bf16 %v661, %v661
    %v678 = vpack.c.bf16 %v662, %v662
    %v679 = vpack.c.bf16 %v663, %v663
    %v680 = vpack.c.bf16 %v664, %v664
    %v681 = vpack.c.bf16 %v665, %v665
    %v682 = vpack.c.bf16 %v666, %v666
    %v683 = vpack.c.bf16 %v667, %v667
    %v684 = vpack.c.bf16 %v668, %v668
    %v685 = vpack.c.bf16 %v669, %v669
    %s686 = scalar_lea.vmem %s2, 32
    %v687 = vld [vmem:[%s686] sm:$0xf]
    %v688 = vld [vmem:[%s686 + $0x4] sm:$0xf]
    %v689 = vld [vmem:[%s686 + $0x8] sm:$0xf]
    %v690 = vld [vmem:[%s686 + $0xc] sm:$0xf]
    %v691 = vld [vmem:[%s686 + $0x10] sm:$0xf]
    %v692 = vld [vmem:[%s686 + $0x14] sm:$0xf]
    %v693 = vld [vmem:[%s686 + $0x18] sm:$0xf]
    %v694 = vld [vmem:[%s686 + $0x1c] sm:$0xf]
    %v699 = vunpack.c.l.b16 %v691
    %v700 = vunpack.c.l.b16 %v692
    %v701 = vunpack.c.l.b16 %v693
    %v702 = vunpack.c.l.b16 %v694
    %v703 = vpack.c.b16 %v700, %v699
    %v704 = vpack.c.b16 %v702, %v701
    %707 = vmatpush.bf16.msra.mxu0 0
    %708 = vmatpush.bf16.msra.mxu0 0
    %709 = vmatpush.bf16.msra.mxu0 0
    %710 = vmatpush.bf16.msra.mxu0 0
    %711 = vmatpush.bf16.msra.mxu0 0
    %712 = vmatpush.bf16.msra.mxu0 0
    %713 = vmatpush.bf16.msra.mxu0 %v704
    %714 = vmatpush.bf16.msra.mxu0 %v703
    %715 = vmatmul.bf16.gmra.mxu0 %v113
    %v716 = vpop.f32.mrf.mxu0
    %v717 = vadd.f32 0.0, %v716
    %v718 = vpop.f32.mrf.mxu0
    %v719 = vadd.f32 0.0, %v718
    %720 = vmatmul.bf16.gmra.mxu0 %v116
    %v721 = vpop.f32.mrf.mxu0
    %v722 = vadd.f32 0.0, %v721
    %v723 = vpop.f32.mrf.mxu0
    %v724 = vadd.f32 0.0, %v723
    %725 = vmatmul.bf16.gmra.mxu0 %v119
    %v726 = vpop.f32.mrf.mxu0
    %v727 = vadd.f32 0.0, %v726
    %v728 = vpop.f32.mrf.mxu0
    %v729 = vadd.f32 0.0, %v728
    %730 = vmatmul.bf16.gmra.mxu0 %v122
    %v731 = vpop.f32.mrf.mxu0
    %v732 = vadd.f32 0.0, %v731
    %v733 = vpop.f32.mrf.mxu0
    %v734 = vadd.f32 0.0, %v733
    %735 = vmatmul.bf16.gmra.mxu0 %v125
    %v736 = vpop.f32.mrf.mxu0
    %v737 = vadd.f32 0.0, %v736
    %v738 = vpop.f32.mrf.mxu0
    %v739 = vadd.f32 0.0, %v738
    %740 = vmatmul.bf16.gmra.mxu0 %v128
    %v741 = vpop.f32.mrf.mxu0
    %v742 = vadd.f32 0.0, %v741
    %v743 = vpop.f32.mrf.mxu0
    %v744 = vadd.f32 0.0, %v743
    %745 = vmatmul.bf16.gmra.mxu0 %v131
    %v746 = vpop.f32.mrf.mxu0
    %v747 = vadd.f32 0.0, %v746
    %v748 = vpop.f32.mrf.mxu0
    %v749 = vadd.f32 0.0, %v748
    %750 = vmatmul.bf16.gmra.mxu0 %v134
    %v751 = vpop.f32.mrf.mxu0
    %v752 = vadd.f32 0.0, %v751
    %v753 = vpop.f32.mrf.mxu0
    %v754 = vadd.f32 0.0, %v753
    %755 = vdwg.mxu0
    %v760 = vunpack.c.l.b16 %v687
    %v761 = vunpack.c.l.b16 %v688
    %v762 = vunpack.c.l.b16 %v689
    %v763 = vunpack.c.l.b16 %v690
    %v764 = vpack.c.b16 %v761, %v760
    %v765 = vpack.c.b16 %v763, %v762
    %768 = vmatpush.bf16.msra.mxu0 0
    %769 = vmatpush.bf16.msra.mxu0 0
    %770 = vmatpush.bf16.msra.mxu0 0
    %771 = vmatpush.bf16.msra.mxu0 0
    %772 = vmatpush.bf16.msra.mxu0 0
    %773 = vmatpush.bf16.msra.mxu0 0
    %774 = vmatpush.bf16.msra.mxu0 %v765
    %775 = vmatpush.bf16.msra.mxu0 %v764
    %776 = vmatmul.bf16.gmra.mxu0 %v198
    %v777 = vpop.f32.mrf.mxu0
    %v778 = vadd.f32 %v717, %v777
    %v779 = vpop.f32.mrf.mxu0
    %v780 = vadd.f32 %v719, %v779
    %781 = vmatmul.bf16.gmra.mxu0 %v201
    %v782 = vpop.f32.mrf.mxu0
    %v783 = vadd.f32 %v722, %v782
    %v784 = vpop.f32.mrf.mxu0
    %v785 = vadd.f32 %v724, %v784
    %786 = vmatmul.bf16.gmra.mxu0 %v204
    %v787 = vpop.f32.mrf.mxu0
    %v788 = vadd.f32 %v727, %v787
    %v789 = vpop.f32.mrf.mxu0
    %v790 = vadd.f32 %v729, %v789
    %791 = vmatmul.bf16.gmra.mxu0 %v207
    %v792 = vpop.f32.mrf.mxu0
    %v793 = vadd.f32 %v732, %v792
    %v794 = vpop.f32.mrf.mxu0
    %v795 = vadd.f32 %v734, %v794
    %796 = vmatmul.bf16.gmra.mxu0 %v210
    %v797 = vpop.f32.mrf.mxu0
    %v798 = vadd.f32 %v737, %v797
    %v799 = vpop.f32.mrf.mxu0
    %v800 = vadd.f32 %v739, %v799
    %801 = vmatmul.bf16.gmra.mxu0 %v213
    %v802 = vpop.f32.mrf.mxu0
    %v803 = vadd.f32 %v742, %v802
    %v804 = vpop.f32.mrf.mxu0
    %v805 = vadd.f32 %v744, %v804
    %806 = vmatmul.bf16.gmra.mxu0 %v216
    %v807 = vpop.f32.mrf.mxu0
    %v808 = vadd.f32 %v747, %v807
    %v809 = vpop.f32.mrf.mxu0
    %v810 = vadd.f32 %v749, %v809
    %811 = vmatmul.bf16.gmra.mxu0 %v219
    %v812 = vpop.f32.mrf.mxu0
    %v813 = vadd.f32 %v752, %v812
    %v814 = vpop.f32.mrf.mxu0
    %v815 = vadd.f32 %v754, %v814
    %816 = vdwg.mxu0
    %s817 = scalar_lea.vmem %s3, 1
    %v818 = vld [vmem:[%s817] sm:$0x1]
    %v820 = vperm.slane %v818, 0
    %v822 = vadd.f32 %v778, %v820
    %v823 = vadd.f32 %v780, %v820
    %v824 = vadd.f32 %v783, %v820
    %v825 = vadd.f32 %v785, %v820
    %v826 = vadd.f32 %v788, %v820
    %v827 = vadd.f32 %v790, %v820
    %v828 = vadd.f32 %v793, %v820
    %v829 = vadd.f32 %v795, %v820
    %v830 = vadd.f32 %v798, %v820
    %v831 = vadd.f32 %v800, %v820
    %v832 = vadd.f32 %v803, %v820
    %v833 = vadd.f32 %v805, %v820
    %v834 = vadd.f32 %v808, %v820
    %v835 = vadd.f32 %v810, %v820
    %v836 = vadd.f32 %v813, %v820
    %v837 = vadd.f32 %v815, %v820
    %v838 = vmax.f32 %v822, 0.0
    %v839 = vmax.f32 %v823, 0.0
    %v840 = vmax.f32 %v824, 0.0
    %v841 = vmax.f32 %v825, 0.0
    %v842 = vmax.f32 %v826, 0.0
    %v843 = vmax.f32 %v827, 0.0
    %v844 = vmax.f32 %v828, 0.0
    %v845 = vmax.f32 %v829, 0.0
    %v846 = vmax.f32 %v830, 0.0
    %v847 = vmax.f32 %v831, 0.0
    %v848 = vmax.f32 %v832, 0.0
    %v849 = vmax.f32 %v833, 0.0
    %v850 = vmax.f32 %v834, 0.0
    %v851 = vmax.f32 %v835, 0.0
    %v852 = vmax.f32 %v836, 0.0
    %v853 = vmax.f32 %v837, 0.0
    %v854 = vpack.c.bf16 %v838, %v838
    %v855 = vpack.c.bf16 %v839, %v839
    %v856 = vpack.c.bf16 %v840, %v840
    %v857 = vpack.c.bf16 %v841, %v841
    %v858 = vpack.c.bf16 %v842, %v842
    %v859 = vpack.c.bf16 %v843, %v843
    %v860 = vpack.c.bf16 %v844, %v844
    %v861 = vpack.c.bf16 %v845, %v845
    %v862 = vpack.c.bf16 %v846, %v846
    %v863 = vpack.c.bf16 %v847, %v847
    %v864 = vpack.c.bf16 %v848, %v848
    %v865 = vpack.c.bf16 %v849, %v849
    %v866 = vpack.c.bf16 %v850, %v850
    %v867 = vpack.c.bf16 %v851, %v851
    %v868 = vpack.c.bf16 %v852, %v852
    %v869 = vpack.c.bf16 %v853, %v853
    %s870 = scalar_lea.vmem %s4, 32
    %v871 = vld [vmem:[%s870] sm:$0xf]
    %v872 = vld [vmem:[%s870 + $0x4] sm:$0xf]
    %v873 = vld [vmem:[%s870 + $0x8] sm:$0xf]
    %v874 = vld [vmem:[%s870 + $0xc] sm:$0xf]
    %v875 = vld [vmem:[%s870 + $0x10] sm:$0xf]
    %v876 = vld [vmem:[%s870 + $0x14] sm:$0xf]
    %v877 = vld [vmem:[%s870 + $0x18] sm:$0xf]
    %v878 = vld [vmem:[%s870 + $0x1c] sm:$0xf]
    %v883 = vunpack.c.l.b16 %v875
    %v884 = vunpack.c.l.b16 %v876
    %v885 = vunpack.c.l.b16 %v877
    %v886 = vunpack.c.l.b16 %v878
    %v887 = vpack.c.b16 %v884, %v883
    %v888 = vpack.c.b16 %v886, %v885
    %891 = vmatpush.bf16.msra.mxu0 0
    %892 = vmatpush.bf16.msra.mxu0 0
    %893 = vmatpush.bf16.msra.mxu0 0
    %894 = vmatpush.bf16.msra.mxu0 0
    %895 = vmatpush.bf16.msra.mxu0 0
    %896 = vmatpush.bf16.msra.mxu0 0
    %897 = vmatpush.bf16.msra.mxu0 %v888
    %898 = vmatpush.bf16.msra.mxu0 %v887
    %899 = vmatmul.bf16.gmra.mxu0 %v113
    %v900 = vpop.f32.mrf.mxu0
    %v901 = vadd.f32 0.0, %v900
    %v902 = vpop.f32.mrf.mxu0
    %v903 = vadd.f32 0.0, %v902
    %904 = vmatmul.bf16.gmra.mxu0 %v116
    %v905 = vpop.f32.mrf.mxu0
    %v906 = vadd.f32 0.0, %v905
    %v907 = vpop.f32.mrf.mxu0
    %v908 = vadd.f32 0.0, %v907
    %909 = vmatmul.bf16.gmra.mxu0 %v119
    %v910 = vpop.f32.mrf.mxu0
    %v911 = vadd.f32 0.0, %v910
    %v912 = vpop.f32.mrf.mxu0
    %v913 = vadd.f32 0.0, %v912
    %914 = vmatmul.bf16.gmra.mxu0 %v122
    %v915 = vpop.f32.mrf.mxu0
    %v916 = vadd.f32 0.0, %v915
    %v917 = vpop.f32.mrf.mxu0
    %v918 = vadd.f32 0.0, %v917
    %919 = vmatmul.bf16.gmra.mxu0 %v125
    %v920 = vpop.f32.mrf.mxu0
    %v921 = vadd.f32 0.0, %v920
    %v922 = vpop.f32.mrf.mxu0
    %v923 = vadd.f32 0.0, %v922
    %924 = vmatmul.bf16.gmra.mxu0 %v128
    %v925 = vpop.f32.mrf.mxu0
    %v926 = vadd.f32 0.0, %v925
    %v927 = vpop.f32.mrf.mxu0
    %v928 = vadd.f32 0.0, %v927
    %929 = vmatmul.bf16.gmra.mxu0 %v131
    %v930 = vpop.f32.mrf.mxu0
    %v931 = vadd.f32 0.0, %v930
    %v932 = vpop.f32.mrf.mxu0
    %v933 = vadd.f32 0.0, %v932
    %934 = vmatmul.bf16.gmra.mxu0 %v134
    %v935 = vpop.f32.mrf.mxu0
    %v936 = vadd.f32 0.0, %v935
    %v937 = vpop.f32.mrf.mxu0
    %v938 = vadd.f32 0.0, %v937
    %939 = vdwg.mxu0
    %v944 = vunpack.c.l.b16 %v871
    %v945 = vunpack.c.l.b16 %v872
    %v946 = vunpack.c.l.b16 %v873
    %v947 = vunpack.c.l.b16 %v874
    %v948 = vpack.c.b16 %v945, %v944
    %v949 = vpack.c.b16 %v947, %v946
    %952 = vmatpush.bf16.msra.mxu0 0
    %953 = vmatpush.bf16.msra.mxu0 0
    %954 = vmatpush.bf16.msra.mxu0 0
    %955 = vmatpush.bf16.msra.mxu0 0
    %956 = vmatpush.bf16.msra.mxu0 0
    %957 = vmatpush.bf16.msra.mxu0 0
    %958 = vmatpush.bf16.msra.mxu0 %v949
    %959 = vmatpush.bf16.msra.mxu0 %v948
    %960 = vmatmul.bf16.gmra.mxu0 %v198
    %v961 = vpop.f32.mrf.mxu0
    %v962 = vadd.f32 %v901, %v961
    %v963 = vpop.f32.mrf.mxu0
    %v964 = vadd.f32 %v903, %v963
    %965 = vmatmul.bf16.gmra.mxu0 %v201
    %v966 = vpop.f32.mrf.mxu0
    %v967 = vadd.f32 %v906, %v966
    %v968 = vpop.f32.mrf.mxu0
    %v969 = vadd.f32 %v908, %v968
    %970 = vmatmul.bf16.gmra.mxu0 %v204
    %v971 = vpop.f32.mrf.mxu0
    %v972 = vadd.f32 %v911, %v971
    %v973 = vpop.f32.mrf.mxu0
    %v974 = vadd.f32 %v913, %v973
    %975 = vmatmul.bf16.gmra.mxu0 %v207
    %v976 = vpop.f32.mrf.mxu0
    %v977 = vadd.f32 %v916, %v976
    %v978 = vpop.f32.mrf.mxu0
    %v979 = vadd.f32 %v918, %v978
    %980 = vmatmul.bf16.gmra.mxu0 %v210
    %v981 = vpop.f32.mrf.mxu0
    %v982 = vadd.f32 %v921, %v981
    %v983 = vpop.f32.mrf.mxu0
    %v984 = vadd.f32 %v923, %v983
    %985 = vmatmul.bf16.gmra.mxu0 %v213
    %v986 = vpop.f32.mrf.mxu0
    %v987 = vadd.f32 %v926, %v986
    %v988 = vpop.f32.mrf.mxu0
    %v989 = vadd.f32 %v928, %v988
    %990 = vmatmul.bf16.gmra.mxu0 %v216
    %v991 = vpop.f32.mrf.mxu0
    %v992 = vadd.f32 %v931, %v991
    %v993 = vpop.f32.mrf.mxu0
    %v994 = vadd.f32 %v933, %v993
    %995 = vmatmul.bf16.gmra.mxu0 %v219
    %v996 = vpop.f32.mrf.mxu0
    %v997 = vadd.f32 %v936, %v996
    %v998 = vpop.f32.mrf.mxu0
    %v999 = vadd.f32 %v938, %v998
    %1000 = vdwg.mxu0
    %s1001 = scalar_lea.vmem %s5, 1
    %v1002 = vld [vmem:[%s1001] sm:$0x1]
    %v1004 = vperm.slane %v1002, 0
    %v1006 = vadd.f32 %v962, %v1004
    %v1007 = vadd.f32 %v964, %v1004
    %v1008 = vadd.f32 %v967, %v1004
    %v1009 = vadd.f32 %v969, %v1004
    %v1010 = vadd.f32 %v972, %v1004
    %v1011 = vadd.f32 %v974, %v1004
    %v1012 = vadd.f32 %v977, %v1004
    %v1013 = vadd.f32 %v979, %v1004
    %v1014 = vadd.f32 %v982, %v1004
    %v1015 = vadd.f32 %v984, %v1004
    %v1016 = vadd.f32 %v987, %v1004
    %v1017 = vadd.f32 %v989, %v1004
    %v1018 = vadd.f32 %v992, %v1004
    %v1019 = vadd.f32 %v994, %v1004
    %v1020 = vadd.f32 %v997, %v1004
    %v1021 = vadd.f32 %v999, %v1004
    %v1022 = vmax.f32 %v1006, 0.0
    %v1023 = vmax.f32 %v1007, 0.0
    %v1024 = vmax.f32 %v1008, 0.0
    %v1025 = vmax.f32 %v1009, 0.0
    %v1026 = vmax.f32 %v1010, 0.0
    %v1027 = vmax.f32 %v1011, 0.0
    %v1028 = vmax.f32 %v1012, 0.0
    %v1029 = vmax.f32 %v1013, 0.0
    %v1030 = vmax.f32 %v1014, 0.0
    %v1031 = vmax.f32 %v1015, 0.0
    %v1032 = vmax.f32 %v1016, 0.0
    %v1033 = vmax.f32 %v1017, 0.0
    %v1034 = vmax.f32 %v1018, 0.0
    %v1035 = vmax.f32 %v1019, 0.0
    %v1036 = vmax.f32 %v1020, 0.0
    %v1037 = vmax.f32 %v1021, 0.0
    %v1038 = vpack.c.bf16 %v1022, %v1022
    %v1039 = vpack.c.bf16 %v1023, %v1023
    %v1040 = vpack.c.bf16 %v1024, %v1024
    %v1041 = vpack.c.bf16 %v1025, %v1025
    %v1042 = vpack.c.bf16 %v1026, %v1026
    %v1043 = vpack.c.bf16 %v1027, %v1027
    %v1044 = vpack.c.bf16 %v1028, %v1028
    %v1045 = vpack.c.bf16 %v1029, %v1029
    %v1046 = vpack.c.bf16 %v1030, %v1030
    %v1047 = vpack.c.bf16 %v1031, %v1031
    %v1048 = vpack.c.bf16 %v1032, %v1032
    %v1049 = vpack.c.bf16 %v1033, %v1033
    %v1050 = vpack.c.bf16 %v1034, %v1034
    %v1051 = vpack.c.bf16 %v1035, %v1035
    %v1052 = vpack.c.bf16 %v1036, %v1036
    %v1053 = vpack.c.bf16 %v1037, %v1037
    %s1054 = scalar_lea.vmem %s6, 32
    %v1055 = vld [vmem:[%s1054] sm:$0xf]
    %v1056 = vld [vmem:[%s1054 + $0x4] sm:$0xf]
    %v1057 = vld [vmem:[%s1054 + $0x8] sm:$0xf]
    %v1058 = vld [vmem:[%s1054 + $0xc] sm:$0xf]
    %v1059 = vld [vmem:[%s1054 + $0x10] sm:$0xf]
    %v1060 = vld [vmem:[%s1054 + $0x14] sm:$0xf]
    %v1061 = vld [vmem:[%s1054 + $0x18] sm:$0xf]
    %v1062 = vld [vmem:[%s1054 + $0x1c] sm:$0xf]
    %v1067 = vunpack.c.l.b16 %v1059
    %v1068 = vunpack.c.l.b16 %v1060
    %v1069 = vunpack.c.l.b16 %v1061
    %v1070 = vunpack.c.l.b16 %v1062
    %v1071 = vpack.c.b16 %v1068, %v1067
    %v1072 = vpack.c.b16 %v1070, %v1069
    %1075 = vmatpush.bf16.msra.mxu0 0
    %1076 = vmatpush.bf16.msra.mxu0 0
    %1077 = vmatpush.bf16.msra.mxu0 0
    %1078 = vmatpush.bf16.msra.mxu0 0
    %1079 = vmatpush.bf16.msra.mxu0 0
    %1080 = vmatpush.bf16.msra.mxu0 0
    %1081 = vmatpush.bf16.msra.mxu0 %v1072
    %1082 = vmatpush.bf16.msra.mxu0 %v1071
    %1083 = vmatmul.bf16.gmra.mxu0 %v113
    %v1084 = vpop.f32.mrf.mxu0
    %v1085 = vadd.f32 0.0, %v1084
    %v1086 = vpop.f32.mrf.mxu0
    %v1087 = vadd.f32 0.0, %v1086
    %1088 = vmatmul.bf16.gmra.mxu0 %v116
    %v1089 = vpop.f32.mrf.mxu0
    %v1090 = vadd.f32 0.0, %v1089
    %v1091 = vpop.f32.mrf.mxu0
    %v1092 = vadd.f32 0.0, %v1091
    %1093 = vmatmul.bf16.gmra.mxu0 %v119
    %v1094 = vpop.f32.mrf.mxu0
    %v1095 = vadd.f32 0.0, %v1094
    %v1096 = vpop.f32.mrf.mxu0
    %v1097 = vadd.f32 0.0, %v1096
    %1098 = vmatmul.bf16.gmra.mxu0 %v122
    %v1099 = vpop.f32.mrf.mxu0
    %v1100 = vadd.f32 0.0, %v1099
    %v1101 = vpop.f32.mrf.mxu0
    %v1102 = vadd.f32 0.0, %v1101
    %1103 = vmatmul.bf16.gmra.mxu0 %v125
    %v1104 = vpop.f32.mrf.mxu0
    %v1105 = vadd.f32 0.0, %v1104
    %v1106 = vpop.f32.mrf.mxu0
    %v1107 = vadd.f32 0.0, %v1106
    %1108 = vmatmul.bf16.gmra.mxu0 %v128
    %v1109 = vpop.f32.mrf.mxu0
    %v1110 = vadd.f32 0.0, %v1109
    %v1111 = vpop.f32.mrf.mxu0
    %v1112 = vadd.f32 0.0, %v1111
    %1113 = vmatmul.bf16.gmra.mxu0 %v131
    %v1114 = vpop.f32.mrf.mxu0
    %v1115 = vadd.f32 0.0, %v1114
    %v1116 = vpop.f32.mrf.mxu0
    %v1117 = vadd.f32 0.0, %v1116
    %1118 = vmatmul.bf16.gmra.mxu0 %v134
    %v1119 = vpop.f32.mrf.mxu0
    %v1120 = vadd.f32 0.0, %v1119
    %v1121 = vpop.f32.mrf.mxu0
    %v1122 = vadd.f32 0.0, %v1121
    %1123 = vdwg.mxu0
    %v1128 = vunpack.c.l.b16 %v1055
    %v1129 = vunpack.c.l.b16 %v1056
    %v1130 = vunpack.c.l.b16 %v1057
    %v1131 = vunpack.c.l.b16 %v1058
    %v1132 = vpack.c.b16 %v1129, %v1128
    %v1133 = vpack.c.b16 %v1131, %v1130
    %1136 = vmatpush.bf16.msra.mxu0 0
    %1137 = vmatpush.bf16.msra.mxu0 0
    %1138 = vmatpush.bf16.msra.mxu0 0
    %1139 = vmatpush.bf16.msra.mxu0 0
    %1140 = vmatpush.bf16.msra.mxu0 0
    %1141 = vmatpush.bf16.msra.mxu0 0
    %1142 = vmatpush.bf16.msra.mxu0 %v1133
    %1143 = vmatpush.bf16.msra.mxu0 %v1132
    %1144 = vmatmul.bf16.gmra.mxu0 %v198
    %v1145 = vpop.f32.mrf.mxu0
    %v1146 = vadd.f32 %v1085, %v1145
    %v1147 = vpop.f32.mrf.mxu0
    %v1148 = vadd.f32 %v1087, %v1147
    %1149 = vmatmul.bf16.gmra.mxu0 %v201
    %v1150 = vpop.f32.mrf.mxu0
    %v1151 = vadd.f32 %v1090, %v1150
    %v1152 = vpop.f32.mrf.mxu0
    %v1153 = vadd.f32 %v1092, %v1152
    %1154 = vmatmul.bf16.gmra.mxu0 %v204
    %v1155 = vpop.f32.mrf.mxu0
    %v1156 = vadd.f32 %v1095, %v1155
    %v1157 = vpop.f32.mrf.mxu0
    %v1158 = vadd.f32 %v1097, %v1157
    %1159 = vmatmul.bf16.gmra.mxu0 %v207
    %v1160 = vpop.f32.mrf.mxu0
    %v1161 = vadd.f32 %v1100, %v1160
    %v1162 = vpop.f32.mrf.mxu0
    %v1163 = vadd.f32 %v1102, %v1162
    %1164 = vmatmul.bf16.gmra.mxu0 %v210
    %v1165 = vpop.f32.mrf.mxu0
    %v1166 = vadd.f32 %v1105, %v1165
    %v1167 = vpop.f32.mrf.mxu0
    %v1168 = vadd.f32 %v1107, %v1167
    %1169 = vmatmul.bf16.gmra.mxu0 %v213
    %v1170 = vpop.f32.mrf.mxu0
    %v1171 = vadd.f32 %v1110, %v1170
    %v1172 = vpop.f32.mrf.mxu0
    %v1173 = vadd.f32 %v1112, %v1172
    %1174 = vmatmul.bf16.gmra.mxu0 %v216
    %v1175 = vpop.f32.mrf.mxu0
    %v1176 = vadd.f32 %v1115, %v1175
    %v1177 = vpop.f32.mrf.mxu0
    %v1178 = vadd.f32 %v1117, %v1177
    %1179 = vmatmul.bf16.gmra.mxu0 %v219
    %v1180 = vpop.f32.mrf.mxu0
    %v1181 = vadd.f32 %v1120, %v1180
    %v1182 = vpop.f32.mrf.mxu0
    %v1183 = vadd.f32 %v1122, %v1182
    %1184 = vdwg.mxu0
    %s1185 = scalar_lea.vmem %s7, 1
    %v1186 = vld [vmem:[%s1185] sm:$0x1]
    %v1188 = vperm.slane %v1186, 0
    %v1190 = vadd.f32 %v1146, %v1188
    %v1191 = vadd.f32 %v1148, %v1188
    %v1192 = vadd.f32 %v1151, %v1188
    %v1193 = vadd.f32 %v1153, %v1188
    %v1194 = vadd.f32 %v1156, %v1188
    %v1195 = vadd.f32 %v1158, %v1188
    %v1196 = vadd.f32 %v1161, %v1188
    %v1197 = vadd.f32 %v1163, %v1188
    %v1198 = vadd.f32 %v1166, %v1188
    %v1199 = vadd.f32 %v1168, %v1188
    %v1200 = vadd.f32 %v1171, %v1188
    %v1201 = vadd.f32 %v1173, %v1188
    %v1202 = vadd.f32 %v1176, %v1188
    %v1203 = vadd.f32 %v1178, %v1188
    %v1204 = vadd.f32 %v1181, %v1188
    %v1205 = vadd.f32 %v1183, %v1188
    %v1206 = vmax.f32 %v1190, 0.0
    %v1207 = vmax.f32 %v1191, 0.0
    %v1208 = vmax.f32 %v1192, 0.0
    %v1209 = vmax.f32 %v1193, 0.0
    %v1210 = vmax.f32 %v1194, 0.0
    %v1211 = vmax.f32 %v1195, 0.0
    %v1212 = vmax.f32 %v1196, 0.0
    %v1213 = vmax.f32 %v1197, 0.0
    %v1214 = vmax.f32 %v1198, 0.0
    %v1215 = vmax.f32 %v1199, 0.0
    %v1216 = vmax.f32 %v1200, 0.0
    %v1217 = vmax.f32 %v1201, 0.0
    %v1218 = vmax.f32 %v1202, 0.0
    %v1219 = vmax.f32 %v1203, 0.0
    %v1220 = vmax.f32 %v1204, 0.0
    %v1221 = vmax.f32 %v1205, 0.0
    %v1222 = vpack.c.bf16 %v1206, %v1206
    %v1223 = vpack.c.bf16 %v1207, %v1207
    %v1224 = vpack.c.bf16 %v1208, %v1208
    %v1225 = vpack.c.bf16 %v1209, %v1209
    %v1226 = vpack.c.bf16 %v1210, %v1210
    %v1227 = vpack.c.bf16 %v1211, %v1211
    %v1228 = vpack.c.bf16 %v1212, %v1212
    %v1229 = vpack.c.bf16 %v1213, %v1213
    %v1230 = vpack.c.bf16 %v1214, %v1214
    %v1231 = vpack.c.bf16 %v1215, %v1215
    %v1232 = vpack.c.bf16 %v1216, %v1216
    %v1233 = vpack.c.bf16 %v1217, %v1217
    %v1234 = vpack.c.bf16 %v1218, %v1218
    %v1235 = vpack.c.bf16 %v1219, %v1219
    %v1236 = vpack.c.bf16 %v1220, %v1220
    %v1237 = vpack.c.bf16 %v1221, %v1221
    %s1238 = scalar_lea.vmem %s2, 64
    %v1239 = vld [vmem:[%s1238] sm:$0xf]
    %v1240 = vld [vmem:[%s1238 + $0x4] sm:$0xf]
    %v1241 = vld [vmem:[%s1238 + $0x8] sm:$0xf]
    %v1242 = vld [vmem:[%s1238 + $0xc] sm:$0xf]
    %v1243 = vld [vmem:[%s1238 + $0x10] sm:$0xf]
    %v1244 = vld [vmem:[%s1238 + $0x14] sm:$0xf]
    %v1245 = vld [vmem:[%s1238 + $0x18] sm:$0xf]
    %v1246 = vld [vmem:[%s1238 + $0x1c] sm:$0xf]
    %v1251 = vunpack.c.l.b16 %v1243
    %v1252 = vunpack.c.l.b16 %v1244
    %v1253 = vunpack.c.l.b16 %v1245
    %v1254 = vunpack.c.l.b16 %v1246
    %v1255 = vpack.c.b16 %v1252, %v1251
    %v1256 = vpack.c.b16 %v1254, %v1253
    %1259 = vmatpush.bf16.msra.mxu0 0
    %1260 = vmatpush.bf16.msra.mxu0 0
    %1261 = vmatpush.bf16.msra.mxu0 0
    %1262 = vmatpush.bf16.msra.mxu0 0
    %1263 = vmatpush.bf16.msra.mxu0 0
    %1264 = vmatpush.bf16.msra.mxu0 0
    %1265 = vmatpush.bf16.msra.mxu0 %v1256
    %1266 = vmatpush.bf16.msra.mxu0 %v1255
    %1267 = vmatmul.bf16.gmra.mxu0 %v113
    %v1268 = vpop.f32.mrf.mxu0
    %v1269 = vadd.f32 0.0, %v1268
    %v1270 = vpop.f32.mrf.mxu0
    %v1271 = vadd.f32 0.0, %v1270
    %1272 = vmatmul.bf16.gmra.mxu0 %v116
    %v1273 = vpop.f32.mrf.mxu0
    %v1274 = vadd.f32 0.0, %v1273
    %v1275 = vpop.f32.mrf.mxu0
    %v1276 = vadd.f32 0.0, %v1275
    %1277 = vmatmul.bf16.gmra.mxu0 %v119
    %v1278 = vpop.f32.mrf.mxu0
    %v1279 = vadd.f32 0.0, %v1278
    %v1280 = vpop.f32.mrf.mxu0
    %v1281 = vadd.f32 0.0, %v1280
    %1282 = vmatmul.bf16.gmra.mxu0 %v122
    %v1283 = vpop.f32.mrf.mxu0
    %v1284 = vadd.f32 0.0, %v1283
    %v1285 = vpop.f32.mrf.mxu0
    %v1286 = vadd.f32 0.0, %v1285
    %1287 = vmatmul.bf16.gmra.mxu0 %v125
    %v1288 = vpop.f32.mrf.mxu0
    %v1289 = vadd.f32 0.0, %v1288
    %v1290 = vpop.f32.mrf.mxu0
    %v1291 = vadd.f32 0.0, %v1290
    %1292 = vmatmul.bf16.gmra.mxu0 %v128
    %v1293 = vpop.f32.mrf.mxu0
    %v1294 = vadd.f32 0.0, %v1293
    %v1295 = vpop.f32.mrf.mxu0
    %v1296 = vadd.f32 0.0, %v1295
    %1297 = vmatmul.bf16.gmra.mxu0 %v131
    %v1298 = vpop.f32.mrf.mxu0
    %v1299 = vadd.f32 0.0, %v1298
    %v1300 = vpop.f32.mrf.mxu0
    %v1301 = vadd.f32 0.0, %v1300
    %1302 = vmatmul.bf16.gmra.mxu0 %v134
    %v1303 = vpop.f32.mrf.mxu0
    %v1304 = vadd.f32 0.0, %v1303
    %v1305 = vpop.f32.mrf.mxu0
    %v1306 = vadd.f32 0.0, %v1305
    %1307 = vdwg.mxu0
    %v1312 = vunpack.c.l.b16 %v1239
    %v1313 = vunpack.c.l.b16 %v1240
    %v1314 = vunpack.c.l.b16 %v1241
    %v1315 = vunpack.c.l.b16 %v1242
    %v1316 = vpack.c.b16 %v1313, %v1312
    %v1317 = vpack.c.b16 %v1315, %v1314
    %1320 = vmatpush.bf16.msra.mxu0 0
    %1321 = vmatpush.bf16.msra.mxu0 0
    %1322 = vmatpush.bf16.msra.mxu0 0
    %1323 = vmatpush.bf16.msra.mxu0 0
    %1324 = vmatpush.bf16.msra.mxu0 0
    %1325 = vmatpush.bf16.msra.mxu0 0
    %1326 = vmatpush.bf16.msra.mxu0 %v1317
    %1327 = vmatpush.bf16.msra.mxu0 %v1316
    %1328 = vmatmul.bf16.gmra.mxu0 %v198
    %v1329 = vpop.f32.mrf.mxu0
    %v1330 = vadd.f32 %v1269, %v1329
    %v1331 = vpop.f32.mrf.mxu0
    %v1332 = vadd.f32 %v1271, %v1331
    %1333 = vmatmul.bf16.gmra.mxu0 %v201
    %v1334 = vpop.f32.mrf.mxu0
    %v1335 = vadd.f32 %v1274, %v1334
    %v1336 = vpop.f32.mrf.mxu0
    %v1337 = vadd.f32 %v1276, %v1336
    %1338 = vmatmul.bf16.gmra.mxu0 %v204
    %v1339 = vpop.f32.mrf.mxu0
    %v1340 = vadd.f32 %v1279, %v1339
    %v1341 = vpop.f32.mrf.mxu0
    %v1342 = vadd.f32 %v1281, %v1341
    %1343 = vmatmul.bf16.gmra.mxu0 %v207
    %v1344 = vpop.f32.mrf.mxu0
    %v1345 = vadd.f32 %v1284, %v1344
    %v1346 = vpop.f32.mrf.mxu0
    %v1347 = vadd.f32 %v1286, %v1346
    %1348 = vmatmul.bf16.gmra.mxu0 %v210
    %v1349 = vpop.f32.mrf.mxu0
    %v1350 = vadd.f32 %v1289, %v1349
    %v1351 = vpop.f32.mrf.mxu0
    %v1352 = vadd.f32 %v1291, %v1351
    %1353 = vmatmul.bf16.gmra.mxu0 %v213
    %v1354 = vpop.f32.mrf.mxu0
    %v1355 = vadd.f32 %v1294, %v1354
    %v1356 = vpop.f32.mrf.mxu0
    %v1357 = vadd.f32 %v1296, %v1356
    %1358 = vmatmul.bf16.gmra.mxu0 %v216
    %v1359 = vpop.f32.mrf.mxu0
    %v1360 = vadd.f32 %v1299, %v1359
    %v1361 = vpop.f32.mrf.mxu0
    %v1362 = vadd.f32 %v1301, %v1361
    %1363 = vmatmul.bf16.gmra.mxu0 %v219
    %v1364 = vpop.f32.mrf.mxu0
    %v1365 = vadd.f32 %v1304, %v1364
    %v1366 = vpop.f32.mrf.mxu0
    %v1367 = vadd.f32 %v1306, %v1366
    %1368 = vdwg.mxu0
    %s1369 = scalar_lea.vmem %s3, 2
    %v1370 = vld [vmem:[%s1369] sm:$0x1]
    %v1372 = vperm.slane %v1370, 0
    %v1374 = vadd.f32 %v1330, %v1372
    %v1375 = vadd.f32 %v1332, %v1372
    %v1376 = vadd.f32 %v1335, %v1372
    %v1377 = vadd.f32 %v1337, %v1372
    %v1378 = vadd.f32 %v1340, %v1372
    %v1379 = vadd.f32 %v1342, %v1372
    %v1380 = vadd.f32 %v1345, %v1372
    %v1381 = vadd.f32 %v1347, %v1372
    %v1382 = vadd.f32 %v1350, %v1372
    %v1383 = vadd.f32 %v1352, %v1372
    %v1384 = vadd.f32 %v1355, %v1372
    %v1385 = vadd.f32 %v1357, %v1372
    %v1386 = vadd.f32 %v1360, %v1372
    %v1387 = vadd.f32 %v1362, %v1372
    %v1388 = vadd.f32 %v1365, %v1372
    %v1389 = vadd.f32 %v1367, %v1372
    %v1390 = vmax.f32 %v1374, 0.0
    %v1391 = vmax.f32 %v1375, 0.0
    %v1392 = vmax.f32 %v1376, 0.0
    %v1393 = vmax.f32 %v1377, 0.0
    %v1394 = vmax.f32 %v1378, 0.0
    %v1395 = vmax.f32 %v1379, 0.0
    %v1396 = vmax.f32 %v1380, 0.0
    %v1397 = vmax.f32 %v1381, 0.0
    %v1398 = vmax.f32 %v1382, 0.0
    %v1399 = vmax.f32 %v1383, 0.0
    %v1400 = vmax.f32 %v1384, 0.0
    %v1401 = vmax.f32 %v1385, 0.0
    %v1402 = vmax.f32 %v1386, 0.0
    %v1403 = vmax.f32 %v1387, 0.0
    %v1404 = vmax.f32 %v1388, 0.0
    %v1405 = vmax.f32 %v1389, 0.0
    %v1406 = vpack.c.bf16 %v1390, %v1390
    %v1407 = vpack.c.bf16 %v1391, %v1391
    %v1408 = vpack.c.bf16 %v1392, %v1392
    %v1409 = vpack.c.bf16 %v1393, %v1393
    %v1410 = vpack.c.bf16 %v1394, %v1394
    %v1411 = vpack.c.bf16 %v1395, %v1395
    %v1412 = vpack.c.bf16 %v1396, %v1396
    %v1413 = vpack.c.bf16 %v1397, %v1397
    %v1414 = vpack.c.bf16 %v1398, %v1398
    %v1415 = vpack.c.bf16 %v1399, %v1399
    %v1416 = vpack.c.bf16 %v1400, %v1400
    %v1417 = vpack.c.bf16 %v1401, %v1401
    %v1418 = vpack.c.bf16 %v1402, %v1402
    %v1419 = vpack.c.bf16 %v1403, %v1403
    %v1420 = vpack.c.bf16 %v1404, %v1404
    %v1421 = vpack.c.bf16 %v1405, %v1405
    %s1422 = scalar_lea.vmem %s4, 64
    %v1423 = vld [vmem:[%s1422] sm:$0xf]
    %v1424 = vld [vmem:[%s1422 + $0x4] sm:$0xf]
    %v1425 = vld [vmem:[%s1422 + $0x8] sm:$0xf]
    %v1426 = vld [vmem:[%s1422 + $0xc] sm:$0xf]
    %v1427 = vld [vmem:[%s1422 + $0x10] sm:$0xf]
    %v1428 = vld [vmem:[%s1422 + $0x14] sm:$0xf]
    %v1429 = vld [vmem:[%s1422 + $0x18] sm:$0xf]
    %v1430 = vld [vmem:[%s1422 + $0x1c] sm:$0xf]
    %v1435 = vunpack.c.l.b16 %v1427
    %v1436 = vunpack.c.l.b16 %v1428
    %v1437 = vunpack.c.l.b16 %v1429
    %v1438 = vunpack.c.l.b16 %v1430
    %v1439 = vpack.c.b16 %v1436, %v1435
    %v1440 = vpack.c.b16 %v1438, %v1437
    %1443 = vmatpush.bf16.msra.mxu0 0
    %1444 = vmatpush.bf16.msra.mxu0 0
    %1445 = vmatpush.bf16.msra.mxu0 0
    %1446 = vmatpush.bf16.msra.mxu0 0
    %1447 = vmatpush.bf16.msra.mxu0 0
    %1448 = vmatpush.bf16.msra.mxu0 0
    %1449 = vmatpush.bf16.msra.mxu0 %v1440
    %1450 = vmatpush.bf16.msra.mxu0 %v1439
    %1451 = vmatmul.bf16.gmra.mxu0 %v113
    %v1452 = vpop.f32.mrf.mxu0
    %v1453 = vadd.f32 0.0, %v1452
    %v1454 = vpop.f32.mrf.mxu0
    %v1455 = vadd.f32 0.0, %v1454
    %1456 = vmatmul.bf16.gmra.mxu0 %v116
    %v1457 = vpop.f32.mrf.mxu0
    %v1458 = vadd.f32 0.0, %v1457
    %v1459 = vpop.f32.mrf.mxu0
    %v1460 = vadd.f32 0.0, %v1459
    %1461 = vmatmul.bf16.gmra.mxu0 %v119
    %v1462 = vpop.f32.mrf.mxu0
    %v1463 = vadd.f32 0.0, %v1462
    %v1464 = vpop.f32.mrf.mxu0
    %v1465 = vadd.f32 0.0, %v1464
    %1466 = vmatmul.bf16.gmra.mxu0 %v122
    %v1467 = vpop.f32.mrf.mxu0
    %v1468 = vadd.f32 0.0, %v1467
    %v1469 = vpop.f32.mrf.mxu0
    %v1470 = vadd.f32 0.0, %v1469
    %1471 = vmatmul.bf16.gmra.mxu0 %v125
    %v1472 = vpop.f32.mrf.mxu0
    %v1473 = vadd.f32 0.0, %v1472
    %v1474 = vpop.f32.mrf.mxu0
    %v1475 = vadd.f32 0.0, %v1474
    %1476 = vmatmul.bf16.gmra.mxu0 %v128
    %v1477 = vpop.f32.mrf.mxu0
    %v1478 = vadd.f32 0.0, %v1477
    %v1479 = vpop.f32.mrf.mxu0
    %v1480 = vadd.f32 0.0, %v1479
    %1481 = vmatmul.bf16.gmra.mxu0 %v131
    %v1482 = vpop.f32.mrf.mxu0
    %v1483 = vadd.f32 0.0, %v1482
    %v1484 = vpop.f32.mrf.mxu0
    %v1485 = vadd.f32 0.0, %v1484
    %1486 = vmatmul.bf16.gmra.mxu0 %v134
    %v1487 = vpop.f32.mrf.mxu0
    %v1488 = vadd.f32 0.0, %v1487
    %v1489 = vpop.f32.mrf.mxu0
    %v1490 = vadd.f32 0.0, %v1489
    %1491 = vdwg.mxu0
    %v1496 = vunpack.c.l.b16 %v1423
    %v1497 = vunpack.c.l.b16 %v1424
    %v1498 = vunpack.c.l.b16 %v1425
    %v1499 = vunpack.c.l.b16 %v1426
    %v1500 = vpack.c.b16 %v1497, %v1496
    %v1501 = vpack.c.b16 %v1499, %v1498
    %1504 = vmatpush.bf16.msra.mxu0 0
    %1505 = vmatpush.bf16.msra.mxu0 0
    %1506 = vmatpush.bf16.msra.mxu0 0
    %1507 = vmatpush.bf16.msra.mxu0 0
    %1508 = vmatpush.bf16.msra.mxu0 0
    %1509 = vmatpush.bf16.msra.mxu0 0
    %1510 = vmatpush.bf16.msra.mxu0 %v1501
    %1511 = vmatpush.bf16.msra.mxu0 %v1500
    %1512 = vmatmul.bf16.gmra.mxu0 %v198
    %v1513 = vpop.f32.mrf.mxu0
    %v1514 = vadd.f32 %v1453, %v1513
    %v1515 = vpop.f32.mrf.mxu0
    %v1516 = vadd.f32 %v1455, %v1515
    %1517 = vmatmul.bf16.gmra.mxu0 %v201
    %v1518 = vpop.f32.mrf.mxu0
    %v1519 = vadd.f32 %v1458, %v1518
    %v1520 = vpop.f32.mrf.mxu0
    %v1521 = vadd.f32 %v1460, %v1520
    %1522 = vmatmul.bf16.gmra.mxu0 %v204
    %v1523 = vpop.f32.mrf.mxu0
    %v1524 = vadd.f32 %v1463, %v1523
    %v1525 = vpop.f32.mrf.mxu0
    %v1526 = vadd.f32 %v1465, %v1525
    %1527 = vmatmul.bf16.gmra.mxu0 %v207
    %v1528 = vpop.f32.mrf.mxu0
    %v1529 = vadd.f32 %v1468, %v1528
    %v1530 = vpop.f32.mrf.mxu0
    %v1531 = vadd.f32 %v1470, %v1530
    %1532 = vmatmul.bf16.gmra.mxu0 %v210
    %v1533 = vpop.f32.mrf.mxu0
    %v1534 = vadd.f32 %v1473, %v1533
    %v1535 = vpop.f32.mrf.mxu0
    %v1536 = vadd.f32 %v1475, %v1535
    %1537 = vmatmul.bf16.gmra.mxu0 %v213
    %v1538 = vpop.f32.mrf.mxu0
    %v1539 = vadd.f32 %v1478, %v1538
    %v1540 = vpop.f32.mrf.mxu0
    %v1541 = vadd.f32 %v1480, %v1540
    %1542 = vmatmul.bf16.gmra.mxu0 %v216
    %v1543 = vpop.f32.mrf.mxu0
    %v1544 = vadd.f32 %v1483, %v1543
    %v1545 = vpop.f32.mrf.mxu0
    %v1546 = vadd.f32 %v1485, %v1545
    %1547 = vmatmul.bf16.gmra.mxu0 %v219
    %v1548 = vpop.f32.mrf.mxu0
    %v1549 = vadd.f32 %v1488, %v1548
    %v1550 = vpop.f32.mrf.mxu0
    %v1551 = vadd.f32 %v1490, %v1550
    %1552 = vdwg.mxu0
    %s1553 = scalar_lea.vmem %s5, 2
    %v1554 = vld [vmem:[%s1553] sm:$0x1]
    %v1556 = vperm.slane %v1554, 0
    %v1558 = vadd.f32 %v1514, %v1556
    %v1559 = vadd.f32 %v1516, %v1556
    %v1560 = vadd.f32 %v1519, %v1556
    %v1561 = vadd.f32 %v1521, %v1556
    %v1562 = vadd.f32 %v1524, %v1556
    %v1563 = vadd.f32 %v1526, %v1556
    %v1564 = vadd.f32 %v1529, %v1556
    %v1565 = vadd.f32 %v1531, %v1556
    %v1566 = vadd.f32 %v1534, %v1556
    %v1567 = vadd.f32 %v1536, %v1556
    %v1568 = vadd.f32 %v1539, %v1556
    %v1569 = vadd.f32 %v1541, %v1556
    %v1570 = vadd.f32 %v1544, %v1556
    %v1571 = vadd.f32 %v1546, %v1556
    %v1572 = vadd.f32 %v1549, %v1556
    %v1573 = vadd.f32 %v1551, %v1556
    %v1574 = vmax.f32 %v1558, 0.0
    %v1575 = vmax.f32 %v1559, 0.0
    %v1576 = vmax.f32 %v1560, 0.0
    %v1577 = vmax.f32 %v1561, 0.0
    %v1578 = vmax.f32 %v1562, 0.0
    %v1579 = vmax.f32 %v1563, 0.0
    %v1580 = vmax.f32 %v1564, 0.0
    %v1581 = vmax.f32 %v1565, 0.0
    %v1582 = vmax.f32 %v1566, 0.0
    %v1583 = vmax.f32 %v1567, 0.0
    %v1584 = vmax.f32 %v1568, 0.0
    %v1585 = vmax.f32 %v1569, 0.0
    %v1586 = vmax.f32 %v1570, 0.0
    %v1587 = vmax.f32 %v1571, 0.0
    %v1588 = vmax.f32 %v1572, 0.0
    %v1589 = vmax.f32 %v1573, 0.0
    %v1590 = vpack.c.bf16 %v1574, %v1574
    %v1591 = vpack.c.bf16 %v1575, %v1575
    %v1592 = vpack.c.bf16 %v1576, %v1576
    %v1593 = vpack.c.bf16 %v1577, %v1577
    %v1594 = vpack.c.bf16 %v1578, %v1578
    %v1595 = vpack.c.bf16 %v1579, %v1579
    %v1596 = vpack.c.bf16 %v1580, %v1580
    %v1597 = vpack.c.bf16 %v1581, %v1581
    %v1598 = vpack.c.bf16 %v1582, %v1582
    %v1599 = vpack.c.bf16 %v1583, %v1583
    %v1600 = vpack.c.bf16 %v1584, %v1584
    %v1601 = vpack.c.bf16 %v1585, %v1585
    %v1602 = vpack.c.bf16 %v1586, %v1586
    %v1603 = vpack.c.bf16 %v1587, %v1587
    %v1604 = vpack.c.bf16 %v1588, %v1588
    %v1605 = vpack.c.bf16 %v1589, %v1589
    %s1606 = scalar_lea.vmem %s6, 64
    %v1607 = vld [vmem:[%s1606] sm:$0xf]
    %v1608 = vld [vmem:[%s1606 + $0x4] sm:$0xf]
    %v1609 = vld [vmem:[%s1606 + $0x8] sm:$0xf]
    %v1610 = vld [vmem:[%s1606 + $0xc] sm:$0xf]
    %v1611 = vld [vmem:[%s1606 + $0x10] sm:$0xf]
    %v1612 = vld [vmem:[%s1606 + $0x14] sm:$0xf]
    %v1613 = vld [vmem:[%s1606 + $0x18] sm:$0xf]
    %v1614 = vld [vmem:[%s1606 + $0x1c] sm:$0xf]
    %v1619 = vunpack.c.l.b16 %v1611
    %v1620 = vunpack.c.l.b16 %v1612
    %v1621 = vunpack.c.l.b16 %v1613
    %v1622 = vunpack.c.l.b16 %v1614
    %v1623 = vpack.c.b16 %v1620, %v1619
    %v1624 = vpack.c.b16 %v1622, %v1621
    %1627 = vmatpush.bf16.msra.mxu0 0
    %1628 = vmatpush.bf16.msra.mxu0 0
    %1629 = vmatpush.bf16.msra.mxu0 0
    %1630 = vmatpush.bf16.msra.mxu0 0
    %1631 = vmatpush.bf16.msra.mxu0 0
    %1632 = vmatpush.bf16.msra.mxu0 0
    %1633 = vmatpush.bf16.msra.mxu0 %v1624
    %1634 = vmatpush.bf16.msra.mxu0 %v1623
    %1635 = vmatmul.bf16.gmra.mxu0 %v113
    %v1636 = vpop.f32.mrf.mxu0
    %v1637 = vadd.f32 0.0, %v1636
    %v1638 = vpop.f32.mrf.mxu0
    %v1639 = vadd.f32 0.0, %v1638
    %1640 = vmatmul.bf16.gmra.mxu0 %v116
    %v1641 = vpop.f32.mrf.mxu0
    %v1642 = vadd.f32 0.0, %v1641
    %v1643 = vpop.f32.mrf.mxu0
    %v1644 = vadd.f32 0.0, %v1643
    %1645 = vmatmul.bf16.gmra.mxu0 %v119
    %v1646 = vpop.f32.mrf.mxu0
    %v1647 = vadd.f32 0.0, %v1646
    %v1648 = vpop.f32.mrf.mxu0
    %v1649 = vadd.f32 0.0, %v1648
    %1650 = vmatmul.bf16.gmra.mxu0 %v122
    %v1651 = vpop.f32.mrf.mxu0
    %v1652 = vadd.f32 0.0, %v1651
    %v1653 = vpop.f32.mrf.mxu0
    %v1654 = vadd.f32 0.0, %v1653
    %1655 = vmatmul.bf16.gmra.mxu0 %v125
    %v1656 = vpop.f32.mrf.mxu0
    %v1657 = vadd.f32 0.0, %v1656
    %v1658 = vpop.f32.mrf.mxu0
    %v1659 = vadd.f32 0.0, %v1658
    %1660 = vmatmul.bf16.gmra.mxu0 %v128
    %v1661 = vpop.f32.mrf.mxu0
    %v1662 = vadd.f32 0.0, %v1661
    %v1663 = vpop.f32.mrf.mxu0
    %v1664 = vadd.f32 0.0, %v1663
    %1665 = vmatmul.bf16.gmra.mxu0 %v131
    %v1666 = vpop.f32.mrf.mxu0
    %v1667 = vadd.f32 0.0, %v1666
    %v1668 = vpop.f32.mrf.mxu0
    %v1669 = vadd.f32 0.0, %v1668
    %1670 = vmatmul.bf16.gmra.mxu0 %v134
    %v1671 = vpop.f32.mrf.mxu0
    %v1672 = vadd.f32 0.0, %v1671
    %v1673 = vpop.f32.mrf.mxu0
    %v1674 = vadd.f32 0.0, %v1673
    %1675 = vdwg.mxu0
    %v1680 = vunpack.c.l.b16 %v1607
    %v1681 = vunpack.c.l.b16 %v1608
    %v1682 = vunpack.c.l.b16 %v1609
    %v1683 = vunpack.c.l.b16 %v1610
    %v1684 = vpack.c.b16 %v1681, %v1680
    %v1685 = vpack.c.b16 %v1683, %v1682
    %1688 = vmatpush.bf16.msra.mxu0 0
    %1689 = vmatpush.bf16.msra.mxu0 0
    %1690 = vmatpush.bf16.msra.mxu0 0
    %1691 = vmatpush.bf16.msra.mxu0 0
    %1692 = vmatpush.bf16.msra.mxu0 0
    %1693 = vmatpush.bf16.msra.mxu0 0
    %1694 = vmatpush.bf16.msra.mxu0 %v1685
    %1695 = vmatpush.bf16.msra.mxu0 %v1684
    %1696 = vmatmul.bf16.gmra.mxu0 %v198
    %v1697 = vpop.f32.mrf.mxu0
    %v1698 = vadd.f32 %v1637, %v1697
    %v1699 = vpop.f32.mrf.mxu0
    %v1700 = vadd.f32 %v1639, %v1699
    %1701 = vmatmul.bf16.gmra.mxu0 %v201
    %v1702 = vpop.f32.mrf.mxu0
    %v1703 = vadd.f32 %v1642, %v1702
    %v1704 = vpop.f32.mrf.mxu0
    %v1705 = vadd.f32 %v1644, %v1704
    %1706 = vmatmul.bf16.gmra.mxu0 %v204
    %v1707 = vpop.f32.mrf.mxu0
    %v1708 = vadd.f32 %v1647, %v1707
    %v1709 = vpop.f32.mrf.mxu0
    %v1710 = vadd.f32 %v1649, %v1709
    %1711 = vmatmul.bf16.gmra.mxu0 %v207
    %v1712 = vpop.f32.mrf.mxu0
    %v1713 = vadd.f32 %v1652, %v1712
    %v1714 = vpop.f32.mrf.mxu0
    %v1715 = vadd.f32 %v1654, %v1714
    %1716 = vmatmul.bf16.gmra.mxu0 %v210
    %v1717 = vpop.f32.mrf.mxu0
    %v1718 = vadd.f32 %v1657, %v1717
    %v1719 = vpop.f32.mrf.mxu0
    %v1720 = vadd.f32 %v1659, %v1719
    %1721 = vmatmul.bf16.gmra.mxu0 %v213
    %v1722 = vpop.f32.mrf.mxu0
    %v1723 = vadd.f32 %v1662, %v1722
    %v1724 = vpop.f32.mrf.mxu0
    %v1725 = vadd.f32 %v1664, %v1724
    %1726 = vmatmul.bf16.gmra.mxu0 %v216
    %v1727 = vpop.f32.mrf.mxu0
    %v1728 = vadd.f32 %v1667, %v1727
    %v1729 = vpop.f32.mrf.mxu0
    %v1730 = vadd.f32 %v1669, %v1729
    %1731 = vmatmul.bf16.gmra.mxu0 %v219
    %v1732 = vpop.f32.mrf.mxu0
    %v1733 = vadd.f32 %v1672, %v1732
    %v1734 = vpop.f32.mrf.mxu0
    %v1735 = vadd.f32 %v1674, %v1734
    %1736 = vdwg.mxu0
    %s1737 = scalar_lea.vmem %s7, 2
    %v1738 = vld [vmem:[%s1737] sm:$0x1]
    %v1740 = vperm.slane %v1738, 0
    %v1742 = vadd.f32 %v1698, %v1740
    %v1743 = vadd.f32 %v1700, %v1740
    %v1744 = vadd.f32 %v1703, %v1740
    %v1745 = vadd.f32 %v1705, %v1740
    %v1746 = vadd.f32 %v1708, %v1740
    %v1747 = vadd.f32 %v1710, %v1740
    %v1748 = vadd.f32 %v1713, %v1740
    %v1749 = vadd.f32 %v1715, %v1740
    %v1750 = vadd.f32 %v1718, %v1740
    %v1751 = vadd.f32 %v1720, %v1740
    %v1752 = vadd.f32 %v1723, %v1740
    %v1753 = vadd.f32 %v1725, %v1740
    %v1754 = vadd.f32 %v1728, %v1740
    %v1755 = vadd.f32 %v1730, %v1740
    %v1756 = vadd.f32 %v1733, %v1740
    %v1757 = vadd.f32 %v1735, %v1740
    %v1758 = vmax.f32 %v1742, 0.0
    %v1759 = vmax.f32 %v1743, 0.0
    %v1760 = vmax.f32 %v1744, 0.0
    %v1761 = vmax.f32 %v1745, 0.0
    %v1762 = vmax.f32 %v1746, 0.0
    %v1763 = vmax.f32 %v1747, 0.0
    %v1764 = vmax.f32 %v1748, 0.0
    %v1765 = vmax.f32 %v1749, 0.0
    %v1766 = vmax.f32 %v1750, 0.0
    %v1767 = vmax.f32 %v1751, 0.0
    %v1768 = vmax.f32 %v1752, 0.0
    %v1769 = vmax.f32 %v1753, 0.0
    %v1770 = vmax.f32 %v1754, 0.0
    %v1771 = vmax.f32 %v1755, 0.0
    %v1772 = vmax.f32 %v1756, 0.0
    %v1773 = vmax.f32 %v1757, 0.0
    %v1774 = vpack.c.bf16 %v1758, %v1758
    %v1775 = vpack.c.bf16 %v1759, %v1759
    %v1776 = vpack.c.bf16 %v1760, %v1760
    %v1777 = vpack.c.bf16 %v1761, %v1761
    %v1778 = vpack.c.bf16 %v1762, %v1762
    %v1779 = vpack.c.bf16 %v1763, %v1763
    %v1780 = vpack.c.bf16 %v1764, %v1764
    %v1781 = vpack.c.bf16 %v1765, %v1765
    %v1782 = vpack.c.bf16 %v1766, %v1766
    %v1783 = vpack.c.bf16 %v1767, %v1767
    %v1784 = vpack.c.bf16 %v1768, %v1768
    %v1785 = vpack.c.bf16 %v1769, %v1769
    %v1786 = vpack.c.bf16 %v1770, %v1770
    %v1787 = vpack.c.bf16 %v1771, %v1771
    %v1788 = vpack.c.bf16 %v1772, %v1772
    %v1789 = vpack.c.bf16 %v1773, %v1773
    %s1790 = scalar_lea.vmem %s2, 96
    %v1791 = vld [vmem:[%s1790] sm:$0xf]
    %v1792 = vld [vmem:[%s1790 + $0x4] sm:$0xf]
    %v1793 = vld [vmem:[%s1790 + $0x8] sm:$0xf]
    %v1794 = vld [vmem:[%s1790 + $0xc] sm:$0xf]
    %v1795 = vld [vmem:[%s1790 + $0x10] sm:$0xf]
    %v1796 = vld [vmem:[%s1790 + $0x14] sm:$0xf]
    %v1797 = vld [vmem:[%s1790 + $0x18] sm:$0xf]
    %v1798 = vld [vmem:[%s1790 + $0x1c] sm:$0xf]
    %v1803 = vunpack.c.l.b16 %v1795
    %v1804 = vunpack.c.l.b16 %v1796
    %v1805 = vunpack.c.l.b16 %v1797
    %v1806 = vunpack.c.l.b16 %v1798
    %v1807 = vpack.c.b16 %v1804, %v1803
    %v1808 = vpack.c.b16 %v1806, %v1805
    %1811 = vmatpush.bf16.msra.mxu0 0
    %1812 = vmatpush.bf16.msra.mxu0 0
    %1813 = vmatpush.bf16.msra.mxu0 0
    %1814 = vmatpush.bf16.msra.mxu0 0
    %1815 = vmatpush.bf16.msra.mxu0 0
    %1816 = vmatpush.bf16.msra.mxu0 0
    %1817 = vmatpush.bf16.msra.mxu0 %v1808
    %1818 = vmatpush.bf16.msra.mxu0 %v1807
    %1819 = vmatmul.bf16.gmra.mxu0 %v113
    %v1820 = vpop.f32.mrf.mxu0
    %v1821 = vadd.f32 0.0, %v1820
    %v1822 = vpop.f32.mrf.mxu0
    %v1823 = vadd.f32 0.0, %v1822
    %1824 = vmatmul.bf16.gmra.mxu0 %v116
    %v1825 = vpop.f32.mrf.mxu0
    %v1826 = vadd.f32 0.0, %v1825
    %v1827 = vpop.f32.mrf.mxu0
    %v1828 = vadd.f32 0.0, %v1827
    %1829 = vmatmul.bf16.gmra.mxu0 %v119
    %v1830 = vpop.f32.mrf.mxu0
    %v1831 = vadd.f32 0.0, %v1830
    %v1832 = vpop.f32.mrf.mxu0
    %v1833 = vadd.f32 0.0, %v1832
    %1834 = vmatmul.bf16.gmra.mxu0 %v122
    %v1835 = vpop.f32.mrf.mxu0
    %v1836 = vadd.f32 0.0, %v1835
    %v1837 = vpop.f32.mrf.mxu0
    %v1838 = vadd.f32 0.0, %v1837
    %1839 = vmatmul.bf16.gmra.mxu0 %v125
    %v1840 = vpop.f32.mrf.mxu0
    %v1841 = vadd.f32 0.0, %v1840
    %v1842 = vpop.f32.mrf.mxu0
    %v1843 = vadd.f32 0.0, %v1842
    %1844 = vmatmul.bf16.gmra.mxu0 %v128
    %v1845 = vpop.f32.mrf.mxu0
    %v1846 = vadd.f32 0.0, %v1845
    %v1847 = vpop.f32.mrf.mxu0
    %v1848 = vadd.f32 0.0, %v1847
    %1849 = vmatmul.bf16.gmra.mxu0 %v131
    %v1850 = vpop.f32.mrf.mxu0
    %v1851 = vadd.f32 0.0, %v1850
    %v1852 = vpop.f32.mrf.mxu0
    %v1853 = vadd.f32 0.0, %v1852
    %1854 = vmatmul.bf16.gmra.mxu0 %v134
    %v1855 = vpop.f32.mrf.mxu0
    %v1856 = vadd.f32 0.0, %v1855
    %v1857 = vpop.f32.mrf.mxu0
    %v1858 = vadd.f32 0.0, %v1857
    %1859 = vdwg.mxu0
    %v1864 = vunpack.c.l.b16 %v1791
    %v1865 = vunpack.c.l.b16 %v1792
    %v1866 = vunpack.c.l.b16 %v1793
    %v1867 = vunpack.c.l.b16 %v1794
    %v1868 = vpack.c.b16 %v1865, %v1864
    %v1869 = vpack.c.b16 %v1867, %v1866
    %1872 = vmatpush.bf16.msra.mxu0 0
    %1873 = vmatpush.bf16.msra.mxu0 0
    %1874 = vmatpush.bf16.msra.mxu0 0
    %1875 = vmatpush.bf16.msra.mxu0 0
    %1876 = vmatpush.bf16.msra.mxu0 0
    %1877 = vmatpush.bf16.msra.mxu0 0
    %1878 = vmatpush.bf16.msra.mxu0 %v1869
    %1879 = vmatpush.bf16.msra.mxu0 %v1868
    %1880 = vmatmul.bf16.gmra.mxu0 %v198
    %v1881 = vpop.f32.mrf.mxu0
    %v1882 = vadd.f32 %v1821, %v1881
    %v1883 = vpop.f32.mrf.mxu0
    %v1884 = vadd.f32 %v1823, %v1883
    %1885 = vmatmul.bf16.gmra.mxu0 %v201
    %v1886 = vpop.f32.mrf.mxu0
    %v1887 = vadd.f32 %v1826, %v1886
    %v1888 = vpop.f32.mrf.mxu0
    %v1889 = vadd.f32 %v1828, %v1888
    %1890 = vmatmul.bf16.gmra.mxu0 %v204
    %v1891 = vpop.f32.mrf.mxu0
    %v1892 = vadd.f32 %v1831, %v1891
    %v1893 = vpop.f32.mrf.mxu0
    %v1894 = vadd.f32 %v1833, %v1893
    %1895 = vmatmul.bf16.gmra.mxu0 %v207
    %v1896 = vpop.f32.mrf.mxu0
    %v1897 = vadd.f32 %v1836, %v1896
    %v1898 = vpop.f32.mrf.mxu0
    %v1899 = vadd.f32 %v1838, %v1898
    %1900 = vmatmul.bf16.gmra.mxu0 %v210
    %v1901 = vpop.f32.mrf.mxu0
    %v1902 = vadd.f32 %v1841, %v1901
    %v1903 = vpop.f32.mrf.mxu0
    %v1904 = vadd.f32 %v1843, %v1903
    %1905 = vmatmul.bf16.gmra.mxu0 %v213
    %v1906 = vpop.f32.mrf.mxu0
    %v1907 = vadd.f32 %v1846, %v1906
    %v1908 = vpop.f32.mrf.mxu0
    %v1909 = vadd.f32 %v1848, %v1908
    %1910 = vmatmul.bf16.gmra.mxu0 %v216
    %v1911 = vpop.f32.mrf.mxu0
    %v1912 = vadd.f32 %v1851, %v1911
    %v1913 = vpop.f32.mrf.mxu0
    %v1914 = vadd.f32 %v1853, %v1913
    %1915 = vmatmul.bf16.gmra.mxu0 %v219
    %v1916 = vpop.f32.mrf.mxu0
    %v1917 = vadd.f32 %v1856, %v1916
    %v1918 = vpop.f32.mrf.mxu0
    %v1919 = vadd.f32 %v1858, %v1918
    %1920 = vdwg.mxu0
    %s1921 = scalar_lea.vmem %s3, 3
    %v1922 = vld [vmem:[%s1921] sm:$0x1]
    %v1924 = vperm.slane %v1922, 0
    %v1926 = vadd.f32 %v1882, %v1924
    %v1927 = vadd.f32 %v1884, %v1924
    %v1928 = vadd.f32 %v1887, %v1924
    %v1929 = vadd.f32 %v1889, %v1924
    %v1930 = vadd.f32 %v1892, %v1924
    %v1931 = vadd.f32 %v1894, %v1924
    %v1932 = vadd.f32 %v1897, %v1924
    %v1933 = vadd.f32 %v1899, %v1924
    %v1934 = vadd.f32 %v1902, %v1924
    %v1935 = vadd.f32 %v1904, %v1924
    %v1936 = vadd.f32 %v1907, %v1924
    %v1937 = vadd.f32 %v1909, %v1924
    %v1938 = vadd.f32 %v1912, %v1924
    %v1939 = vadd.f32 %v1914, %v1924
    %v1940 = vadd.f32 %v1917, %v1924
    %v1941 = vadd.f32 %v1919, %v1924
    %v1942 = vmax.f32 %v1926, 0.0
    %v1943 = vmax.f32 %v1927, 0.0
    %v1944 = vmax.f32 %v1928, 0.0
    %v1945 = vmax.f32 %v1929, 0.0
    %v1946 = vmax.f32 %v1930, 0.0
    %v1947 = vmax.f32 %v1931, 0.0
    %v1948 = vmax.f32 %v1932, 0.0
    %v1949 = vmax.f32 %v1933, 0.0
    %v1950 = vmax.f32 %v1934, 0.0
    %v1951 = vmax.f32 %v1935, 0.0
    %v1952 = vmax.f32 %v1936, 0.0
    %v1953 = vmax.f32 %v1937, 0.0
    %v1954 = vmax.f32 %v1938, 0.0
    %v1955 = vmax.f32 %v1939, 0.0
    %v1956 = vmax.f32 %v1940, 0.0
    %v1957 = vmax.f32 %v1941, 0.0
    %v1958 = vpack.c.bf16 %v1942, %v1942
    %v1959 = vpack.c.bf16 %v1943, %v1943
    %v1960 = vpack.c.bf16 %v1944, %v1944
    %v1961 = vpack.c.bf16 %v1945, %v1945
    %v1962 = vpack.c.bf16 %v1946, %v1946
    %v1963 = vpack.c.bf16 %v1947, %v1947
    %v1964 = vpack.c.bf16 %v1948, %v1948
    %v1965 = vpack.c.bf16 %v1949, %v1949
    %v1966 = vpack.c.bf16 %v1950, %v1950
    %v1967 = vpack.c.bf16 %v1951, %v1951
    %v1968 = vpack.c.bf16 %v1952, %v1952
    %v1969 = vpack.c.bf16 %v1953, %v1953
    %v1970 = vpack.c.bf16 %v1954, %v1954
    %v1971 = vpack.c.bf16 %v1955, %v1955
    %v1972 = vpack.c.bf16 %v1956, %v1956
    %v1973 = vpack.c.bf16 %v1957, %v1957
    %s1974 = scalar_lea.vmem %s4, 96
    %v1975 = vld [vmem:[%s1974] sm:$0xf]
    %v1976 = vld [vmem:[%s1974 + $0x4] sm:$0xf]
    %v1977 = vld [vmem:[%s1974 + $0x8] sm:$0xf]
    %v1978 = vld [vmem:[%s1974 + $0xc] sm:$0xf]
    %v1979 = vld [vmem:[%s1974 + $0x10] sm:$0xf]
    %v1980 = vld [vmem:[%s1974 + $0x14] sm:$0xf]
    %v1981 = vld [vmem:[%s1974 + $0x18] sm:$0xf]
    %v1982 = vld [vmem:[%s1974 + $0x1c] sm:$0xf]
    %v1987 = vunpack.c.l.b16 %v1979
    %v1988 = vunpack.c.l.b16 %v1980
    %v1989 = vunpack.c.l.b16 %v1981
    %v1990 = vunpack.c.l.b16 %v1982
    %v1991 = vpack.c.b16 %v1988, %v1987
    %v1992 = vpack.c.b16 %v1990, %v1989
    %1995 = vmatpush.bf16.msra.mxu0 0
    %1996 = vmatpush.bf16.msra.mxu0 0
    %1997 = vmatpush.bf16.msra.mxu0 0
    %1998 = vmatpush.bf16.msra.mxu0 0
    %1999 = vmatpush.bf16.msra.mxu0 0
    %2000 = vmatpush.bf16.msra.mxu0 0
    %2001 = vmatpush.bf16.msra.mxu0 %v1992
    %2002 = vmatpush.bf16.msra.mxu0 %v1991
    %2003 = vmatmul.bf16.gmra.mxu0 %v113
    %v2004 = vpop.f32.mrf.mxu0
    %v2005 = vadd.f32 0.0, %v2004
    %v2006 = vpop.f32.mrf.mxu0
    %v2007 = vadd.f32 0.0, %v2006
    %2008 = vmatmul.bf16.gmra.mxu0 %v116
    %v2009 = vpop.f32.mrf.mxu0
    %v2010 = vadd.f32 0.0, %v2009
    %v2011 = vpop.f32.mrf.mxu0
    %v2012 = vadd.f32 0.0, %v2011
    %2013 = vmatmul.bf16.gmra.mxu0 %v119
    %v2014 = vpop.f32.mrf.mxu0
    %v2015 = vadd.f32 0.0, %v2014
    %v2016 = vpop.f32.mrf.mxu0
    %v2017 = vadd.f32 0.0, %v2016
    %2018 = vmatmul.bf16.gmra.mxu0 %v122
    %v2019 = vpop.f32.mrf.mxu0
    %v2020 = vadd.f32 0.0, %v2019
    %v2021 = vpop.f32.mrf.mxu0
    %v2022 = vadd.f32 0.0, %v2021
    %2023 = vmatmul.bf16.gmra.mxu0 %v125
    %v2024 = vpop.f32.mrf.mxu0
    %v2025 = vadd.f32 0.0, %v2024
    %v2026 = vpop.f32.mrf.mxu0
    %v2027 = vadd.f32 0.0, %v2026
    %2028 = vmatmul.bf16.gmra.mxu0 %v128
    %v2029 = vpop.f32.mrf.mxu0
    %v2030 = vadd.f32 0.0, %v2029
    %v2031 = vpop.f32.mrf.mxu0
    %v2032 = vadd.f32 0.0, %v2031
    %2033 = vmatmul.bf16.gmra.mxu0 %v131
    %v2034 = vpop.f32.mrf.mxu0
    %v2035 = vadd.f32 0.0, %v2034
    %v2036 = vpop.f32.mrf.mxu0
    %v2037 = vadd.f32 0.0, %v2036
    %2038 = vmatmul.bf16.gmra.mxu0 %v134
    %v2039 = vpop.f32.mrf.mxu0
    %v2040 = vadd.f32 0.0, %v2039
    %v2041 = vpop.f32.mrf.mxu0
    %v2042 = vadd.f32 0.0, %v2041
    %2043 = vdwg.mxu0
    %v2048 = vunpack.c.l.b16 %v1975
    %v2049 = vunpack.c.l.b16 %v1976
    %v2050 = vunpack.c.l.b16 %v1977
    %v2051 = vunpack.c.l.b16 %v1978
    %v2052 = vpack.c.b16 %v2049, %v2048
    %v2053 = vpack.c.b16 %v2051, %v2050
    %2056 = vmatpush.bf16.msra.mxu0 0
    %2057 = vmatpush.bf16.msra.mxu0 0
    %2058 = vmatpush.bf16.msra.mxu0 0
    %2059 = vmatpush.bf16.msra.mxu0 0
    %2060 = vmatpush.bf16.msra.mxu0 0
    %2061 = vmatpush.bf16.msra.mxu0 0
    %2062 = vmatpush.bf16.msra.mxu0 %v2053
    %2063 = vmatpush.bf16.msra.mxu0 %v2052
    %2064 = vmatmul.bf16.gmra.mxu0 %v198
    %v2065 = vpop.f32.mrf.mxu0
    %v2066 = vadd.f32 %v2005, %v2065
    %v2067 = vpop.f32.mrf.mxu0
    %v2068 = vadd.f32 %v2007, %v2067
    %2069 = vmatmul.bf16.gmra.mxu0 %v201
    %v2070 = vpop.f32.mrf.mxu0
    %v2071 = vadd.f32 %v2010, %v2070
    %v2072 = vpop.f32.mrf.mxu0
    %v2073 = vadd.f32 %v2012, %v2072
    %2074 = vmatmul.bf16.gmra.mxu0 %v204
    %v2075 = vpop.f32.mrf.mxu0
    %v2076 = vadd.f32 %v2015, %v2075
    %v2077 = vpop.f32.mrf.mxu0
    %v2078 = vadd.f32 %v2017, %v2077
    %2079 = vmatmul.bf16.gmra.mxu0 %v207
    %v2080 = vpop.f32.mrf.mxu0
    %v2081 = vadd.f32 %v2020, %v2080
    %v2082 = vpop.f32.mrf.mxu0
    %v2083 = vadd.f32 %v2022, %v2082
    %2084 = vmatmul.bf16.gmra.mxu0 %v210
    %v2085 = vpop.f32.mrf.mxu0
    %v2086 = vadd.f32 %v2025, %v2085
    %v2087 = vpop.f32.mrf.mxu0
    %v2088 = vadd.f32 %v2027, %v2087
    %2089 = vmatmul.bf16.gmra.mxu0 %v213
    %v2090 = vpop.f32.mrf.mxu0
    %v2091 = vadd.f32 %v2030, %v2090
    %v2092 = vpop.f32.mrf.mxu0
    %v2093 = vadd.f32 %v2032, %v2092
    %2094 = vmatmul.bf16.gmra.mxu0 %v216
    %v2095 = vpop.f32.mrf.mxu0
    %v2096 = vadd.f32 %v2035, %v2095
    %v2097 = vpop.f32.mrf.mxu0
    %v2098 = vadd.f32 %v2037, %v2097
    %2099 = vmatmul.bf16.gmra.mxu0 %v219
    %v2100 = vpop.f32.mrf.mxu0
    %v2101 = vadd.f32 %v2040, %v2100
    %v2102 = vpop.f32.mrf.mxu0
    %v2103 = vadd.f32 %v2042, %v2102
    %2104 = vdwg.mxu0
    %s2105 = scalar_lea.vmem %s5, 3
    %v2106 = vld [vmem:[%s2105] sm:$0x1]
    %v2108 = vperm.slane %v2106, 0
    %v2110 = vadd.f32 %v2066, %v2108
    %v2111 = vadd.f32 %v2068, %v2108
    %v2112 = vadd.f32 %v2071, %v2108
    %v2113 = vadd.f32 %v2073, %v2108
    %v2114 = vadd.f32 %v2076, %v2108
    %v2115 = vadd.f32 %v2078, %v2108
    %v2116 = vadd.f32 %v2081, %v2108
    %v2117 = vadd.f32 %v2083, %v2108
    %v2118 = vadd.f32 %v2086, %v2108
    %v2119 = vadd.f32 %v2088, %v2108
    %v2120 = vadd.f32 %v2091, %v2108
    %v2121 = vadd.f32 %v2093, %v2108
    %v2122 = vadd.f32 %v2096, %v2108
    %v2123 = vadd.f32 %v2098, %v2108
    %v2124 = vadd.f32 %v2101, %v2108
    %v2125 = vadd.f32 %v2103, %v2108
    %v2126 = vmax.f32 %v2110, 0.0
    %v2127 = vmax.f32 %v2111, 0.0
    %v2128 = vmax.f32 %v2112, 0.0
    %v2129 = vmax.f32 %v2113, 0.0
    %v2130 = vmax.f32 %v2114, 0.0
    %v2131 = vmax.f32 %v2115, 0.0
    %v2132 = vmax.f32 %v2116, 0.0
    %v2133 = vmax.f32 %v2117, 0.0
    %v2134 = vmax.f32 %v2118, 0.0
    %v2135 = vmax.f32 %v2119, 0.0
    %v2136 = vmax.f32 %v2120, 0.0
    %v2137 = vmax.f32 %v2121, 0.0
    %v2138 = vmax.f32 %v2122, 0.0
    %v2139 = vmax.f32 %v2123, 0.0
    %v2140 = vmax.f32 %v2124, 0.0
    %v2141 = vmax.f32 %v2125, 0.0
    %v2142 = vpack.c.bf16 %v2126, %v2126
    %v2143 = vpack.c.bf16 %v2127, %v2127
    %v2144 = vpack.c.bf16 %v2128, %v2128
    %v2145 = vpack.c.bf16 %v2129, %v2129
    %v2146 = vpack.c.bf16 %v2130, %v2130
    %v2147 = vpack.c.bf16 %v2131, %v2131
    %v2148 = vpack.c.bf16 %v2132, %v2132
    %v2149 = vpack.c.bf16 %v2133, %v2133
    %v2150 = vpack.c.bf16 %v2134, %v2134
    %v2151 = vpack.c.bf16 %v2135, %v2135
    %v2152 = vpack.c.bf16 %v2136, %v2136
    %v2153 = vpack.c.bf16 %v2137, %v2137
    %v2154 = vpack.c.bf16 %v2138, %v2138
    %v2155 = vpack.c.bf16 %v2139, %v2139
    %v2156 = vpack.c.bf16 %v2140, %v2140
    %v2157 = vpack.c.bf16 %v2141, %v2141
    %s2158 = scalar_lea.vmem %s6, 96
    %v2159 = vld [vmem:[%s2158] sm:$0xf]
    %v2160 = vld [vmem:[%s2158 + $0x4] sm:$0xf]
    %v2161 = vld [vmem:[%s2158 + $0x8] sm:$0xf]
    %v2162 = vld [vmem:[%s2158 + $0xc] sm:$0xf]
    %v2163 = vld [vmem:[%s2158 + $0x10] sm:$0xf]
    %v2164 = vld [vmem:[%s2158 + $0x14] sm:$0xf]
    %v2165 = vld [vmem:[%s2158 + $0x18] sm:$0xf]
    %v2166 = vld [vmem:[%s2158 + $0x1c] sm:$0xf]
    %v2171 = vunpack.c.l.b16 %v2163
    %v2172 = vunpack.c.l.b16 %v2164
    %v2173 = vunpack.c.l.b16 %v2165
    %v2174 = vunpack.c.l.b16 %v2166
    %v2175 = vpack.c.b16 %v2172, %v2171
    %v2176 = vpack.c.b16 %v2174, %v2173
    %2179 = vmatpush.bf16.msra.mxu0 0
    %2180 = vmatpush.bf16.msra.mxu0 0
    %2181 = vmatpush.bf16.msra.mxu0 0
    %2182 = vmatpush.bf16.msra.mxu0 0
    %2183 = vmatpush.bf16.msra.mxu0 0
    %2184 = vmatpush.bf16.msra.mxu0 0
    %2185 = vmatpush.bf16.msra.mxu0 %v2176
    %2186 = vmatpush.bf16.msra.mxu0 %v2175
    %2187 = vmatmul.bf16.gmra.mxu0 %v113
    %v2188 = vpop.f32.mrf.mxu0
    %v2189 = vadd.f32 0.0, %v2188
    %v2190 = vpop.f32.mrf.mxu0
    %v2191 = vadd.f32 0.0, %v2190
    %2192 = vmatmul.bf16.gmra.mxu0 %v116
    %v2193 = vpop.f32.mrf.mxu0
    %v2194 = vadd.f32 0.0, %v2193
    %v2195 = vpop.f32.mrf.mxu0
    %v2196 = vadd.f32 0.0, %v2195
    %2197 = vmatmul.bf16.gmra.mxu0 %v119
    %v2198 = vpop.f32.mrf.mxu0
    %v2199 = vadd.f32 0.0, %v2198
    %v2200 = vpop.f32.mrf.mxu0
    %v2201 = vadd.f32 0.0, %v2200
    %2202 = vmatmul.bf16.gmra.mxu0 %v122
    %v2203 = vpop.f32.mrf.mxu0
    %v2204 = vadd.f32 0.0, %v2203
    %v2205 = vpop.f32.mrf.mxu0
    %v2206 = vadd.f32 0.0, %v2205
    %2207 = vmatmul.bf16.gmra.mxu0 %v125
    %v2208 = vpop.f32.mrf.mxu0
    %v2209 = vadd.f32 0.0, %v2208
    %v2210 = vpop.f32.mrf.mxu0
    %v2211 = vadd.f32 0.0, %v2210
    %2212 = vmatmul.bf16.gmra.mxu0 %v128
    %v2213 = vpop.f32.mrf.mxu0
    %v2214 = vadd.f32 0.0, %v2213
    %v2215 = vpop.f32.mrf.mxu0
    %v2216 = vadd.f32 0.0, %v2215
    %2217 = vmatmul.bf16.gmra.mxu0 %v131
    %v2218 = vpop.f32.mrf.mxu0
    %v2219 = vadd.f32 0.0, %v2218
    %v2220 = vpop.f32.mrf.mxu0
    %v2221 = vadd.f32 0.0, %v2220
    %2222 = vmatmul.bf16.gmra.mxu0 %v134
    %v2223 = vpop.f32.mrf.mxu0
    %v2224 = vadd.f32 0.0, %v2223
    %v2225 = vpop.f32.mrf.mxu0
    %v2226 = vadd.f32 0.0, %v2225
    %2227 = vdwg.mxu0
    %v2232 = vunpack.c.l.b16 %v2159
    %v2233 = vunpack.c.l.b16 %v2160
    %v2234 = vunpack.c.l.b16 %v2161
    %v2235 = vunpack.c.l.b16 %v2162
    %v2236 = vpack.c.b16 %v2233, %v2232
    %v2237 = vpack.c.b16 %v2235, %v2234
    %2240 = vmatpush.bf16.msra.mxu0 0
    %2241 = vmatpush.bf16.msra.mxu0 0
    %2242 = vmatpush.bf16.msra.mxu0 0
    %2243 = vmatpush.bf16.msra.mxu0 0
    %2244 = vmatpush.bf16.msra.mxu0 0
    %2245 = vmatpush.bf16.msra.mxu0 0
    %2246 = vmatpush.bf16.msra.mxu0 %v2237
    %2247 = vmatpush.bf16.msra.mxu0 %v2236
    %2248 = vmatmul.bf16.gmra.mxu0 %v198
    %v2249 = vpop.f32.mrf.mxu0
    %v2250 = vadd.f32 %v2189, %v2249
    %v2251 = vpop.f32.mrf.mxu0
    %v2252 = vadd.f32 %v2191, %v2251
    %2253 = vmatmul.bf16.gmra.mxu0 %v201
    %v2254 = vpop.f32.mrf.mxu0
    %v2255 = vadd.f32 %v2194, %v2254
    %v2256 = vpop.f32.mrf.mxu0
    %v2257 = vadd.f32 %v2196, %v2256
    %2258 = vmatmul.bf16.gmra.mxu0 %v204
    %v2259 = vpop.f32.mrf.mxu0
    %v2260 = vadd.f32 %v2199, %v2259
    %v2261 = vpop.f32.mrf.mxu0
    %v2262 = vadd.f32 %v2201, %v2261
    %2263 = vmatmul.bf16.gmra.mxu0 %v207
    %v2264 = vpop.f32.mrf.mxu0
    %v2265 = vadd.f32 %v2204, %v2264
    %v2266 = vpop.f32.mrf.mxu0
    %v2267 = vadd.f32 %v2206, %v2266
    %2268 = vmatmul.bf16.gmra.mxu0 %v210
    %v2269 = vpop.f32.mrf.mxu0
    %v2270 = vadd.f32 %v2209, %v2269
    %v2271 = vpop.f32.mrf.mxu0
    %v2272 = vadd.f32 %v2211, %v2271
    %2273 = vmatmul.bf16.gmra.mxu0 %v213
    %v2274 = vpop.f32.mrf.mxu0
    %v2275 = vadd.f32 %v2214, %v2274
    %v2276 = vpop.f32.mrf.mxu0
    %v2277 = vadd.f32 %v2216, %v2276
    %2278 = vmatmul.bf16.gmra.mxu0 %v216
    %v2279 = vpop.f32.mrf.mxu0
    %v2280 = vadd.f32 %v2219, %v2279
    %v2281 = vpop.f32.mrf.mxu0
    %v2282 = vadd.f32 %v2221, %v2281
    %2283 = vmatmul.bf16.gmra.mxu0 %v219
    %v2284 = vpop.f32.mrf.mxu0
    %v2285 = vadd.f32 %v2224, %v2284
    %v2286 = vpop.f32.mrf.mxu0
    %v2287 = vadd.f32 %v2226, %v2286
    %2288 = vdwg.mxu0
    %s2289 = scalar_lea.vmem %s7, 3
    %v2290 = vld [vmem:[%s2289] sm:$0x1]
    %v2292 = vperm.slane %v2290, 0
    %v2294 = vadd.f32 %v2250, %v2292
    %v2295 = vadd.f32 %v2252, %v2292
    %v2296 = vadd.f32 %v2255, %v2292
    %v2297 = vadd.f32 %v2257, %v2292
    %v2298 = vadd.f32 %v2260, %v2292
    %v2299 = vadd.f32 %v2262, %v2292
    %v2300 = vadd.f32 %v2265, %v2292
    %v2301 = vadd.f32 %v2267, %v2292
    %v2302 = vadd.f32 %v2270, %v2292
    %v2303 = vadd.f32 %v2272, %v2292
    %v2304 = vadd.f32 %v2275, %v2292
    %v2305 = vadd.f32 %v2277, %v2292
    %v2306 = vadd.f32 %v2280, %v2292
    %v2307 = vadd.f32 %v2282, %v2292
    %v2308 = vadd.f32 %v2285, %v2292
    %v2309 = vadd.f32 %v2287, %v2292
    %v2310 = vmax.f32 %v2294, 0.0
    %v2311 = vmax.f32 %v2295, 0.0
    %v2312 = vmax.f32 %v2296, 0.0
    %v2313 = vmax.f32 %v2297, 0.0
    %v2314 = vmax.f32 %v2298, 0.0
    %v2315 = vmax.f32 %v2299, 0.0
    %v2316 = vmax.f32 %v2300, 0.0
    %v2317 = vmax.f32 %v2301, 0.0
    %v2318 = vmax.f32 %v2302, 0.0
    %v2319 = vmax.f32 %v2303, 0.0
    %v2320 = vmax.f32 %v2304, 0.0
    %v2321 = vmax.f32 %v2305, 0.0
    %v2322 = vmax.f32 %v2306, 0.0
    %v2323 = vmax.f32 %v2307, 0.0
    %v2324 = vmax.f32 %v2308, 0.0
    %v2325 = vmax.f32 %v2309, 0.0
    %v2326 = vpack.c.bf16 %v2310, %v2310
    %v2327 = vpack.c.bf16 %v2311, %v2311
    %v2328 = vpack.c.bf16 %v2312, %v2312
    %v2329 = vpack.c.bf16 %v2313, %v2313
    %v2330 = vpack.c.bf16 %v2314, %v2314
    %v2331 = vpack.c.bf16 %v2315, %v2315
    %v2332 = vpack.c.bf16 %v2316, %v2316
    %v2333 = vpack.c.bf16 %v2317, %v2317
    %v2334 = vpack.c.bf16 %v2318, %v2318
    %v2335 = vpack.c.bf16 %v2319, %v2319
    %v2336 = vpack.c.bf16 %v2320, %v2320
    %v2337 = vpack.c.bf16 %v2321, %v2321
    %v2338 = vpack.c.bf16 %v2322, %v2322
    %v2339 = vpack.c.bf16 %v2323, %v2323
    %v2340 = vpack.c.bf16 %v2324, %v2324
    %v2341 = vpack.c.bf16 %v2325, %v2325
    %v2344 = vunpack.c.l.b16 %v306
    %v2345 = vunpack.c.l.b16 %v307
    %v2346 = vpack.c.b16 %v2345, %v2344
    %v2349 = vunpack.c.l.b16 %v488
    %v2350 = vunpack.c.l.b16 %v489
    %v2351 = vpack.c.b16 %v2350, %v2349
    %vm2352 = vcmask 64512
    %v2354 = vsel %vm2352, %v2346, 0
    %v2357 = vsel %vm2352, %v2351, 0
    %2359 = vmatpush.bf16.xpose.msra.mxu0 0
    %2360 = vmatpush.bf16.xpose.msra.mxu0 0
    %2361 = vmatpush.bf16.xpose.msra.mxu0 0
    %2362 = vmatpush.bf16.xpose.msra.mxu0 0
    %2363 = vmatpush.bf16.xpose.msra.mxu0 0
    %2364 = vmatpush.bf16.xpose.msra.mxu0 0
    %2365 = vmatpush.bf16.xpose.msra.mxu0 0
    %2366 = vmatpush.bf16.xpose.msra.mxu0 %v2357
    %2367 = vmatmul.bf16.gmra.mxu0 %v2354
    %v2368 = vpop.f32.mrf.mxu0
    %v2369 = vadd.f32 0.0, %v2368
    %v2370 = vpop.f32.mrf.mxu0
    %v2371 = vadd.f32 0.0, %v2370
    %2372 = vdwg.mxu0
    %v2375 = vunpack.c.l.b16 %v308
    %v2376 = vunpack.c.l.b16 %v309
    %v2377 = vpack.c.b16 %v2376, %v2375
    %v2380 = vunpack.c.l.b16 %v490
    %v2381 = vunpack.c.l.b16 %v491
    %v2382 = vpack.c.b16 %v2381, %v2380
    %v2384 = vsel %vm2352, %v2377, 0
    %v2387 = vsel %vm2352, %v2382, 0
    %2389 = vmatpush.bf16.xpose.msra.mxu0 0
    %2390 = vmatpush.bf16.xpose.msra.mxu0 0
    %2391 = vmatpush.bf16.xpose.msra.mxu0 0
    %2392 = vmatpush.bf16.xpose.msra.mxu0 0
    %2393 = vmatpush.bf16.xpose.msra.mxu0 0
    %2394 = vmatpush.bf16.xpose.msra.mxu0 0
    %2395 = vmatpush.bf16.xpose.msra.mxu0 0
    %2396 = vmatpush.bf16.xpose.msra.mxu0 %v2387
    %2397 = vmatmul.bf16.gmra.mxu0 %v2384
    %v2398 = vpop.f32.mrf.mxu0
    %v2399 = vadd.f32 0.0, %v2398
    %v2400 = vpop.f32.mrf.mxu0
    %v2401 = vadd.f32 0.0, %v2400
    %2402 = vdwg.mxu0
    %v2405 = vunpack.c.l.b16 %v310
    %v2406 = vunpack.c.l.b16 %v311
    %v2407 = vpack.c.b16 %v2406, %v2405
    %v2410 = vunpack.c.l.b16 %v492
    %v2411 = vunpack.c.l.b16 %v493
    %v2412 = vpack.c.b16 %v2411, %v2410
    %v2414 = vsel %vm2352, %v2407, 0
    %v2417 = vsel %vm2352, %v2412, 0
    %2419 = vmatpush.bf16.xpose.msra.mxu0 0
    %2420 = vmatpush.bf16.xpose.msra.mxu0 0
    %2421 = vmatpush.bf16.xpose.msra.mxu0 0
    %2422 = vmatpush.bf16.xpose.msra.mxu0 0
    %2423 = vmatpush.bf16.xpose.msra.mxu0 0
    %2424 = vmatpush.bf16.xpose.msra.mxu0 0
    %2425 = vmatpush.bf16.xpose.msra.mxu0 0
    %2426 = vmatpush.bf16.xpose.msra.mxu0 %v2417
    %2427 = vmatmul.bf16.gmra.mxu0 %v2414
    %v2428 = vpop.f32.mrf.mxu0
    %v2429 = vadd.f32 0.0, %v2428
    %v2430 = vpop.f32.mrf.mxu0
    %v2431 = vadd.f32 0.0, %v2430
    %2432 = vdwg.mxu0
    %v2435 = vunpack.c.l.b16 %v312
    %v2436 = vunpack.c.l.b16 %v313
    %v2437 = vpack.c.b16 %v2436, %v2435
    %v2440 = vunpack.c.l.b16 %v494
    %v2441 = vunpack.c.l.b16 %v495
    %v2442 = vpack.c.b16 %v2441, %v2440
    %v2444 = vsel %vm2352, %v2437, 0
    %v2447 = vsel %vm2352, %v2442, 0
    %2449 = vmatpush.bf16.xpose.msra.mxu0 0
    %2450 = vmatpush.bf16.xpose.msra.mxu0 0
    %2451 = vmatpush.bf16.xpose.msra.mxu0 0
    %2452 = vmatpush.bf16.xpose.msra.mxu0 0
    %2453 = vmatpush.bf16.xpose.msra.mxu0 0
    %2454 = vmatpush.bf16.xpose.msra.mxu0 0
    %2455 = vmatpush.bf16.xpose.msra.mxu0 0
    %2456 = vmatpush.bf16.xpose.msra.mxu0 %v2447
    %2457 = vmatmul.bf16.gmra.mxu0 %v2444
    %v2458 = vpop.f32.mrf.mxu0
    %v2459 = vadd.f32 0.0, %v2458
    %v2460 = vpop.f32.mrf.mxu0
    %v2461 = vadd.f32 0.0, %v2460
    %2462 = vdwg.mxu0
    %v2465 = vunpack.c.l.b16 %v314
    %v2466 = vunpack.c.l.b16 %v315
    %v2467 = vpack.c.b16 %v2466, %v2465
    %v2470 = vunpack.c.l.b16 %v496
    %v2471 = vunpack.c.l.b16 %v497
    %v2472 = vpack.c.b16 %v2471, %v2470
    %v2474 = vsel %vm2352, %v2467, 0
    %v2477 = vsel %vm2352, %v2472, 0
    %2479 = vmatpush.bf16.xpose.msra.mxu0 0
    %2480 = vmatpush.bf16.xpose.msra.mxu0 0
    %2481 = vmatpush.bf16.xpose.msra.mxu0 0
    %2482 = vmatpush.bf16.xpose.msra.mxu0 0
    %2483 = vmatpush.bf16.xpose.msra.mxu0 0
    %2484 = vmatpush.bf16.xpose.msra.mxu0 0
    %2485 = vmatpush.bf16.xpose.msra.mxu0 0
    %2486 = vmatpush.bf16.xpose.msra.mxu0 %v2477
    %2487 = vmatmul.bf16.gmra.mxu0 %v2474
    %v2488 = vpop.f32.mrf.mxu0
    %v2489 = vadd.f32 0.0, %v2488
    %v2490 = vpop.f32.mrf.mxu0
    %v2491 = vadd.f32 0.0, %v2490
    %2492 = vdwg.mxu0
    %v2495 = vunpack.c.l.b16 %v316
    %v2496 = vunpack.c.l.b16 %v317
    %v2497 = vpack.c.b16 %v2496, %v2495
    %v2500 = vunpack.c.l.b16 %v498
    %v2501 = vunpack.c.l.b16 %v499
    %v2502 = vpack.c.b16 %v2501, %v2500
    %v2504 = vsel %vm2352, %v2497, 0
    %v2507 = vsel %vm2352, %v2502, 0
    %2509 = vmatpush.bf16.xpose.msra.mxu0 0
    %2510 = vmatpush.bf16.xpose.msra.mxu0 0
    %2511 = vmatpush.bf16.xpose.msra.mxu0 0
    %2512 = vmatpush.bf16.xpose.msra.mxu0 0
    %2513 = vmatpush.bf16.xpose.msra.mxu0 0
    %2514 = vmatpush.bf16.xpose.msra.mxu0 0
    %2515 = vmatpush.bf16.xpose.msra.mxu0 0
    %2516 = vmatpush.bf16.xpose.msra.mxu0 %v2507
    %2517 = vmatmul.bf16.gmra.mxu0 %v2504
    %v2518 = vpop.f32.mrf.mxu0
    %v2519 = vadd.f32 0.0, %v2518
    %v2520 = vpop.f32.mrf.mxu0
    %v2521 = vadd.f32 0.0, %v2520
    %2522 = vdwg.mxu0
    %v2525 = vunpack.c.l.b16 %v318
    %v2526 = vunpack.c.l.b16 %v319
    %v2527 = vpack.c.b16 %v2526, %v2525
    %v2530 = vunpack.c.l.b16 %v500
    %v2531 = vunpack.c.l.b16 %v501
    %v2532 = vpack.c.b16 %v2531, %v2530
    %v2534 = vsel %vm2352, %v2527, 0
    %v2537 = vsel %vm2352, %v2532, 0
    %2539 = vmatpush.bf16.xpose.msra.mxu0 0
    %2540 = vmatpush.bf16.xpose.msra.mxu0 0
    %2541 = vmatpush.bf16.xpose.msra.mxu0 0
    %2542 = vmatpush.bf16.xpose.msra.mxu0 0
    %2543 = vmatpush.bf16.xpose.msra.mxu0 0
    %2544 = vmatpush.bf16.xpose.msra.mxu0 0
    %2545 = vmatpush.bf16.xpose.msra.mxu0 0
    %2546 = vmatpush.bf16.xpose.msra.mxu0 %v2537
    %2547 = vmatmul.bf16.gmra.mxu0 %v2534
    %v2548 = vpop.f32.mrf.mxu0
    %v2549 = vadd.f32 0.0, %v2548
    %v2550 = vpop.f32.mrf.mxu0
    %v2551 = vadd.f32 0.0, %v2550
    %2552 = vdwg.mxu0
    %v2555 = vunpack.c.l.b16 %v320
    %v2556 = vunpack.c.l.b16 %v321
    %v2557 = vpack.c.b16 %v2556, %v2555
    %v2560 = vunpack.c.l.b16 %v502
    %v2561 = vunpack.c.l.b16 %v503
    %v2562 = vpack.c.b16 %v2561, %v2560
    %v2564 = vsel %vm2352, %v2557, 0
    %v2567 = vsel %vm2352, %v2562, 0
    %2569 = vmatpush.bf16.xpose.msra.mxu0 0
    %2570 = vmatpush.bf16.xpose.msra.mxu0 0
    %2571 = vmatpush.bf16.xpose.msra.mxu0 0
    %2572 = vmatpush.bf16.xpose.msra.mxu0 0
    %2573 = vmatpush.bf16.xpose.msra.mxu0 0
    %2574 = vmatpush.bf16.xpose.msra.mxu0 0
    %2575 = vmatpush.bf16.xpose.msra.mxu0 0
    %2576 = vmatpush.bf16.xpose.msra.mxu0 %v2567
    %2577 = vmatmul.bf16.gmra.mxu0 %v2564
    %v2578 = vpop.f32.mrf.mxu0
    %v2579 = vadd.f32 0.0, %v2578
    %v2580 = vpop.f32.mrf.mxu0
    %v2581 = vadd.f32 0.0, %v2580
    %2582 = vdwg.mxu0
    %v2585 = vunpack.c.l.b16 %v854
    %v2586 = vunpack.c.l.b16 %v855
    %v2587 = vpack.c.b16 %v2586, %v2585
    %v2590 = vunpack.c.l.b16 %v1038
    %v2591 = vunpack.c.l.b16 %v1039
    %v2592 = vpack.c.b16 %v2591, %v2590
    %v2594 = vsel %vm2352, %v2587, 0
    %v2597 = vsel %vm2352, %v2592, 0
    %2599 = vmatpush.bf16.xpose.msra.mxu0 0
    %2600 = vmatpush.bf16.xpose.msra.mxu0 0
    %2601 = vmatpush.bf16.xpose.msra.mxu0 0
    %2602 = vmatpush.bf16.xpose.msra.mxu0 0
    %2603 = vmatpush.bf16.xpose.msra.mxu0 0
    %2604 = vmatpush.bf16.xpose.msra.mxu0 0
    %2605 = vmatpush.bf16.xpose.msra.mxu0 0
    %2606 = vmatpush.bf16.xpose.msra.mxu0 %v2597
    %2607 = vmatmul.bf16.gmra.mxu0 %v2594
    %v2608 = vpop.f32.mrf.mxu0
    %v2609 = vadd.f32 0.0, %v2608
    %v2610 = vpop.f32.mrf.mxu0
    %v2611 = vadd.f32 0.0, %v2610
    %2612 = vdwg.mxu0
    %v2615 = vunpack.c.l.b16 %v856
    %v2616 = vunpack.c.l.b16 %v857
    %v2617 = vpack.c.b16 %v2616, %v2615
    %v2620 = vunpack.c.l.b16 %v1040
    %v2621 = vunpack.c.l.b16 %v1041
    %v2622 = vpack.c.b16 %v2621, %v2620
    %v2624 = vsel %vm2352, %v2617, 0
    %v2627 = vsel %vm2352, %v2622, 0
    %2629 = vmatpush.bf16.xpose.msra.mxu0 0
    %2630 = vmatpush.bf16.xpose.msra.mxu0 0
    %2631 = vmatpush.bf16.xpose.msra.mxu0 0
    %2632 = vmatpush.bf16.xpose.msra.mxu0 0
    %2633 = vmatpush.bf16.xpose.msra.mxu0 0
    %2634 = vmatpush.bf16.xpose.msra.mxu0 0
    %2635 = vmatpush.bf16.xpose.msra.mxu0 0
    %2636 = vmatpush.bf16.xpose.msra.mxu0 %v2627
    %2637 = vmatmul.bf16.gmra.mxu0 %v2624
    %v2638 = vpop.f32.mrf.mxu0
    %v2639 = vadd.f32 0.0, %v2638
    %v2640 = vpop.f32.mrf.mxu0
    %v2641 = vadd.f32 0.0, %v2640
    %2642 = vdwg.mxu0
    %v2645 = vunpack.c.l.b16 %v858
    %v2646 = vunpack.c.l.b16 %v859
    %v2647 = vpack.c.b16 %v2646, %v2645
    %v2650 = vunpack.c.l.b16 %v1042
    %v2651 = vunpack.c.l.b16 %v1043
    %v2652 = vpack.c.b16 %v2651, %v2650
    %v2654 = vsel %vm2352, %v2647, 0
    %v2657 = vsel %vm2352, %v2652, 0
    %2659 = vmatpush.bf16.xpose.msra.mxu0 0
    %2660 = vmatpush.bf16.xpose.msra.mxu0 0
    %2661 = vmatpush.bf16.xpose.msra.mxu0 0
    %2662 = vmatpush.bf16.xpose.msra.mxu0 0
    %2663 = vmatpush.bf16.xpose.msra.mxu0 0
    %2664 = vmatpush.bf16.xpose.msra.mxu0 0
    %2665 = vmatpush.bf16.xpose.msra.mxu0 0
    %2666 = vmatpush.bf16.xpose.msra.mxu0 %v2657
    %2667 = vmatmul.bf16.gmra.mxu0 %v2654
    %v2668 = vpop.f32.mrf.mxu0
    %v2669 = vadd.f32 0.0, %v2668
    %v2670 = vpop.f32.mrf.mxu0
    %v2671 = vadd.f32 0.0, %v2670
    %2672 = vdwg.mxu0
    %v2675 = vunpack.c.l.b16 %v860
    %v2676 = vunpack.c.l.b16 %v861
    %v2677 = vpack.c.b16 %v2676, %v2675
    %v2680 = vunpack.c.l.b16 %v1044
    %v2681 = vunpack.c.l.b16 %v1045
    %v2682 = vpack.c.b16 %v2681, %v2680
    %v2684 = vsel %vm2352, %v2677, 0
    %v2687 = vsel %vm2352, %v2682, 0
    %2689 = vmatpush.bf16.xpose.msra.mxu0 0
    %2690 = vmatpush.bf16.xpose.msra.mxu0 0
    %2691 = vmatpush.bf16.xpose.msra.mxu0 0
    %2692 = vmatpush.bf16.xpose.msra.mxu0 0
    %2693 = vmatpush.bf16.xpose.msra.mxu0 0
    %2694 = vmatpush.bf16.xpose.msra.mxu0 0
    %2695 = vmatpush.bf16.xpose.msra.mxu0 0
    %2696 = vmatpush.bf16.xpose.msra.mxu0 %v2687
    %2697 = vmatmul.bf16.gmra.mxu0 %v2684
    %v2698 = vpop.f32.mrf.mxu0
    %v2699 = vadd.f32 0.0, %v2698
    %v2700 = vpop.f32.mrf.mxu0
    %v2701 = vadd.f32 0.0, %v2700
    %2702 = vdwg.mxu0
    %v2705 = vunpack.c.l.b16 %v862
    %v2706 = vunpack.c.l.b16 %v863
    %v2707 = vpack.c.b16 %v2706, %v2705
    %v2710 = vunpack.c.l.b16 %v1046
    %v2711 = vunpack.c.l.b16 %v1047
    %v2712 = vpack.c.b16 %v2711, %v2710
    %v2714 = vsel %vm2352, %v2707, 0
    %v2717 = vsel %vm2352, %v2712, 0
    %2719 = vmatpush.bf16.xpose.msra.mxu0 0
    %2720 = vmatpush.bf16.xpose.msra.mxu0 0
    %2721 = vmatpush.bf16.xpose.msra.mxu0 0
    %2722 = vmatpush.bf16.xpose.msra.mxu0 0
    %2723 = vmatpush.bf16.xpose.msra.mxu0 0
    %2724 = vmatpush.bf16.xpose.msra.mxu0 0
    %2725 = vmatpush.bf16.xpose.msra.mxu0 0
    %2726 = vmatpush.bf16.xpose.msra.mxu0 %v2717
    %2727 = vmatmul.bf16.gmra.mxu0 %v2714
    %v2728 = vpop.f32.mrf.mxu0
    %v2729 = vadd.f32 0.0, %v2728
    %v2730 = vpop.f32.mrf.mxu0
    %v2731 = vadd.f32 0.0, %v2730
    %2732 = vdwg.mxu0
    %v2735 = vunpack.c.l.b16 %v864
    %v2736 = vunpack.c.l.b16 %v865
    %v2737 = vpack.c.b16 %v2736, %v2735
    %v2740 = vunpack.c.l.b16 %v1048
    %v2741 = vunpack.c.l.b16 %v1049
    %v2742 = vpack.c.b16 %v2741, %v2740
    %v2744 = vsel %vm2352, %v2737, 0
    %v2747 = vsel %vm2352, %v2742, 0
    %2749 = vmatpush.bf16.xpose.msra.mxu0 0
    %2750 = vmatpush.bf16.xpose.msra.mxu0 0
    %2751 = vmatpush.bf16.xpose.msra.mxu0 0
    %2752 = vmatpush.bf16.xpose.msra.mxu0 0
    %2753 = vmatpush.bf16.xpose.msra.mxu0 0
    %2754 = vmatpush.bf16.xpose.msra.mxu0 0
    %2755 = vmatpush.bf16.xpose.msra.mxu0 0
    %2756 = vmatpush.bf16.xpose.msra.mxu0 %v2747
    %2757 = vmatmul.bf16.gmra.mxu0 %v2744
    %v2758 = vpop.f32.mrf.mxu0
    %v2759 = vadd.f32 0.0, %v2758
    %v2760 = vpop.f32.mrf.mxu0
    %v2761 = vadd.f32 0.0, %v2760
    %2762 = vdwg.mxu0
    %v2765 = vunpack.c.l.b16 %v866
    %v2766 = vunpack.c.l.b16 %v867
    %v2767 = vpack.c.b16 %v2766, %v2765
    %v2770 = vunpack.c.l.b16 %v1050
    %v2771 = vunpack.c.l.b16 %v1051
    %v2772 = vpack.c.b16 %v2771, %v2770
    %v2774 = vsel %vm2352, %v2767, 0
    %v2777 = vsel %vm2352, %v2772, 0
    %2779 = vmatpush.bf16.xpose.msra.mxu0 0
    %2780 = vmatpush.bf16.xpose.msra.mxu0 0
    %2781 = vmatpush.bf16.xpose.msra.mxu0 0
    %2782 = vmatpush.bf16.xpose.msra.mxu0 0
    %2783 = vmatpush.bf16.xpose.msra.mxu0 0
    %2784 = vmatpush.bf16.xpose.msra.mxu0 0
    %2785 = vmatpush.bf16.xpose.msra.mxu0 0
    %2786 = vmatpush.bf16.xpose.msra.mxu0 %v2777
    %2787 = vmatmul.bf16.gmra.mxu0 %v2774
    %v2788 = vpop.f32.mrf.mxu0
    %v2789 = vadd.f32 0.0, %v2788
    %v2790 = vpop.f32.mrf.mxu0
    %v2791 = vadd.f32 0.0, %v2790
    %2792 = vdwg.mxu0
    %v2795 = vunpack.c.l.b16 %v868
    %v2796 = vunpack.c.l.b16 %v869
    %v2797 = vpack.c.b16 %v2796, %v2795
    %v2800 = vunpack.c.l.b16 %v1052
    %v2801 = vunpack.c.l.b16 %v1053
    %v2802 = vpack.c.b16 %v2801, %v2800
    %v2804 = vsel %vm2352, %v2797, 0
    %v2807 = vsel %vm2352, %v2802, 0
    %2809 = vmatpush.bf16.xpose.msra.mxu0 0
    %2810 = vmatpush.bf16.xpose.msra.mxu0 0
    %2811 = vmatpush.bf16.xpose.msra.mxu0 0
    %2812 = vmatpush.bf16.xpose.msra.mxu0 0
    %2813 = vmatpush.bf16.xpose.msra.mxu0 0
    %2814 = vmatpush.bf16.xpose.msra.mxu0 0
    %2815 = vmatpush.bf16.xpose.msra.mxu0 0
    %2816 = vmatpush.bf16.xpose.msra.mxu0 %v2807
    %2817 = vmatmul.bf16.gmra.mxu0 %v2804
    %v2818 = vpop.f32.mrf.mxu0
    %v2819 = vadd.f32 0.0, %v2818
    %v2820 = vpop.f32.mrf.mxu0
    %v2821 = vadd.f32 0.0, %v2820
    %2822 = vdwg.mxu0
    %v2825 = vunpack.c.l.b16 %v1406
    %v2826 = vunpack.c.l.b16 %v1407
    %v2827 = vpack.c.b16 %v2826, %v2825
    %v2830 = vunpack.c.l.b16 %v1590
    %v2831 = vunpack.c.l.b16 %v1591
    %v2832 = vpack.c.b16 %v2831, %v2830
    %v2834 = vsel %vm2352, %v2827, 0
    %v2837 = vsel %vm2352, %v2832, 0
    %2839 = vmatpush.bf16.xpose.msra.mxu0 0
    %2840 = vmatpush.bf16.xpose.msra.mxu0 0
    %2841 = vmatpush.bf16.xpose.msra.mxu0 0
    %2842 = vmatpush.bf16.xpose.msra.mxu0 0
    %2843 = vmatpush.bf16.xpose.msra.mxu0 0
    %2844 = vmatpush.bf16.xpose.msra.mxu0 0
    %2845 = vmatpush.bf16.xpose.msra.mxu0 0
    %2846 = vmatpush.bf16.xpose.msra.mxu0 %v2837
    %2847 = vmatmul.bf16.gmra.mxu0 %v2834
    %v2848 = vpop.f32.mrf.mxu0
    %v2849 = vadd.f32 0.0, %v2848
    %v2850 = vpop.f32.mrf.mxu0
    %v2851 = vadd.f32 0.0, %v2850
    %2852 = vdwg.mxu0
    %v2855 = vunpack.c.l.b16 %v1408
    %v2856 = vunpack.c.l.b16 %v1409
    %v2857 = vpack.c.b16 %v2856, %v2855
    %v2860 = vunpack.c.l.b16 %v1592
    %v2861 = vunpack.c.l.b16 %v1593
    %v2862 = vpack.c.b16 %v2861, %v2860
    %v2864 = vsel %vm2352, %v2857, 0
    %v2867 = vsel %vm2352, %v2862, 0
    %2869 = vmatpush.bf16.xpose.msra.mxu0 0
    %2870 = vmatpush.bf16.xpose.msra.mxu0 0
    %2871 = vmatpush.bf16.xpose.msra.mxu0 0
    %2872 = vmatpush.bf16.xpose.msra.mxu0 0
    %2873 = vmatpush.bf16.xpose.msra.mxu0 0
    %2874 = vmatpush.bf16.xpose.msra.mxu0 0
    %2875 = vmatpush.bf16.xpose.msra.mxu0 0
    %2876 = vmatpush.bf16.xpose.msra.mxu0 %v2867
    %2877 = vmatmul.bf16.gmra.mxu0 %v2864
    %v2878 = vpop.f32.mrf.mxu0
    %v2879 = vadd.f32 0.0, %v2878
    %v2880 = vpop.f32.mrf.mxu0
    %v2881 = vadd.f32 0.0, %v2880
    %2882 = vdwg.mxu0
    %v2885 = vunpack.c.l.b16 %v1410
    %v2886 = vunpack.c.l.b16 %v1411
    %v2887 = vpack.c.b16 %v2886, %v2885
    %v2890 = vunpack.c.l.b16 %v1594
    %v2891 = vunpack.c.l.b16 %v1595
    %v2892 = vpack.c.b16 %v2891, %v2890
    %v2894 = vsel %vm2352, %v2887, 0
    %v2897 = vsel %vm2352, %v2892, 0
    %2899 = vmatpush.bf16.xpose.msra.mxu0 0
    %2900 = vmatpush.bf16.xpose.msra.mxu0 0
    %2901 = vmatpush.bf16.xpose.msra.mxu0 0
    %2902 = vmatpush.bf16.xpose.msra.mxu0 0
    %2903 = vmatpush.bf16.xpose.msra.mxu0 0
    %2904 = vmatpush.bf16.xpose.msra.mxu0 0
    %2905 = vmatpush.bf16.xpose.msra.mxu0 0
    %2906 = vmatpush.bf16.xpose.msra.mxu0 %v2897
    %2907 = vmatmul.bf16.gmra.mxu0 %v2894
    %v2908 = vpop.f32.mrf.mxu0
    %v2909 = vadd.f32 0.0, %v2908
    %v2910 = vpop.f32.mrf.mxu0
    %v2911 = vadd.f32 0.0, %v2910
    %2912 = vdwg.mxu0
    %v2915 = vunpack.c.l.b16 %v1412
    %v2916 = vunpack.c.l.b16 %v1413
    %v2917 = vpack.c.b16 %v2916, %v2915
    %v2920 = vunpack.c.l.b16 %v1596
    %v2921 = vunpack.c.l.b16 %v1597
    %v2922 = vpack.c.b16 %v2921, %v2920
    %v2924 = vsel %vm2352, %v2917, 0
    %v2927 = vsel %vm2352, %v2922, 0
    %2929 = vmatpush.bf16.xpose.msra.mxu0 0
    %2930 = vmatpush.bf16.xpose.msra.mxu0 0
    %2931 = vmatpush.bf16.xpose.msra.mxu0 0
    %2932 = vmatpush.bf16.xpose.msra.mxu0 0
    %2933 = vmatpush.bf16.xpose.msra.mxu0 0
    %2934 = vmatpush.bf16.xpose.msra.mxu0 0
    %2935 = vmatpush.bf16.xpose.msra.mxu0 0
    %2936 = vmatpush.bf16.xpose.msra.mxu0 %v2927
    %2937 = vmatmul.bf16.gmra.mxu0 %v2924
    %v2938 = vpop.f32.mrf.mxu0
    %v2939 = vadd.f32 0.0, %v2938
    %v2940 = vpop.f32.mrf.mxu0
    %v2941 = vadd.f32 0.0, %v2940
    %2942 = vdwg.mxu0
    %v2945 = vunpack.c.l.b16 %v1414
    %v2946 = vunpack.c.l.b16 %v1415
    %v2947 = vpack.c.b16 %v2946, %v2945
    %v2950 = vunpack.c.l.b16 %v1598
    %v2951 = vunpack.c.l.b16 %v1599
    %v2952 = vpack.c.b16 %v2951, %v2950
    %v2954 = vsel %vm2352, %v2947, 0
    %v2957 = vsel %vm2352, %v2952, 0
    %2959 = vmatpush.bf16.xpose.msra.mxu0 0
    %2960 = vmatpush.bf16.xpose.msra.mxu0 0
    %2961 = vmatpush.bf16.xpose.msra.mxu0 0
    %2962 = vmatpush.bf16.xpose.msra.mxu0 0
    %2963 = vmatpush.bf16.xpose.msra.mxu0 0
    %2964 = vmatpush.bf16.xpose.msra.mxu0 0
    %2965 = vmatpush.bf16.xpose.msra.mxu0 0
    %2966 = vmatpush.bf16.xpose.msra.mxu0 %v2957
    %2967 = vmatmul.bf16.gmra.mxu0 %v2954
    %v2968 = vpop.f32.mrf.mxu0
    %v2969 = vadd.f32 0.0, %v2968
    %v2970 = vpop.f32.mrf.mxu0
    %v2971 = vadd.f32 0.0, %v2970
    %2972 = vdwg.mxu0
    %v2975 = vunpack.c.l.b16 %v1416
    %v2976 = vunpack.c.l.b16 %v1417
    %v2977 = vpack.c.b16 %v2976, %v2975
    %v2980 = vunpack.c.l.b16 %v1600
    %v2981 = vunpack.c.l.b16 %v1601
    %v2982 = vpack.c.b16 %v2981, %v2980
    %v2984 = vsel %vm2352, %v2977, 0
    %v2987 = vsel %vm2352, %v2982, 0
    %2989 = vmatpush.bf16.xpose.msra.mxu0 0
    %2990 = vmatpush.bf16.xpose.msra.mxu0 0
    %2991 = vmatpush.bf16.xpose.msra.mxu0 0
    %2992 = vmatpush.bf16.xpose.msra.mxu0 0
    %2993 = vmatpush.bf16.xpose.msra.mxu0 0
    %2994 = vmatpush.bf16.xpose.msra.mxu0 0
    %2995 = vmatpush.bf16.xpose.msra.mxu0 0
    %2996 = vmatpush.bf16.xpose.msra.mxu0 %v2987
    %2997 = vmatmul.bf16.gmra.mxu0 %v2984
    %v2998 = vpop.f32.mrf.mxu0
    %v2999 = vadd.f32 0.0, %v2998
    %v3000 = vpop.f32.mrf.mxu0
    %v3001 = vadd.f32 0.0, %v3000
    %3002 = vdwg.mxu0
    %v3005 = vunpack.c.l.b16 %v1418
    %v3006 = vunpack.c.l.b16 %v1419
    %v3007 = vpack.c.b16 %v3006, %v3005
    %v3010 = vunpack.c.l.b16 %v1602
    %v3011 = vunpack.c.l.b16 %v1603
    %v3012 = vpack.c.b16 %v3011, %v3010
    %v3014 = vsel %vm2352, %v3007, 0
    %v3017 = vsel %vm2352, %v3012, 0
    %3019 = vmatpush.bf16.xpose.msra.mxu0 0
    %3020 = vmatpush.bf16.xpose.msra.mxu0 0
    %3021 = vmatpush.bf16.xpose.msra.mxu0 0
    %3022 = vmatpush.bf16.xpose.msra.mxu0 0
    %3023 = vmatpush.bf16.xpose.msra.mxu0 0
    %3024 = vmatpush.bf16.xpose.msra.mxu0 0
    %3025 = vmatpush.bf16.xpose.msra.mxu0 0
    %3026 = vmatpush.bf16.xpose.msra.mxu0 %v3017
    %3027 = vmatmul.bf16.gmra.mxu0 %v3014
    %v3028 = vpop.f32.mrf.mxu0
    %v3029 = vadd.f32 0.0, %v3028
    %v3030 = vpop.f32.mrf.mxu0
    %v3031 = vadd.f32 0.0, %v3030
    %3032 = vdwg.mxu0
    %v3035 = vunpack.c.l.b16 %v1420
    %v3036 = vunpack.c.l.b16 %v1421
    %v3037 = vpack.c.b16 %v3036, %v3035
    %v3040 = vunpack.c.l.b16 %v1604
    %v3041 = vunpack.c.l.b16 %v1605
    %v3042 = vpack.c.b16 %v3041, %v3040
    %v3044 = vsel %vm2352, %v3037, 0
    %v3047 = vsel %vm2352, %v3042, 0
    %3049 = vmatpush.bf16.xpose.msra.mxu0 0
    %3050 = vmatpush.bf16.xpose.msra.mxu0 0
    %3051 = vmatpush.bf16.xpose.msra.mxu0 0
    %3052 = vmatpush.bf16.xpose.msra.mxu0 0
    %3053 = vmatpush.bf16.xpose.msra.mxu0 0
    %3054 = vmatpush.bf16.xpose.msra.mxu0 0
    %3055 = vmatpush.bf16.xpose.msra.mxu0 0
    %3056 = vmatpush.bf16.xpose.msra.mxu0 %v3047
    %3057 = vmatmul.bf16.gmra.mxu0 %v3044
    %v3058 = vpop.f32.mrf.mxu0
    %v3059 = vadd.f32 0.0, %v3058
    %v3060 = vpop.f32.mrf.mxu0
    %v3061 = vadd.f32 0.0, %v3060
    %3062 = vdwg.mxu0
    %v3065 = vunpack.c.l.b16 %v1958
    %v3066 = vunpack.c.l.b16 %v1959
    %v3067 = vpack.c.b16 %v3066, %v3065
    %v3070 = vunpack.c.l.b16 %v2142
    %v3071 = vunpack.c.l.b16 %v2143
    %v3072 = vpack.c.b16 %v3071, %v3070
    %v3074 = vsel %vm2352, %v3067, 0
    %v3077 = vsel %vm2352, %v3072, 0
    %3079 = vmatpush.bf16.xpose.msra.mxu0 0
    %3080 = vmatpush.bf16.xpose.msra.mxu0 0
    %3081 = vmatpush.bf16.xpose.msra.mxu0 0
    %3082 = vmatpush.bf16.xpose.msra.mxu0 0
    %3083 = vmatpush.bf16.xpose.msra.mxu0 0
    %3084 = vmatpush.bf16.xpose.msra.mxu0 0
    %3085 = vmatpush.bf16.xpose.msra.mxu0 0
    %3086 = vmatpush.bf16.xpose.msra.mxu0 %v3077
    %3087 = vmatmul.bf16.gmra.mxu0 %v3074
    %v3088 = vpop.f32.mrf.mxu0
    %v3089 = vadd.f32 0.0, %v3088
    %v3090 = vpop.f32.mrf.mxu0
    %v3091 = vadd.f32 0.0, %v3090
    %3092 = vdwg.mxu0
    %v3095 = vunpack.c.l.b16 %v1960
    %v3096 = vunpack.c.l.b16 %v1961
    %v3097 = vpack.c.b16 %v3096, %v3095
    %v3100 = vunpack.c.l.b16 %v2144
    %v3101 = vunpack.c.l.b16 %v2145
    %v3102 = vpack.c.b16 %v3101, %v3100
    %v3104 = vsel %vm2352, %v3097, 0
    %v3107 = vsel %vm2352, %v3102, 0
    %3109 = vmatpush.bf16.xpose.msra.mxu0 0
    %3110 = vmatpush.bf16.xpose.msra.mxu0 0
    %3111 = vmatpush.bf16.xpose.msra.mxu0 0
    %3112 = vmatpush.bf16.xpose.msra.mxu0 0
    %3113 = vmatpush.bf16.xpose.msra.mxu0 0
    %3114 = vmatpush.bf16.xpose.msra.mxu0 0
    %3115 = vmatpush.bf16.xpose.msra.mxu0 0
    %3116 = vmatpush.bf16.xpose.msra.mxu0 %v3107
    %3117 = vmatmul.bf16.gmra.mxu0 %v3104
    %v3118 = vpop.f32.mrf.mxu0
    %v3119 = vadd.f32 0.0, %v3118
    %v3120 = vpop.f32.mrf.mxu0
    %v3121 = vadd.f32 0.0, %v3120
    %3122 = vdwg.mxu0
    %v3125 = vunpack.c.l.b16 %v1962
    %v3126 = vunpack.c.l.b16 %v1963
    %v3127 = vpack.c.b16 %v3126, %v3125
    %v3130 = vunpack.c.l.b16 %v2146
    %v3131 = vunpack.c.l.b16 %v2147
    %v3132 = vpack.c.b16 %v3131, %v3130
    %v3134 = vsel %vm2352, %v3127, 0
    %v3137 = vsel %vm2352, %v3132, 0
    %3139 = vmatpush.bf16.xpose.msra.mxu0 0
    %3140 = vmatpush.bf16.xpose.msra.mxu0 0
    %3141 = vmatpush.bf16.xpose.msra.mxu0 0
    %3142 = vmatpush.bf16.xpose.msra.mxu0 0
    %3143 = vmatpush.bf16.xpose.msra.mxu0 0
    %3144 = vmatpush.bf16.xpose.msra.mxu0 0
    %3145 = vmatpush.bf16.xpose.msra.mxu0 0
    %3146 = vmatpush.bf16.xpose.msra.mxu0 %v3137
    %3147 = vmatmul.bf16.gmra.mxu0 %v3134
    %v3148 = vpop.f32.mrf.mxu0
    %v3149 = vadd.f32 0.0, %v3148
    %v3150 = vpop.f32.mrf.mxu0
    %v3151 = vadd.f32 0.0, %v3150
    %3152 = vdwg.mxu0
    %v3155 = vunpack.c.l.b16 %v1964
    %v3156 = vunpack.c.l.b16 %v1965
    %v3157 = vpack.c.b16 %v3156, %v3155
    %v3160 = vunpack.c.l.b16 %v2148
    %v3161 = vunpack.c.l.b16 %v2149
    %v3162 = vpack.c.b16 %v3161, %v3160
    %v3164 = vsel %vm2352, %v3157, 0
    %v3167 = vsel %vm2352, %v3162, 0
    %3169 = vmatpush.bf16.xpose.msra.mxu0 0
    %3170 = vmatpush.bf16.xpose.msra.mxu0 0
    %3171 = vmatpush.bf16.xpose.msra.mxu0 0
    %3172 = vmatpush.bf16.xpose.msra.mxu0 0
    %3173 = vmatpush.bf16.xpose.msra.mxu0 0
    %3174 = vmatpush.bf16.xpose.msra.mxu0 0
    %3175 = vmatpush.bf16.xpose.msra.mxu0 0
    %3176 = vmatpush.bf16.xpose.msra.mxu0 %v3167
    %3177 = vmatmul.bf16.gmra.mxu0 %v3164
    %v3178 = vpop.f32.mrf.mxu0
    %v3179 = vadd.f32 0.0, %v3178
    %v3180 = vpop.f32.mrf.mxu0
    %v3181 = vadd.f32 0.0, %v3180
    %3182 = vdwg.mxu0
    %v3185 = vunpack.c.l.b16 %v1966
    %v3186 = vunpack.c.l.b16 %v1967
    %v3187 = vpack.c.b16 %v3186, %v3185
    %v3190 = vunpack.c.l.b16 %v2150
    %v3191 = vunpack.c.l.b16 %v2151
    %v3192 = vpack.c.b16 %v3191, %v3190
    %v3194 = vsel %vm2352, %v3187, 0
    %v3197 = vsel %vm2352, %v3192, 0
    %3199 = vmatpush.bf16.xpose.msra.mxu0 0
    %3200 = vmatpush.bf16.xpose.msra.mxu0 0
    %3201 = vmatpush.bf16.xpose.msra.mxu0 0
    %3202 = vmatpush.bf16.xpose.msra.mxu0 0
    %3203 = vmatpush.bf16.xpose.msra.mxu0 0
    %3204 = vmatpush.bf16.xpose.msra.mxu0 0
    %3205 = vmatpush.bf16.xpose.msra.mxu0 0
    %3206 = vmatpush.bf16.xpose.msra.mxu0 %v3197
    %3207 = vmatmul.bf16.gmra.mxu0 %v3194
    %v3208 = vpop.f32.mrf.mxu0
    %v3209 = vadd.f32 0.0, %v3208
    %v3210 = vpop.f32.mrf.mxu0
    %v3211 = vadd.f32 0.0, %v3210
    %3212 = vdwg.mxu0
    %v3215 = vunpack.c.l.b16 %v1968
    %v3216 = vunpack.c.l.b16 %v1969
    %v3217 = vpack.c.b16 %v3216, %v3215
    %v3220 = vunpack.c.l.b16 %v2152
    %v3221 = vunpack.c.l.b16 %v2153
    %v3222 = vpack.c.b16 %v3221, %v3220
    %v3224 = vsel %vm2352, %v3217, 0
    %v3227 = vsel %vm2352, %v3222, 0
    %3229 = vmatpush.bf16.xpose.msra.mxu0 0
    %3230 = vmatpush.bf16.xpose.msra.mxu0 0
    %3231 = vmatpush.bf16.xpose.msra.mxu0 0
    %3232 = vmatpush.bf16.xpose.msra.mxu0 0
    %3233 = vmatpush.bf16.xpose.msra.mxu0 0
    %3234 = vmatpush.bf16.xpose.msra.mxu0 0
    %3235 = vmatpush.bf16.xpose.msra.mxu0 0
    %3236 = vmatpush.bf16.xpose.msra.mxu0 %v3227
    %3237 = vmatmul.bf16.gmra.mxu0 %v3224
    %v3238 = vpop.f32.mrf.mxu0
    %v3239 = vadd.f32 0.0, %v3238
    %v3240 = vpop.f32.mrf.mxu0
    %v3241 = vadd.f32 0.0, %v3240
    %3242 = vdwg.mxu0
    %v3245 = vunpack.c.l.b16 %v1970
    %v3246 = vunpack.c.l.b16 %v1971
    %v3247 = vpack.c.b16 %v3246, %v3245
    %v3250 = vunpack.c.l.b16 %v2154
    %v3251 = vunpack.c.l.b16 %v2155
    %v3252 = vpack.c.b16 %v3251, %v3250
    %v3254 = vsel %vm2352, %v3247, 0
    %v3257 = vsel %vm2352, %v3252, 0
    %3259 = vmatpush.bf16.xpose.msra.mxu0 0
    %3260 = vmatpush.bf16.xpose.msra.mxu0 0
    %3261 = vmatpush.bf16.xpose.msra.mxu0 0
    %3262 = vmatpush.bf16.xpose.msra.mxu0 0
    %3263 = vmatpush.bf16.xpose.msra.mxu0 0
    %3264 = vmatpush.bf16.xpose.msra.mxu0 0
    %3265 = vmatpush.bf16.xpose.msra.mxu0 0
    %3266 = vmatpush.bf16.xpose.msra.mxu0 %v3257
    %3267 = vmatmul.bf16.gmra.mxu0 %v3254
    %v3268 = vpop.f32.mrf.mxu0
    %v3269 = vadd.f32 0.0, %v3268
    %v3270 = vpop.f32.mrf.mxu0
    %v3271 = vadd.f32 0.0, %v3270
    %3272 = vdwg.mxu0
    %v3275 = vunpack.c.l.b16 %v1972
    %v3276 = vunpack.c.l.b16 %v1973
    %v3277 = vpack.c.b16 %v3276, %v3275
    %v3280 = vunpack.c.l.b16 %v2156
    %v3281 = vunpack.c.l.b16 %v2157
    %v3282 = vpack.c.b16 %v3281, %v3280
    %v3284 = vsel %vm2352, %v3277, 0
    %v3287 = vsel %vm2352, %v3282, 0
    %3289 = vmatpush.bf16.xpose.msra.mxu0 0
    %3290 = vmatpush.bf16.xpose.msra.mxu0 0
    %3291 = vmatpush.bf16.xpose.msra.mxu0 0
    %3292 = vmatpush.bf16.xpose.msra.mxu0 0
    %3293 = vmatpush.bf16.xpose.msra.mxu0 0
    %3294 = vmatpush.bf16.xpose.msra.mxu0 0
    %3295 = vmatpush.bf16.xpose.msra.mxu0 0
    %3296 = vmatpush.bf16.xpose.msra.mxu0 %v3287
    %3297 = vmatmul.bf16.gmra.mxu0 %v3284
    %v3298 = vpop.f32.mrf.mxu0
    %v3299 = vadd.f32 0.0, %v3298
    %v3300 = vpop.f32.mrf.mxu0
    %v3301 = vadd.f32 0.0, %v3300
    %3302 = vdwg.mxu0
    %vm3303 = vcmask 130048
    %v3304 = vsel %vm3303, %v2369, -inf
    %3305 = vmax.xlane.f32.xlu0 %v3304
    %v3306 = vpop.xlane.xlu0 %3305
    %v3307 = vsel %vm3303, %v2371, -inf
    %3308 = vmax.xlane.f32.xlu0 %v3307
    %v3309 = vpop.xlane.xlu0 %3308
    %v3310 = vsel %vm3303, %v2399, -inf
    %3311 = vmax.xlane.f32.xlu0 %v3310
    %v3312 = vpop.xlane.xlu0 %3311
    %v3313 = vsel %vm3303, %v2401, -inf
    %3314 = vmax.xlane.f32.xlu0 %v3313
    %v3315 = vpop.xlane.xlu0 %3314
    %v3316 = vsel %vm3303, %v2429, -inf
    %3317 = vmax.xlane.f32.xlu0 %v3316
    %v3318 = vpop.xlane.xlu0 %3317
    %v3319 = vsel %vm3303, %v2431, -inf
    %3320 = vmax.xlane.f32.xlu0 %v3319
    %v3321 = vpop.xlane.xlu0 %3320
    %v3322 = vsel %vm3303, %v2459, -inf
    %3323 = vmax.xlane.f32.xlu0 %v3322
    %v3324 = vpop.xlane.xlu0 %3323
    %v3325 = vsel %vm3303, %v2461, -inf
    %3326 = vmax.xlane.f32.xlu0 %v3325
    %v3327 = vpop.xlane.xlu0 %3326
    %v3328 = vsel %vm3303, %v2489, -inf
    %3329 = vmax.xlane.f32.xlu0 %v3328
    %v3330 = vpop.xlane.xlu0 %3329
    %v3331 = vsel %vm3303, %v2491, -inf
    %3332 = vmax.xlane.f32.xlu0 %v3331
    %v3333 = vpop.xlane.xlu0 %3332
    %v3334 = vsel %vm3303, %v2519, -inf
    %3335 = vmax.xlane.f32.xlu0 %v3334
    %v3336 = vpop.xlane.xlu0 %3335
    %v3337 = vsel %vm3303, %v2521, -inf
    %3338 = vmax.xlane.f32.xlu0 %v3337
    %v3339 = vpop.xlane.xlu0 %3338
    %v3340 = vsel %vm3303, %v2549, -inf
    %3341 = vmax.xlane.f32.xlu0 %v3340
    %v3342 = vpop.xlane.xlu0 %3341
    %v3343 = vsel %vm3303, %v2551, -inf
    %3344 = vmax.xlane.f32.xlu0 %v3343
    %v3345 = vpop.xlane.xlu0 %3344
    %v3346 = vsel %vm3303, %v2579, -inf
    %3347 = vmax.xlane.f32.xlu0 %v3346
    %v3348 = vpop.xlane.xlu0 %3347
    %v3349 = vsel %vm3303, %v2581, -inf
    %3350 = vmax.xlane.f32.xlu0 %v3349
    %v3351 = vpop.xlane.xlu0 %3350
    %v3352 = vsel %vm3303, %v2609, -inf
    %3353 = vmax.xlane.f32.xlu0 %v3352
    %v3354 = vpop.xlane.xlu0 %3353
    %v3355 = vsel %vm3303, %v2611, -inf
    %3356 = vmax.xlane.f32.xlu0 %v3355
    %v3357 = vpop.xlane.xlu0 %3356
    %v3358 = vsel %vm3303, %v2639, -inf
    %3359 = vmax.xlane.f32.xlu0 %v3358
    %v3360 = vpop.xlane.xlu0 %3359
    %v3361 = vsel %vm3303, %v2641, -inf
    %3362 = vmax.xlane.f32.xlu0 %v3361
    %v3363 = vpop.xlane.xlu0 %3362
    %v3364 = vsel %vm3303, %v2669, -inf
    %3365 = vmax.xlane.f32.xlu0 %v3364
    %v3366 = vpop.xlane.xlu0 %3365
    %v3367 = vsel %vm3303, %v2671, -inf
    %3368 = vmax.xlane.f32.xlu0 %v3367
    %v3369 = vpop.xlane.xlu0 %3368
    %v3370 = vsel %vm3303, %v2699, -inf
    %3371 = vmax.xlane.f32.xlu0 %v3370
    %v3372 = vpop.xlane.xlu0 %3371
    %v3373 = vsel %vm3303, %v2701, -inf
    %3374 = vmax.xlane.f32.xlu0 %v3373
    %v3375 = vpop.xlane.xlu0 %3374
    %v3376 = vsel %vm3303, %v2729, -inf
    %3377 = vmax.xlane.f32.xlu0 %v3376
    %v3378 = vpop.xlane.xlu0 %3377
    %v3379 = vsel %vm3303, %v2731, -inf
    %3380 = vmax.xlane.f32.xlu0 %v3379
    %v3381 = vpop.xlane.xlu0 %3380
    %v3382 = vsel %vm3303, %v2759, -inf
    %3383 = vmax.xlane.f32.xlu0 %v3382
    %v3384 = vpop.xlane.xlu0 %3383
    %v3385 = vsel %vm3303, %v2761, -inf
    %3386 = vmax.xlane.f32.xlu0 %v3385
    %v3387 = vpop.xlane.xlu0 %3386
    %v3388 = vsel %vm3303, %v2789, -inf
    %3389 = vmax.xlane.f32.xlu0 %v3388
    %v3390 = vpop.xlane.xlu0 %3389
    %v3391 = vsel %vm3303, %v2791, -inf
    %3392 = vmax.xlane.f32.xlu0 %v3391
    %v3393 = vpop.xlane.xlu0 %3392
    %v3394 = vsel %vm3303, %v2819, -inf
    %3395 = vmax.xlane.f32.xlu0 %v3394
    %v3396 = vpop.xlane.xlu0 %3395
    %v3397 = vsel %vm3303, %v2821, -inf
    %3398 = vmax.xlane.f32.xlu0 %v3397
    %v3399 = vpop.xlane.xlu0 %3398
    %v3400 = vsel %vm3303, %v2849, -inf
    %3401 = vmax.xlane.f32.xlu0 %v3400
    %v3402 = vpop.xlane.xlu0 %3401
    %v3403 = vsel %vm3303, %v2851, -inf
    %3404 = vmax.xlane.f32.xlu0 %v3403
    %v3405 = vpop.xlane.xlu0 %3404
    %v3406 = vsel %vm3303, %v2879, -inf
    %3407 = vmax.xlane.f32.xlu0 %v3406
    %v3408 = vpop.xlane.xlu0 %3407
    %v3409 = vsel %vm3303, %v2881, -inf
    %3410 = vmax.xlane.f32.xlu0 %v3409
    %v3411 = vpop.xlane.xlu0 %3410
    %v3412 = vsel %vm3303, %v2909, -inf
    %3413 = vmax.xlane.f32.xlu0 %v3412
    %v3414 = vpop.xlane.xlu0 %3413
    %v3415 = vsel %vm3303, %v2911, -inf
    %3416 = vmax.xlane.f32.xlu0 %v3415
    %v3417 = vpop.xlane.xlu0 %3416
    %v3418 = vsel %vm3303, %v2939, -inf
    %3419 = vmax.xlane.f32.xlu0 %v3418
    %v3420 = vpop.xlane.xlu0 %3419
    %v3421 = vsel %vm3303, %v2941, -inf
    %3422 = vmax.xlane.f32.xlu0 %v3421
    %v3423 = vpop.xlane.xlu0 %3422
    %v3424 = vsel %vm3303, %v2969, -inf
    %3425 = vmax.xlane.f32.xlu0 %v3424
    %v3426 = vpop.xlane.xlu0 %3425
    %v3427 = vsel %vm3303, %v2971, -inf
    %3428 = vmax.xlane.f32.xlu0 %v3427
    %v3429 = vpop.xlane.xlu0 %3428
    %v3430 = vsel %vm3303, %v2999, -inf
    %3431 = vmax.xlane.f32.xlu0 %v3430
    %v3432 = vpop.xlane.xlu0 %3431
    %v3433 = vsel %vm3303, %v3001, -inf
    %3434 = vmax.xlane.f32.xlu0 %v3433
    %v3435 = vpop.xlane.xlu0 %3434
    %v3436 = vsel %vm3303, %v3029, -inf
    %3437 = vmax.xlane.f32.xlu0 %v3436
    %v3438 = vpop.xlane.xlu0 %3437
    %v3439 = vsel %vm3303, %v3031, -inf
    %3440 = vmax.xlane.f32.xlu0 %v3439
    %v3441 = vpop.xlane.xlu0 %3440
    %v3442 = vsel %vm3303, %v3059, -inf
    %3443 = vmax.xlane.f32.xlu0 %v3442
    %v3444 = vpop.xlane.xlu0 %3443
    %v3445 = vsel %vm3303, %v3061, -inf
    %3446 = vmax.xlane.f32.xlu0 %v3445
    %v3447 = vpop.xlane.xlu0 %3446
    %v3448 = vsel %vm3303, %v3089, -inf
    %3449 = vmax.xlane.f32.xlu0 %v3448
    %v3450 = vpop.xlane.xlu0 %3449
    %v3451 = vsel %vm3303, %v3091, -inf
    %3452 = vmax.xlane.f32.xlu0 %v3451
    %v3453 = vpop.xlane.xlu0 %3452
    %v3454 = vsel %vm3303, %v3119, -inf
    %3455 = vmax.xlane.f32.xlu0 %v3454
    %v3456 = vpop.xlane.xlu0 %3455
    %v3457 = vsel %vm3303, %v3121, -inf
    %3458 = vmax.xlane.f32.xlu0 %v3457
    %v3459 = vpop.xlane.xlu0 %3458
    %v3460 = vsel %vm3303, %v3149, -inf
    %3461 = vmax.xlane.f32.xlu0 %v3460
    %v3462 = vpop.xlane.xlu0 %3461
    %v3463 = vsel %vm3303, %v3151, -inf
    %3464 = vmax.xlane.f32.xlu0 %v3463
    %v3465 = vpop.xlane.xlu0 %3464
    %v3466 = vsel %vm3303, %v3179, -inf
    %3467 = vmax.xlane.f32.xlu0 %v3466
    %v3468 = vpop.xlane.xlu0 %3467
    %v3469 = vsel %vm3303, %v3181, -inf
    %3470 = vmax.xlane.f32.xlu0 %v3469
    %v3471 = vpop.xlane.xlu0 %3470
    %v3472 = vsel %vm3303, %v3209, -inf
    %3473 = vmax.xlane.f32.xlu0 %v3472
    %v3474 = vpop.xlane.xlu0 %3473
    %v3475 = vsel %vm3303, %v3211, -inf
    %3476 = vmax.xlane.f32.xlu0 %v3475
    %v3477 = vpop.xlane.xlu0 %3476
    %v3478 = vsel %vm3303, %v3239, -inf
    %3479 = vmax.xlane.f32.xlu0 %v3478
    %v3480 = vpop.xlane.xlu0 %3479
    %v3481 = vsel %vm3303, %v3241, -inf
    %3482 = vmax.xlane.f32.xlu0 %v3481
    %v3483 = vpop.xlane.xlu0 %3482
    %v3484 = vsel %vm3303, %v3269, -inf
    %3485 = vmax.xlane.f32.xlu0 %v3484
    %v3486 = vpop.xlane.xlu0 %3485
    %v3487 = vsel %vm3303, %v3271, -inf
    %3488 = vmax.xlane.f32.xlu0 %v3487
    %v3489 = vpop.xlane.xlu0 %3488
    %v3490 = vsel %vm3303, %v3299, -inf
    %3491 = vmax.xlane.f32.xlu0 %v3490
    %v3492 = vpop.xlane.xlu0 %3491
    %v3493 = vsel %vm3303, %v3301, -inf
    %3494 = vmax.xlane.f32.xlu0 %v3493
    %v3495 = vpop.xlane.xlu0 %3494
    %v3496 = vsub.f32 %v2369, %v3306
    %v3497 = vsub.f32 %v2371, %v3309
    %v3498 = vsub.f32 %v2399, %v3312
    %v3499 = vsub.f32 %v2401, %v3315
    %v3500 = vsub.f32 %v2429, %v3318
    %v3501 = vsub.f32 %v2431, %v3321
    %v3502 = vsub.f32 %v2459, %v3324
    %v3503 = vsub.f32 %v2461, %v3327
    %v3504 = vsub.f32 %v2489, %v3330
    %v3505 = vsub.f32 %v2491, %v3333
    %v3506 = vsub.f32 %v2519, %v3336
    %v3507 = vsub.f32 %v2521, %v3339
    %v3508 = vsub.f32 %v2549, %v3342
    %v3509 = vsub.f32 %v2551, %v3345
    %v3510 = vsub.f32 %v2579, %v3348
    %v3511 = vsub.f32 %v2581, %v3351
    %v3512 = vsub.f32 %v2609, %v3354
    %v3513 = vsub.f32 %v2611, %v3357
    %v3514 = vsub.f32 %v2639, %v3360
    %v3515 = vsub.f32 %v2641, %v3363
    %v3516 = vsub.f32 %v2669, %v3366
    %v3517 = vsub.f32 %v2671, %v3369
    %v3518 = vsub.f32 %v2699, %v3372
    %v3519 = vsub.f32 %v2701, %v3375
    %v3520 = vsub.f32 %v2729, %v3378
    %v3521 = vsub.f32 %v2731, %v3381
    %v3522 = vsub.f32 %v2759, %v3384
    %v3523 = vsub.f32 %v2761, %v3387
    %v3524 = vsub.f32 %v2789, %v3390
    %v3525 = vsub.f32 %v2791, %v3393
    %v3526 = vsub.f32 %v2819, %v3396
    %v3527 = vsub.f32 %v2821, %v3399
    %v3528 = vsub.f32 %v2849, %v3402
    %v3529 = vsub.f32 %v2851, %v3405
    %v3530 = vsub.f32 %v2879, %v3408
    %v3531 = vsub.f32 %v2881, %v3411
    %v3532 = vsub.f32 %v2909, %v3414
    %v3533 = vsub.f32 %v2911, %v3417
    %v3534 = vsub.f32 %v2939, %v3420
    %v3535 = vsub.f32 %v2941, %v3423
    %v3536 = vsub.f32 %v2969, %v3426
    %v3537 = vsub.f32 %v2971, %v3429
    %v3538 = vsub.f32 %v2999, %v3432
    %v3539 = vsub.f32 %v3001, %v3435
    %v3540 = vsub.f32 %v3029, %v3438
    %v3541 = vsub.f32 %v3031, %v3441
    %v3542 = vsub.f32 %v3059, %v3444
    %v3543 = vsub.f32 %v3061, %v3447
    %v3544 = vsub.f32 %v3089, %v3450
    %v3545 = vsub.f32 %v3091, %v3453
    %v3546 = vsub.f32 %v3119, %v3456
    %v3547 = vsub.f32 %v3121, %v3459
    %v3548 = vsub.f32 %v3149, %v3462
    %v3549 = vsub.f32 %v3151, %v3465
    %v3550 = vsub.f32 %v3179, %v3468
    %v3551 = vsub.f32 %v3181, %v3471
    %v3552 = vsub.f32 %v3209, %v3474
    %v3553 = vsub.f32 %v3211, %v3477
    %v3554 = vsub.f32 %v3239, %v3480
    %v3555 = vsub.f32 %v3241, %v3483
    %v3556 = vsub.f32 %v3269, %v3486
    %v3557 = vsub.f32 %v3271, %v3489
    %v3558 = vsub.f32 %v3299, %v3492
    %v3559 = vsub.f32 %v3301, %v3495
    %v3560 = vmul.f32 %v3496, 1.442695
    %v3561 = vpow.pop %v3560
    %v3562 = vmul.f32 %v3497, 1.442695
    %v3563 = vpow.pop %v3562
    %v3564 = vmul.f32 %v3498, 1.442695
    %v3565 = vpow.pop %v3564
    %v3566 = vmul.f32 %v3499, 1.442695
    %v3567 = vpow.pop %v3566
    %v3568 = vmul.f32 %v3500, 1.442695
    %v3569 = vpow.pop %v3568
    %v3570 = vmul.f32 %v3501, 1.442695
    %v3571 = vpow.pop %v3570
    %v3572 = vmul.f32 %v3502, 1.442695
    %v3573 = vpow.pop %v3572
    %v3574 = vmul.f32 %v3503, 1.442695
    %v3575 = vpow.pop %v3574
    %v3576 = vmul.f32 %v3504, 1.442695
    %v3577 = vpow.pop %v3576
    %v3578 = vmul.f32 %v3505, 1.442695
    %v3579 = vpow.pop %v3578
    %v3580 = vmul.f32 %v3506, 1.442695
    %v3581 = vpow.pop %v3580
    %v3582 = vmul.f32 %v3507, 1.442695
    %v3583 = vpow.pop %v3582
    %v3584 = vmul.f32 %v3508, 1.442695
    %v3585 = vpow.pop %v3584
    %v3586 = vmul.f32 %v3509, 1.442695
    %v3587 = vpow.pop %v3586
    %v3588 = vmul.f32 %v3510, 1.442695
    %v3589 = vpow.pop %v3588
    %v3590 = vmul.f32 %v3511, 1.442695
    %v3591 = vpow.pop %v3590
    %v3592 = vmul.f32 %v3512, 1.442695
    %v3593 = vpow.pop %v3592
    %v3594 = vmul.f32 %v3513, 1.442695
    %v3595 = vpow.pop %v3594
    %v3596 = vmul.f32 %v3514, 1.442695
    %v3597 = vpow.pop %v3596
    %v3598 = vmul.f32 %v3515, 1.442695
    %v3599 = vpow.pop %v3598
    %v3600 = vmul.f32 %v3516, 1.442695
    %v3601 = vpow.pop %v3600
    %v3602 = vmul.f32 %v3517, 1.442695
    %v3603 = vpow.pop %v3602
    %v3604 = vmul.f32 %v3518, 1.442695
    %v3605 = vpow.pop %v3604
    %v3606 = vmul.f32 %v3519, 1.442695
    %v3607 = vpow.pop %v3606
    %v3608 = vmul.f32 %v3520, 1.442695
    %v3609 = vpow.pop %v3608
    %v3610 = vmul.f32 %v3521, 1.442695
    %v3611 = vpow.pop %v3610
    %v3612 = vmul.f32 %v3522, 1.442695
    %v3613 = vpow.pop %v3612
    %v3614 = vmul.f32 %v3523, 1.442695
    %v3615 = vpow.pop %v3614
    %v3616 = vmul.f32 %v3524, 1.442695
    %v3617 = vpow.pop %v3616
    %v3618 = vmul.f32 %v3525, 1.442695
    %v3619 = vpow.pop %v3618
    %v3620 = vmul.f32 %v3526, 1.442695
    %v3621 = vpow.pop %v3620
    %v3622 = vmul.f32 %v3527, 1.442695
    %v3623 = vpow.pop %v3622
    %v3624 = vmul.f32 %v3528, 1.442695
    %v3625 = vpow.pop %v3624
    %v3626 = vmul.f32 %v3529, 1.442695
    %v3627 = vpow.pop %v3626
    %v3628 = vmul.f32 %v3530, 1.442695
    %v3629 = vpow.pop %v3628
    %v3630 = vmul.f32 %v3531, 1.442695
    %v3631 = vpow.pop %v3630
    %v3632 = vmul.f32 %v3532, 1.442695
    %v3633 = vpow.pop %v3632
    %v3634 = vmul.f32 %v3533, 1.442695
    %v3635 = vpow.pop %v3634
    %v3636 = vmul.f32 %v3534, 1.442695
    %v3637 = vpow.pop %v3636
    %v3638 = vmul.f32 %v3535, 1.442695
    %v3639 = vpow.pop %v3638
    %v3640 = vmul.f32 %v3536, 1.442695
    %v3641 = vpow.pop %v3640
    %v3642 = vmul.f32 %v3537, 1.442695
    %v3643 = vpow.pop %v3642
    %v3644 = vmul.f32 %v3538, 1.442695
    %v3645 = vpow.pop %v3644
    %v3646 = vmul.f32 %v3539, 1.442695
    %v3647 = vpow.pop %v3646
    %v3648 = vmul.f32 %v3540, 1.442695
    %v3649 = vpow.pop %v3648
    %v3650 = vmul.f32 %v3541, 1.442695
    %v3651 = vpow.pop %v3650
    %v3652 = vmul.f32 %v3542, 1.442695
    %v3653 = vpow.pop %v3652
    %v3654 = vmul.f32 %v3543, 1.442695
    %v3655 = vpow.pop %v3654
    %v3656 = vmul.f32 %v3544, 1.442695
    %v3657 = vpow.pop %v3656
    %v3658 = vmul.f32 %v3545, 1.442695
    %v3659 = vpow.pop %v3658
    %v3660 = vmul.f32 %v3546, 1.442695
    %v3661 = vpow.pop %v3660
    %v3662 = vmul.f32 %v3547, 1.442695
    %v3663 = vpow.pop %v3662
    %v3664 = vmul.f32 %v3548, 1.442695
    %v3665 = vpow.pop %v3664
    %v3666 = vmul.f32 %v3549, 1.442695
    %v3667 = vpow.pop %v3666
    %v3668 = vmul.f32 %v3550, 1.442695
    %v3669 = vpow.pop %v3668
    %v3670 = vmul.f32 %v3551, 1.442695
    %v3671 = vpow.pop %v3670
    %v3672 = vmul.f32 %v3552, 1.442695
    %v3673 = vpow.pop %v3672
    %v3674 = vmul.f32 %v3553, 1.442695
    %v3675 = vpow.pop %v3674
    %v3676 = vmul.f32 %v3554, 1.442695
    %v3677 = vpow.pop %v3676
    %v3678 = vmul.f32 %v3555, 1.442695
    %v3679 = vpow.pop %v3678
    %v3680 = vmul.f32 %v3556, 1.442695
    %v3681 = vpow.pop %v3680
    %v3682 = vmul.f32 %v3557, 1.442695
    %v3683 = vpow.pop %v3682
    %v3684 = vmul.f32 %v3558, 1.442695
    %v3685 = vpow.pop %v3684
    %v3686 = vmul.f32 %v3559, 1.442695
    %v3687 = vpow.pop %v3686
    %v3688 = vsel %vm3303, %v3561, 0.0
    %3689 = vadd.xlane.f32.xlu0 %v3688
    %v3690 = vpop.xlane.xlu0 %3689
    %v3691 = vsel %vm3303, %v3563, 0.0
    %3692 = vadd.xlane.f32.xlu0 %v3691
    %v3693 = vpop.xlane.xlu0 %3692
    %v3694 = vsel %vm3303, %v3565, 0.0
    %3695 = vadd.xlane.f32.xlu0 %v3694
    %v3696 = vpop.xlane.xlu0 %3695
    %v3697 = vsel %vm3303, %v3567, 0.0
    %3698 = vadd.xlane.f32.xlu0 %v3697
    %v3699 = vpop.xlane.xlu0 %3698
    %v3700 = vsel %vm3303, %v3569, 0.0
    %3701 = vadd.xlane.f32.xlu0 %v3700
    %v3702 = vpop.xlane.xlu0 %3701
    %v3703 = vsel %vm3303, %v3571, 0.0
    %3704 = vadd.xlane.f32.xlu0 %v3703
    %v3705 = vpop.xlane.xlu0 %3704
    %v3706 = vsel %vm3303, %v3573, 0.0
    %3707 = vadd.xlane.f32.xlu0 %v3706
    %v3708 = vpop.xlane.xlu0 %3707
    %v3709 = vsel %vm3303, %v3575, 0.0
    %3710 = vadd.xlane.f32.xlu0 %v3709
    %v3711 = vpop.xlane.xlu0 %3710
    %v3712 = vsel %vm3303, %v3577, 0.0
    %3713 = vadd.xlane.f32.xlu0 %v3712
    %v3714 = vpop.xlane.xlu0 %3713
    %v3715 = vsel %vm3303, %v3579, 0.0
    %3716 = vadd.xlane.f32.xlu0 %v3715
    %v3717 = vpop.xlane.xlu0 %3716
    %v3718 = vsel %vm3303, %v3581, 0.0
    %3719 = vadd.xlane.f32.xlu0 %v3718
    %v3720 = vpop.xlane.xlu0 %3719
    %v3721 = vsel %vm3303, %v3583, 0.0
    %3722 = vadd.xlane.f32.xlu0 %v3721
    %v3723 = vpop.xlane.xlu0 %3722
    %v3724 = vsel %vm3303, %v3585, 0.0
    %3725 = vadd.xlane.f32.xlu0 %v3724
    %v3726 = vpop.xlane.xlu0 %3725
    %v3727 = vsel %vm3303, %v3587, 0.0
    %3728 = vadd.xlane.f32.xlu0 %v3727
    %v3729 = vpop.xlane.xlu0 %3728
    %v3730 = vsel %vm3303, %v3589, 0.0
    %3731 = vadd.xlane.f32.xlu0 %v3730
    %v3732 = vpop.xlane.xlu0 %3731
    %v3733 = vsel %vm3303, %v3591, 0.0
    %3734 = vadd.xlane.f32.xlu0 %v3733
    %v3735 = vpop.xlane.xlu0 %3734
    %v3736 = vsel %vm3303, %v3593, 0.0
    %3737 = vadd.xlane.f32.xlu0 %v3736
    %v3738 = vpop.xlane.xlu0 %3737
    %v3739 = vsel %vm3303, %v3595, 0.0
    %3740 = vadd.xlane.f32.xlu0 %v3739
    %v3741 = vpop.xlane.xlu0 %3740
    %v3742 = vsel %vm3303, %v3597, 0.0
    %3743 = vadd.xlane.f32.xlu0 %v3742
    %v3744 = vpop.xlane.xlu0 %3743
    %v3745 = vsel %vm3303, %v3599, 0.0
    %3746 = vadd.xlane.f32.xlu0 %v3745
    %v3747 = vpop.xlane.xlu0 %3746
    %v3748 = vsel %vm3303, %v3601, 0.0
    %3749 = vadd.xlane.f32.xlu0 %v3748
    %v3750 = vpop.xlane.xlu0 %3749
    %v3751 = vsel %vm3303, %v3603, 0.0
    %3752 = vadd.xlane.f32.xlu0 %v3751
    %v3753 = vpop.xlane.xlu0 %3752
    %v3754 = vsel %vm3303, %v3605, 0.0
    %3755 = vadd.xlane.f32.xlu0 %v3754
    %v3756 = vpop.xlane.xlu0 %3755
    %v3757 = vsel %vm3303, %v3607, 0.0
    %3758 = vadd.xlane.f32.xlu0 %v3757
    %v3759 = vpop.xlane.xlu0 %3758
    %v3760 = vsel %vm3303, %v3609, 0.0
    %3761 = vadd.xlane.f32.xlu0 %v3760
    %v3762 = vpop.xlane.xlu0 %3761
    %v3763 = vsel %vm3303, %v3611, 0.0
    %3764 = vadd.xlane.f32.xlu0 %v3763
    %v3765 = vpop.xlane.xlu0 %3764
    %v3766 = vsel %vm3303, %v3613, 0.0
    %3767 = vadd.xlane.f32.xlu0 %v3766
    %v3768 = vpop.xlane.xlu0 %3767
    %v3769 = vsel %vm3303, %v3615, 0.0
    %3770 = vadd.xlane.f32.xlu0 %v3769
    %v3771 = vpop.xlane.xlu0 %3770
    %v3772 = vsel %vm3303, %v3617, 0.0
    %3773 = vadd.xlane.f32.xlu0 %v3772
    %v3774 = vpop.xlane.xlu0 %3773
    %v3775 = vsel %vm3303, %v3619, 0.0
    %3776 = vadd.xlane.f32.xlu0 %v3775
    %v3777 = vpop.xlane.xlu0 %3776
    %v3778 = vsel %vm3303, %v3621, 0.0
    %3779 = vadd.xlane.f32.xlu0 %v3778
    %v3780 = vpop.xlane.xlu0 %3779
    %v3781 = vsel %vm3303, %v3623, 0.0
    %3782 = vadd.xlane.f32.xlu0 %v3781
    %v3783 = vpop.xlane.xlu0 %3782
    %v3784 = vsel %vm3303, %v3625, 0.0
    %3785 = vadd.xlane.f32.xlu0 %v3784
    %v3786 = vpop.xlane.xlu0 %3785
    %v3787 = vsel %vm3303, %v3627, 0.0
    %3788 = vadd.xlane.f32.xlu0 %v3787
    %v3789 = vpop.xlane.xlu0 %3788
    %v3790 = vsel %vm3303, %v3629, 0.0
    %3791 = vadd.xlane.f32.xlu0 %v3790
    %v3792 = vpop.xlane.xlu0 %3791
    %v3793 = vsel %vm3303, %v3631, 0.0
    %3794 = vadd.xlane.f32.xlu0 %v3793
    %v3795 = vpop.xlane.xlu0 %3794
    %v3796 = vsel %vm3303, %v3633, 0.0
    %3797 = vadd.xlane.f32.xlu0 %v3796
    %v3798 = vpop.xlane.xlu0 %3797
    %v3799 = vsel %vm3303, %v3635, 0.0
    %3800 = vadd.xlane.f32.xlu0 %v3799
    %v3801 = vpop.xlane.xlu0 %3800
    %v3802 = vsel %vm3303, %v3637, 0.0
    %3803 = vadd.xlane.f32.xlu0 %v3802
    %v3804 = vpop.xlane.xlu0 %3803
    %v3805 = vsel %vm3303, %v3639, 0.0
    %3806 = vadd.xlane.f32.xlu0 %v3805
    %v3807 = vpop.xlane.xlu0 %3806
    %v3808 = vsel %vm3303, %v3641, 0.0
    %3809 = vadd.xlane.f32.xlu0 %v3808
    %v3810 = vpop.xlane.xlu0 %3809
    %v3811 = vsel %vm3303, %v3643, 0.0
    %3812 = vadd.xlane.f32.xlu0 %v3811
    %v3813 = vpop.xlane.xlu0 %3812
    %v3814 = vsel %vm3303, %v3645, 0.0
    %3815 = vadd.xlane.f32.xlu0 %v3814
    %v3816 = vpop.xlane.xlu0 %3815
    %v3817 = vsel %vm3303, %v3647, 0.0
    %3818 = vadd.xlane.f32.xlu0 %v3817
    %v3819 = vpop.xlane.xlu0 %3818
    %v3820 = vsel %vm3303, %v3649, 0.0
    %3821 = vadd.xlane.f32.xlu0 %v3820
    %v3822 = vpop.xlane.xlu0 %3821
    %v3823 = vsel %vm3303, %v3651, 0.0
    %3824 = vadd.xlane.f32.xlu0 %v3823
    %v3825 = vpop.xlane.xlu0 %3824
    %v3826 = vsel %vm3303, %v3653, 0.0
    %3827 = vadd.xlane.f32.xlu0 %v3826
    %v3828 = vpop.xlane.xlu0 %3827
    %v3829 = vsel %vm3303, %v3655, 0.0
    %3830 = vadd.xlane.f32.xlu0 %v3829
    %v3831 = vpop.xlane.xlu0 %3830
    %v3832 = vsel %vm3303, %v3657, 0.0
    %3833 = vadd.xlane.f32.xlu0 %v3832
    %v3834 = vpop.xlane.xlu0 %3833
    %v3835 = vsel %vm3303, %v3659, 0.0
    %3836 = vadd.xlane.f32.xlu0 %v3835
    %v3837 = vpop.xlane.xlu0 %3836
    %v3838 = vsel %vm3303, %v3661, 0.0
    %3839 = vadd.xlane.f32.xlu0 %v3838
    %v3840 = vpop.xlane.xlu0 %3839
    %v3841 = vsel %vm3303, %v3663, 0.0
    %3842 = vadd.xlane.f32.xlu0 %v3841
    %v3843 = vpop.xlane.xlu0 %3842
    %v3844 = vsel %vm3303, %v3665, 0.0
    %3845 = vadd.xlane.f32.xlu0 %v3844
    %v3846 = vpop.xlane.xlu0 %3845
    %v3847 = vsel %vm3303, %v3667, 0.0
    %3848 = vadd.xlane.f32.xlu0 %v3847
    %v3849 = vpop.xlane.xlu0 %3848
    %v3850 = vsel %vm3303, %v3669, 0.0
    %3851 = vadd.xlane.f32.xlu0 %v3850
    %v3852 = vpop.xlane.xlu0 %3851
    %v3853 = vsel %vm3303, %v3671, 0.0
    %3854 = vadd.xlane.f32.xlu0 %v3853
    %v3855 = vpop.xlane.xlu0 %3854
    %v3856 = vsel %vm3303, %v3673, 0.0
    %3857 = vadd.xlane.f32.xlu0 %v3856
    %v3858 = vpop.xlane.xlu0 %3857
    %v3859 = vsel %vm3303, %v3675, 0.0
    %3860 = vadd.xlane.f32.xlu0 %v3859
    %v3861 = vpop.xlane.xlu0 %3860
    %v3862 = vsel %vm3303, %v3677, 0.0
    %3863 = vadd.xlane.f32.xlu0 %v3862
    %v3864 = vpop.xlane.xlu0 %3863
    %v3865 = vsel %vm3303, %v3679, 0.0
    %3866 = vadd.xlane.f32.xlu0 %v3865
    %v3867 = vpop.xlane.xlu0 %3866
    %v3868 = vsel %vm3303, %v3681, 0.0
    %3869 = vadd.xlane.f32.xlu0 %v3868
    %v3870 = vpop.xlane.xlu0 %3869
    %v3871 = vsel %vm3303, %v3683, 0.0
    %3872 = vadd.xlane.f32.xlu0 %v3871
    %v3873 = vpop.xlane.xlu0 %3872
    %v3874 = vsel %vm3303, %v3685, 0.0
    %3875 = vadd.xlane.f32.xlu0 %v3874
    %v3876 = vpop.xlane.xlu0 %3875
    %v3877 = vsel %vm3303, %v3687, 0.0
    %3878 = vadd.xlane.f32.xlu0 %v3877
    %v3879 = vpop.xlane.xlu0 %3878
    %v3880 = vpack.c.bf16 %v3561, %v3561
    %v3881 = vpack.c.bf16 %v3563, %v3563
    %v3882 = vpack.c.bf16 %v3565, %v3565
    %v3883 = vpack.c.bf16 %v3567, %v3567
    %v3884 = vpack.c.bf16 %v3569, %v3569
    %v3885 = vpack.c.bf16 %v3571, %v3571
    %v3886 = vpack.c.bf16 %v3573, %v3573
    %v3887 = vpack.c.bf16 %v3575, %v3575
    %v3888 = vpack.c.bf16 %v3577, %v3577
    %v3889 = vpack.c.bf16 %v3579, %v3579
    %v3890 = vpack.c.bf16 %v3581, %v3581
    %v3891 = vpack.c.bf16 %v3583, %v3583
    %v3892 = vpack.c.bf16 %v3585, %v3585
    %v3893 = vpack.c.bf16 %v3587, %v3587
    %v3894 = vpack.c.bf16 %v3589, %v3589
    %v3895 = vpack.c.bf16 %v3591, %v3591
    %v3896 = vpack.c.bf16 %v3593, %v3593
    %v3897 = vpack.c.bf16 %v3595, %v3595
    %v3898 = vpack.c.bf16 %v3597, %v3597
    %v3899 = vpack.c.bf16 %v3599, %v3599
    %v3900 = vpack.c.bf16 %v3601, %v3601
    %v3901 = vpack.c.bf16 %v3603, %v3603
    %v3902 = vpack.c.bf16 %v3605, %v3605
    %v3903 = vpack.c.bf16 %v3607, %v3607
    %v3904 = vpack.c.bf16 %v3609, %v3609
    %v3905 = vpack.c.bf16 %v3611, %v3611
    %v3906 = vpack.c.bf16 %v3613, %v3613
    %v3907 = vpack.c.bf16 %v3615, %v3615
    %v3908 = vpack.c.bf16 %v3617, %v3617
    %v3909 = vpack.c.bf16 %v3619, %v3619
    %v3910 = vpack.c.bf16 %v3621, %v3621
    %v3911 = vpack.c.bf16 %v3623, %v3623
    %v3912 = vpack.c.bf16 %v3625, %v3625
    %v3913 = vpack.c.bf16 %v3627, %v3627
    %v3914 = vpack.c.bf16 %v3629, %v3629
    %v3915 = vpack.c.bf16 %v3631, %v3631
    %v3916 = vpack.c.bf16 %v3633, %v3633
    %v3917 = vpack.c.bf16 %v3635, %v3635
    %v3918 = vpack.c.bf16 %v3637, %v3637
    %v3919 = vpack.c.bf16 %v3639, %v3639
    %v3920 = vpack.c.bf16 %v3641, %v3641
    %v3921 = vpack.c.bf16 %v3643, %v3643
    %v3922 = vpack.c.bf16 %v3645, %v3645
    %v3923 = vpack.c.bf16 %v3647, %v3647
    %v3924 = vpack.c.bf16 %v3649, %v3649
    %v3925 = vpack.c.bf16 %v3651, %v3651
    %v3926 = vpack.c.bf16 %v3653, %v3653
    %v3927 = vpack.c.bf16 %v3655, %v3655
    %v3928 = vpack.c.bf16 %v3657, %v3657
    %v3929 = vpack.c.bf16 %v3659, %v3659
    %v3930 = vpack.c.bf16 %v3661, %v3661
    %v3931 = vpack.c.bf16 %v3663, %v3663
    %v3932 = vpack.c.bf16 %v3665, %v3665
    %v3933 = vpack.c.bf16 %v3667, %v3667
    %v3934 = vpack.c.bf16 %v3669, %v3669
    %v3935 = vpack.c.bf16 %v3671, %v3671
    %v3936 = vpack.c.bf16 %v3673, %v3673
    %v3937 = vpack.c.bf16 %v3675, %v3675
    %v3938 = vpack.c.bf16 %v3677, %v3677
    %v3939 = vpack.c.bf16 %v3679, %v3679
    %v3940 = vpack.c.bf16 %v3681, %v3681
    %v3941 = vpack.c.bf16 %v3683, %v3683
    %v3942 = vpack.c.bf16 %v3685, %v3685
    %v3943 = vpack.c.bf16 %v3687, %v3687
    %v3946 = vunpack.c.l.b16 %v3880
    %v3947 = vunpack.c.l.b16 %v3881
    %v3948 = vpack.c.b16 %v3947, %v3946
    %v3951 = vunpack.c.l.b16 %v670
    %v3952 = vunpack.c.l.b16 %v671
    %v3953 = vpack.c.b16 %v3952, %v3951
    %v3956 = vsel %vm3303, %v3948, 0
    %3958 = vmatpush.bf16.msra.mxu0 0
    %3959 = vmatpush.bf16.msra.mxu0 0
    %3960 = vmatpush.bf16.msra.mxu0 0
    %3961 = vmatpush.bf16.msra.mxu0 0
    %3962 = vmatpush.bf16.msra.mxu0 0
    %3963 = vmatpush.bf16.msra.mxu0 0
    %3964 = vmatpush.bf16.msra.mxu0 0
    %3965 = vmatpush.bf16.msra.mxu0 %v3953
    %3966 = vmatmul.bf16.gmra.mxu0 %v3956
    %v3967 = vpop.f32.mrf.mxu0
    %v3968 = vadd.f32 0.0, %v3967
    %v3969 = vpop.f32.mrf.mxu0
    %v3970 = vadd.f32 0.0, %v3969
    %3971 = vdwg.mxu0
    %v3974 = vunpack.c.l.b16 %v3882
    %v3975 = vunpack.c.l.b16 %v3883
    %v3976 = vpack.c.b16 %v3975, %v3974
    %v3979 = vunpack.c.l.b16 %v672
    %v3980 = vunpack.c.l.b16 %v673
    %v3981 = vpack.c.b16 %v3980, %v3979
    %v3984 = vsel %vm3303, %v3976, 0
    %3986 = vmatpush.bf16.msra.mxu0 0
    %3987 = vmatpush.bf16.msra.mxu0 0
    %3988 = vmatpush.bf16.msra.mxu0 0
    %3989 = vmatpush.bf16.msra.mxu0 0
    %3990 = vmatpush.bf16.msra.mxu0 0
    %3991 = vmatpush.bf16.msra.mxu0 0
    %3992 = vmatpush.bf16.msra.mxu0 0
    %3993 = vmatpush.bf16.msra.mxu0 %v3981
    %3994 = vmatmul.bf16.gmra.mxu0 %v3984
    %v3995 = vpop.f32.mrf.mxu0
    %v3996 = vadd.f32 0.0, %v3995
    %v3997 = vpop.f32.mrf.mxu0
    %v3998 = vadd.f32 0.0, %v3997
    %3999 = vdwg.mxu0
    %v4002 = vunpack.c.l.b16 %v3884
    %v4003 = vunpack.c.l.b16 %v3885
    %v4004 = vpack.c.b16 %v4003, %v4002
    %v4007 = vunpack.c.l.b16 %v674
    %v4008 = vunpack.c.l.b16 %v675
    %v4009 = vpack.c.b16 %v4008, %v4007
    %v4012 = vsel %vm3303, %v4004, 0
    %4014 = vmatpush.bf16.msra.mxu0 0
    %4015 = vmatpush.bf16.msra.mxu0 0
    %4016 = vmatpush.bf16.msra.mxu0 0
    %4017 = vmatpush.bf16.msra.mxu0 0
    %4018 = vmatpush.bf16.msra.mxu0 0
    %4019 = vmatpush.bf16.msra.mxu0 0
    %4020 = vmatpush.bf16.msra.mxu0 0
    %4021 = vmatpush.bf16.msra.mxu0 %v4009
    %4022 = vmatmul.bf16.gmra.mxu0 %v4012
    %v4023 = vpop.f32.mrf.mxu0
    %v4024 = vadd.f32 0.0, %v4023
    %v4025 = vpop.f32.mrf.mxu0
    %v4026 = vadd.f32 0.0, %v4025
    %4027 = vdwg.mxu0
    %v4030 = vunpack.c.l.b16 %v3886
    %v4031 = vunpack.c.l.b16 %v3887
    %v4032 = vpack.c.b16 %v4031, %v4030
    %v4035 = vunpack.c.l.b16 %v676
    %v4036 = vunpack.c.l.b16 %v677
    %v4037 = vpack.c.b16 %v4036, %v4035
    %v4040 = vsel %vm3303, %v4032, 0
    %4042 = vmatpush.bf16.msra.mxu0 0
    %4043 = vmatpush.bf16.msra.mxu0 0
    %4044 = vmatpush.bf16.msra.mxu0 0
    %4045 = vmatpush.bf16.msra.mxu0 0
    %4046 = vmatpush.bf16.msra.mxu0 0
    %4047 = vmatpush.bf16.msra.mxu0 0
    %4048 = vmatpush.bf16.msra.mxu0 0
    %4049 = vmatpush.bf16.msra.mxu0 %v4037
    %4050 = vmatmul.bf16.gmra.mxu0 %v4040
    %v4051 = vpop.f32.mrf.mxu0
    %v4052 = vadd.f32 0.0, %v4051
    %v4053 = vpop.f32.mrf.mxu0
    %v4054 = vadd.f32 0.0, %v4053
    %4055 = vdwg.mxu0
    %v4058 = vunpack.c.l.b16 %v3888
    %v4059 = vunpack.c.l.b16 %v3889
    %v4060 = vpack.c.b16 %v4059, %v4058
    %v4063 = vunpack.c.l.b16 %v678
    %v4064 = vunpack.c.l.b16 %v679
    %v4065 = vpack.c.b16 %v4064, %v4063
    %v4068 = vsel %vm3303, %v4060, 0
    %4070 = vmatpush.bf16.msra.mxu0 0
    %4071 = vmatpush.bf16.msra.mxu0 0
    %4072 = vmatpush.bf16.msra.mxu0 0
    %4073 = vmatpush.bf16.msra.mxu0 0
    %4074 = vmatpush.bf16.msra.mxu0 0
    %4075 = vmatpush.bf16.msra.mxu0 0
    %4076 = vmatpush.bf16.msra.mxu0 0
    %4077 = vmatpush.bf16.msra.mxu0 %v4065
    %4078 = vmatmul.bf16.gmra.mxu0 %v4068
    %v4079 = vpop.f32.mrf.mxu0
    %v4080 = vadd.f32 0.0, %v4079
    %v4081 = vpop.f32.mrf.mxu0
    %v4082 = vadd.f32 0.0, %v4081
    %4083 = vdwg.mxu0
    %v4086 = vunpack.c.l.b16 %v3890
    %v4087 = vunpack.c.l.b16 %v3891
    %v4088 = vpack.c.b16 %v4087, %v4086
    %v4091 = vunpack.c.l.b16 %v680
    %v4092 = vunpack.c.l.b16 %v681
    %v4093 = vpack.c.b16 %v4092, %v4091
    %v4096 = vsel %vm3303, %v4088, 0
    %4098 = vmatpush.bf16.msra.mxu0 0
    %4099 = vmatpush.bf16.msra.mxu0 0
    %4100 = vmatpush.bf16.msra.mxu0 0
    %4101 = vmatpush.bf16.msra.mxu0 0
    %4102 = vmatpush.bf16.msra.mxu0 0
    %4103 = vmatpush.bf16.msra.mxu0 0
    %4104 = vmatpush.bf16.msra.mxu0 0
    %4105 = vmatpush.bf16.msra.mxu0 %v4093
    %4106 = vmatmul.bf16.gmra.mxu0 %v4096
    %v4107 = vpop.f32.mrf.mxu0
    %v4108 = vadd.f32 0.0, %v4107
    %v4109 = vpop.f32.mrf.mxu0
    %v4110 = vadd.f32 0.0, %v4109
    %4111 = vdwg.mxu0
    %v4114 = vunpack.c.l.b16 %v3892
    %v4115 = vunpack.c.l.b16 %v3893
    %v4116 = vpack.c.b16 %v4115, %v4114
    %v4119 = vunpack.c.l.b16 %v682
    %v4120 = vunpack.c.l.b16 %v683
    %v4121 = vpack.c.b16 %v4120, %v4119
    %v4124 = vsel %vm3303, %v4116, 0
    %4126 = vmatpush.bf16.msra.mxu0 0
    %4127 = vmatpush.bf16.msra.mxu0 0
    %4128 = vmatpush.bf16.msra.mxu0 0
    %4129 = vmatpush.bf16.msra.mxu0 0
    %4130 = vmatpush.bf16.msra.mxu0 0
    %4131 = vmatpush.bf16.msra.mxu0 0
    %4132 = vmatpush.bf16.msra.mxu0 0
    %4133 = vmatpush.bf16.msra.mxu0 %v4121
    %4134 = vmatmul.bf16.gmra.mxu0 %v4124
    %v4135 = vpop.f32.mrf.mxu0
    %v4136 = vadd.f32 0.0, %v4135
    %v4137 = vpop.f32.mrf.mxu0
    %v4138 = vadd.f32 0.0, %v4137
    %4139 = vdwg.mxu0
    %v4142 = vunpack.c.l.b16 %v3894
    %v4143 = vunpack.c.l.b16 %v3895
    %v4144 = vpack.c.b16 %v4143, %v4142
    %v4147 = vunpack.c.l.b16 %v684
    %v4148 = vunpack.c.l.b16 %v685
    %v4149 = vpack.c.b16 %v4148, %v4147
    %v4152 = vsel %vm3303, %v4144, 0
    %4154 = vmatpush.bf16.msra.mxu0 0
    %4155 = vmatpush.bf16.msra.mxu0 0
    %4156 = vmatpush.bf16.msra.mxu0 0
    %4157 = vmatpush.bf16.msra.mxu0 0
    %4158 = vmatpush.bf16.msra.mxu0 0
    %4159 = vmatpush.bf16.msra.mxu0 0
    %4160 = vmatpush.bf16.msra.mxu0 0
    %4161 = vmatpush.bf16.msra.mxu0 %v4149
    %4162 = vmatmul.bf16.gmra.mxu0 %v4152
    %v4163 = vpop.f32.mrf.mxu0
    %v4164 = vadd.f32 0.0, %v4163
    %v4165 = vpop.f32.mrf.mxu0
    %v4166 = vadd.f32 0.0, %v4165
    %4167 = vdwg.mxu0
    %v4170 = vunpack.c.l.b16 %v3896
    %v4171 = vunpack.c.l.b16 %v3897
    %v4172 = vpack.c.b16 %v4171, %v4170
    %v4175 = vunpack.c.l.b16 %v1222
    %v4176 = vunpack.c.l.b16 %v1223
    %v4177 = vpack.c.b16 %v4176, %v4175
    %v4180 = vsel %vm3303, %v4172, 0
    %4182 = vmatpush.bf16.msra.mxu0 0
    %4183 = vmatpush.bf16.msra.mxu0 0
    %4184 = vmatpush.bf16.msra.mxu0 0
    %4185 = vmatpush.bf16.msra.mxu0 0
    %4186 = vmatpush.bf16.msra.mxu0 0
    %4187 = vmatpush.bf16.msra.mxu0 0
    %4188 = vmatpush.bf16.msra.mxu0 0
    %4189 = vmatpush.bf16.msra.mxu0 %v4177
    %4190 = vmatmul.bf16.gmra.mxu0 %v4180
    %v4191 = vpop.f32.mrf.mxu0
    %v4192 = vadd.f32 0.0, %v4191
    %v4193 = vpop.f32.mrf.mxu0
    %v4194 = vadd.f32 0.0, %v4193
    %4195 = vdwg.mxu0
    %v4198 = vunpack.c.l.b16 %v3898
    %v4199 = vunpack.c.l.b16 %v3899
    %v4200 = vpack.c.b16 %v4199, %v4198
    %v4203 = vunpack.c.l.b16 %v1224
    %v4204 = vunpack.c.l.b16 %v1225
    %v4205 = vpack.c.b16 %v4204, %v4203
    %v4208 = vsel %vm3303, %v4200, 0
    %4210 = vmatpush.bf16.msra.mxu0 0
    %4211 = vmatpush.bf16.msra.mxu0 0
    %4212 = vmatpush.bf16.msra.mxu0 0
    %4213 = vmatpush.bf16.msra.mxu0 0
    %4214 = vmatpush.bf16.msra.mxu0 0
    %4215 = vmatpush.bf16.msra.mxu0 0
    %4216 = vmatpush.bf16.msra.mxu0 0
    %4217 = vmatpush.bf16.msra.mxu0 %v4205
    %4218 = vmatmul.bf16.gmra.mxu0 %v4208
    %v4219 = vpop.f32.mrf.mxu0
    %v4220 = vadd.f32 0.0, %v4219
    %v4221 = vpop.f32.mrf.mxu0
    %v4222 = vadd.f32 0.0, %v4221
    %4223 = vdwg.mxu0
    %v4226 = vunpack.c.l.b16 %v3900
    %v4227 = vunpack.c.l.b16 %v3901
    %v4228 = vpack.c.b16 %v4227, %v4226
    %v4231 = vunpack.c.l.b16 %v1226
    %v4232 = vunpack.c.l.b16 %v1227
    %v4233 = vpack.c.b16 %v4232, %v4231
    %v4236 = vsel %vm3303, %v4228, 0
    %4238 = vmatpush.bf16.msra.mxu0 0
    %4239 = vmatpush.bf16.msra.mxu0 0
    %4240 = vmatpush.bf16.msra.mxu0 0
    %4241 = vmatpush.bf16.msra.mxu0 0
    %4242 = vmatpush.bf16.msra.mxu0 0
    %4243 = vmatpush.bf16.msra.mxu0 0
    %4244 = vmatpush.bf16.msra.mxu0 0
    %4245 = vmatpush.bf16.msra.mxu0 %v4233
    %4246 = vmatmul.bf16.gmra.mxu0 %v4236
    %v4247 = vpop.f32.mrf.mxu0
    %v4248 = vadd.f32 0.0, %v4247
    %v4249 = vpop.f32.mrf.mxu0
    %v4250 = vadd.f32 0.0, %v4249
    %4251 = vdwg.mxu0
    %v4254 = vunpack.c.l.b16 %v3902
    %v4255 = vunpack.c.l.b16 %v3903
    %v4256 = vpack.c.b16 %v4255, %v4254
    %v4259 = vunpack.c.l.b16 %v1228
    %v4260 = vunpack.c.l.b16 %v1229
    %v4261 = vpack.c.b16 %v4260, %v4259
    %v4264 = vsel %vm3303, %v4256, 0
    %4266 = vmatpush.bf16.msra.mxu0 0
    %4267 = vmatpush.bf16.msra.mxu0 0
    %4268 = vmatpush.bf16.msra.mxu0 0
    %4269 = vmatpush.bf16.msra.mxu0 0
    %4270 = vmatpush.bf16.msra.mxu0 0
    %4271 = vmatpush.bf16.msra.mxu0 0
    %4272 = vmatpush.bf16.msra.mxu0 0
    %4273 = vmatpush.bf16.msra.mxu0 %v4261
    %4274 = vmatmul.bf16.gmra.mxu0 %v4264
    %v4275 = vpop.f32.mrf.mxu0
    %v4276 = vadd.f32 0.0, %v4275
    %v4277 = vpop.f32.mrf.mxu0
    %v4278 = vadd.f32 0.0, %v4277
    %4279 = vdwg.mxu0
    %v4282 = vunpack.c.l.b16 %v3904
    %v4283 = vunpack.c.l.b16 %v3905
    %v4284 = vpack.c.b16 %v4283, %v4282
    %v4287 = vunpack.c.l.b16 %v1230
    %v4288 = vunpack.c.l.b16 %v1231
    %v4289 = vpack.c.b16 %v4288, %v4287
    %v4292 = vsel %vm3303, %v4284, 0
    %4294 = vmatpush.bf16.msra.mxu0 0
    %4295 = vmatpush.bf16.msra.mxu0 0
    %4296 = vmatpush.bf16.msra.mxu0 0
    %4297 = vmatpush.bf16.msra.mxu0 0
    %4298 = vmatpush.bf16.msra.mxu0 0
    %4299 = vmatpush.bf16.msra.mxu0 0
    %4300 = vmatpush.bf16.msra.mxu0 0
    %4301 = vmatpush.bf16.msra.mxu0 %v4289
    %4302 = vmatmul.bf16.gmra.mxu0 %v4292
    %v4303 = vpop.f32.mrf.mxu0
    %v4304 = vadd.f32 0.0, %v4303
    %v4305 = vpop.f32.mrf.mxu0
    %v4306 = vadd.f32 0.0, %v4305
    %4307 = vdwg.mxu0
    %v4310 = vunpack.c.l.b16 %v3906
    %v4311 = vunpack.c.l.b16 %v3907
    %v4312 = vpack.c.b16 %v4311, %v4310
    %v4315 = vunpack.c.l.b16 %v1232
    %v4316 = vunpack.c.l.b16 %v1233
    %v4317 = vpack.c.b16 %v4316, %v4315
    %v4320 = vsel %vm3303, %v4312, 0
    %4322 = vmatpush.bf16.msra.mxu0 0
    %4323 = vmatpush.bf16.msra.mxu0 0
    %4324 = vmatpush.bf16.msra.mxu0 0
    %4325 = vmatpush.bf16.msra.mxu0 0
    %4326 = vmatpush.bf16.msra.mxu0 0
    %4327 = vmatpush.bf16.msra.mxu0 0
    %4328 = vmatpush.bf16.msra.mxu0 0
    %4329 = vmatpush.bf16.msra.mxu0 %v4317
    %4330 = vmatmul.bf16.gmra.mxu0 %v4320
    %v4331 = vpop.f32.mrf.mxu0
    %v4332 = vadd.f32 0.0, %v4331
    %v4333 = vpop.f32.mrf.mxu0
    %v4334 = vadd.f32 0.0, %v4333
    %4335 = vdwg.mxu0
    %v4338 = vunpack.c.l.b16 %v3908
    %v4339 = vunpack.c.l.b16 %v3909
    %v4340 = vpack.c.b16 %v4339, %v4338
    %v4343 = vunpack.c.l.b16 %v1234
    %v4344 = vunpack.c.l.b16 %v1235
    %v4345 = vpack.c.b16 %v4344, %v4343
    %v4348 = vsel %vm3303, %v4340, 0
    %4350 = vmatpush.bf16.msra.mxu0 0
    %4351 = vmatpush.bf16.msra.mxu0 0
    %4352 = vmatpush.bf16.msra.mxu0 0
    %4353 = vmatpush.bf16.msra.mxu0 0
    %4354 = vmatpush.bf16.msra.mxu0 0
    %4355 = vmatpush.bf16.msra.mxu0 0
    %4356 = vmatpush.bf16.msra.mxu0 0
    %4357 = vmatpush.bf16.msra.mxu0 %v4345
    %4358 = vmatmul.bf16.gmra.mxu0 %v4348
    %v4359 = vpop.f32.mrf.mxu0
    %v4360 = vadd.f32 0.0, %v4359
    %v4361 = vpop.f32.mrf.mxu0
    %v4362 = vadd.f32 0.0, %v4361
    %4363 = vdwg.mxu0
    %v4366 = vunpack.c.l.b16 %v3910
    %v4367 = vunpack.c.l.b16 %v3911
    %v4368 = vpack.c.b16 %v4367, %v4366
    %v4371 = vunpack.c.l.b16 %v1236
    %v4372 = vunpack.c.l.b16 %v1237
    %v4373 = vpack.c.b16 %v4372, %v4371
    %v4376 = vsel %vm3303, %v4368, 0
    %4378 = vmatpush.bf16.msra.mxu0 0
    %4379 = vmatpush.bf16.msra.mxu0 0
    %4380 = vmatpush.bf16.msra.mxu0 0
    %4381 = vmatpush.bf16.msra.mxu0 0
    %4382 = vmatpush.bf16.msra.mxu0 0
    %4383 = vmatpush.bf16.msra.mxu0 0
    %4384 = vmatpush.bf16.msra.mxu0 0
    %4385 = vmatpush.bf16.msra.mxu0 %v4373
    %4386 = vmatmul.bf16.gmra.mxu0 %v4376
    %v4387 = vpop.f32.mrf.mxu0
    %v4388 = vadd.f32 0.0, %v4387
    %v4389 = vpop.f32.mrf.mxu0
    %v4390 = vadd.f32 0.0, %v4389
    %4391 = vdwg.mxu0
    %v4394 = vunpack.c.l.b16 %v3912
    %v4395 = vunpack.c.l.b16 %v3913
    %v4396 = vpack.c.b16 %v4395, %v4394
    %v4399 = vunpack.c.l.b16 %v1774
    %v4400 = vunpack.c.l.b16 %v1775
    %v4401 = vpack.c.b16 %v4400, %v4399
    %v4404 = vsel %vm3303, %v4396, 0
    %4406 = vmatpush.bf16.msra.mxu0 0
    %4407 = vmatpush.bf16.msra.mxu0 0
    %4408 = vmatpush.bf16.msra.mxu0 0
    %4409 = vmatpush.bf16.msra.mxu0 0
    %4410 = vmatpush.bf16.msra.mxu0 0
    %4411 = vmatpush.bf16.msra.mxu0 0
    %4412 = vmatpush.bf16.msra.mxu0 0
    %4413 = vmatpush.bf16.msra.mxu0 %v4401
    %4414 = vmatmul.bf16.gmra.mxu0 %v4404
    %v4415 = vpop.f32.mrf.mxu0
    %v4416 = vadd.f32 0.0, %v4415
    %v4417 = vpop.f32.mrf.mxu0
    %v4418 = vadd.f32 0.0, %v4417
    %4419 = vdwg.mxu0
    %v4422 = vunpack.c.l.b16 %v3914
    %v4423 = vunpack.c.l.b16 %v3915
    %v4424 = vpack.c.b16 %v4423, %v4422
    %v4427 = vunpack.c.l.b16 %v1776
    %v4428 = vunpack.c.l.b16 %v1777
    %v4429 = vpack.c.b16 %v4428, %v4427
    %v4432 = vsel %vm3303, %v4424, 0
    %4434 = vmatpush.bf16.msra.mxu0 0
    %4435 = vmatpush.bf16.msra.mxu0 0
    %4436 = vmatpush.bf16.msra.mxu0 0
    %4437 = vmatpush.bf16.msra.mxu0 0
    %4438 = vmatpush.bf16.msra.mxu0 0
    %4439 = vmatpush.bf16.msra.mxu0 0
    %4440 = vmatpush.bf16.msra.mxu0 0
    %4441 = vmatpush.bf16.msra.mxu0 %v4429
    %4442 = vmatmul.bf16.gmra.mxu0 %v4432
    %v4443 = vpop.f32.mrf.mxu0
    %v4444 = vadd.f32 0.0, %v4443
    %v4445 = vpop.f32.mrf.mxu0
    %v4446 = vadd.f32 0.0, %v4445
    %4447 = vdwg.mxu0
    %v4450 = vunpack.c.l.b16 %v3916
    %v4451 = vunpack.c.l.b16 %v3917
    %v4452 = vpack.c.b16 %v4451, %v4450
    %v4455 = vunpack.c.l.b16 %v1778
    %v4456 = vunpack.c.l.b16 %v1779
    %v4457 = vpack.c.b16 %v4456, %v4455
    %v4460 = vsel %vm3303, %v4452, 0
    %4462 = vmatpush.bf16.msra.mxu0 0
    %4463 = vmatpush.bf16.msra.mxu0 0
    %4464 = vmatpush.bf16.msra.mxu0 0
    %4465 = vmatpush.bf16.msra.mxu0 0
    %4466 = vmatpush.bf16.msra.mxu0 0
    %4467 = vmatpush.bf16.msra.mxu0 0
    %4468 = vmatpush.bf16.msra.mxu0 0
    %4469 = vmatpush.bf16.msra.mxu0 %v4457
    %4470 = vmatmul.bf16.gmra.mxu0 %v4460
    %v4471 = vpop.f32.mrf.mxu0
    %v4472 = vadd.f32 0.0, %v4471
    %v4473 = vpop.f32.mrf.mxu0
    %v4474 = vadd.f32 0.0, %v4473
    %4475 = vdwg.mxu0
    %v4478 = vunpack.c.l.b16 %v3918
    %v4479 = vunpack.c.l.b16 %v3919
    %v4480 = vpack.c.b16 %v4479, %v4478
    %v4483 = vunpack.c.l.b16 %v1780
    %v4484 = vunpack.c.l.b16 %v1781
    %v4485 = vpack.c.b16 %v4484, %v4483
    %v4488 = vsel %vm3303, %v4480, 0
    %4490 = vmatpush.bf16.msra.mxu0 0
    %4491 = vmatpush.bf16.msra.mxu0 0
    %4492 = vmatpush.bf16.msra.mxu0 0
    %4493 = vmatpush.bf16.msra.mxu0 0
    %4494 = vmatpush.bf16.msra.mxu0 0
    %4495 = vmatpush.bf16.msra.mxu0 0
    %4496 = vmatpush.bf16.msra.mxu0 0
    %4497 = vmatpush.bf16.msra.mxu0 %v4485
    %4498 = vmatmul.bf16.gmra.mxu0 %v4488
    %v4499 = vpop.f32.mrf.mxu0
    %v4500 = vadd.f32 0.0, %v4499
    %v4501 = vpop.f32.mrf.mxu0
    %v4502 = vadd.f32 0.0, %v4501
    %4503 = vdwg.mxu0
    %v4506 = vunpack.c.l.b16 %v3920
    %v4507 = vunpack.c.l.b16 %v3921
    %v4508 = vpack.c.b16 %v4507, %v4506
    %v4511 = vunpack.c.l.b16 %v1782
    %v4512 = vunpack.c.l.b16 %v1783
    %v4513 = vpack.c.b16 %v4512, %v4511
    %v4516 = vsel %vm3303, %v4508, 0
    %4518 = vmatpush.bf16.msra.mxu0 0
    %4519 = vmatpush.bf16.msra.mxu0 0
    %4520 = vmatpush.bf16.msra.mxu0 0
    %4521 = vmatpush.bf16.msra.mxu0 0
    %4522 = vmatpush.bf16.msra.mxu0 0
    %4523 = vmatpush.bf16.msra.mxu0 0
    %4524 = vmatpush.bf16.msra.mxu0 0
    %4525 = vmatpush.bf16.msra.mxu0 %v4513
    %4526 = vmatmul.bf16.gmra.mxu0 %v4516
    %v4527 = vpop.f32.mrf.mxu0
    %v4528 = vadd.f32 0.0, %v4527
    %v4529 = vpop.f32.mrf.mxu0
    %v4530 = vadd.f32 0.0, %v4529
    %4531 = vdwg.mxu0
    %v4534 = vunpack.c.l.b16 %v3922
    %v4535 = vunpack.c.l.b16 %v3923
    %v4536 = vpack.c.b16 %v4535, %v4534
    %v4539 = vunpack.c.l.b16 %v1784
    %v4540 = vunpack.c.l.b16 %v1785
    %v4541 = vpack.c.b16 %v4540, %v4539
    %v4544 = vsel %vm3303, %v4536, 0
    %4546 = vmatpush.bf16.msra.mxu0 0
    %4547 = vmatpush.bf16.msra.mxu0 0
    %4548 = vmatpush.bf16.msra.mxu0 0
    %4549 = vmatpush.bf16.msra.mxu0 0
    %4550 = vmatpush.bf16.msra.mxu0 0
    %4551 = vmatpush.bf16.msra.mxu0 0
    %4552 = vmatpush.bf16.msra.mxu0 0
    %4553 = vmatpush.bf16.msra.mxu0 %v4541
    %4554 = vmatmul.bf16.gmra.mxu0 %v4544
    %v4555 = vpop.f32.mrf.mxu0
    %v4556 = vadd.f32 0.0, %v4555
    %v4557 = vpop.f32.mrf.mxu0
    %v4558 = vadd.f32 0.0, %v4557
    %4559 = vdwg.mxu0
    %v4562 = vunpack.c.l.b16 %v3924
    %v4563 = vunpack.c.l.b16 %v3925
    %v4564 = vpack.c.b16 %v4563, %v4562
    %v4567 = vunpack.c.l.b16 %v1786
    %v4568 = vunpack.c.l.b16 %v1787
    %v4569 = vpack.c.b16 %v4568, %v4567
    %v4572 = vsel %vm3303, %v4564, 0
    %4574 = vmatpush.bf16.msra.mxu0 0
    %4575 = vmatpush.bf16.msra.mxu0 0
    %4576 = vmatpush.bf16.msra.mxu0 0
    %4577 = vmatpush.bf16.msra.mxu0 0
    %4578 = vmatpush.bf16.msra.mxu0 0
    %4579 = vmatpush.bf16.msra.mxu0 0
    %4580 = vmatpush.bf16.msra.mxu0 0
    %4581 = vmatpush.bf16.msra.mxu0 %v4569
    %4582 = vmatmul.bf16.gmra.mxu0 %v4572
    %v4583 = vpop.f32.mrf.mxu0
    %v4584 = vadd.f32 0.0, %v4583
    %v4585 = vpop.f32.mrf.mxu0
    %v4586 = vadd.f32 0.0, %v4585
    %4587 = vdwg.mxu0
    %v4590 = vunpack.c.l.b16 %v3926
    %v4591 = vunpack.c.l.b16 %v3927
    %v4592 = vpack.c.b16 %v4591, %v4590
    %v4595 = vunpack.c.l.b16 %v1788
    %v4596 = vunpack.c.l.b16 %v1789
    %v4597 = vpack.c.b16 %v4596, %v4595
    %v4600 = vsel %vm3303, %v4592, 0
    %4602 = vmatpush.bf16.msra.mxu0 0
    %4603 = vmatpush.bf16.msra.mxu0 0
    %4604 = vmatpush.bf16.msra.mxu0 0
    %4605 = vmatpush.bf16.msra.mxu0 0
    %4606 = vmatpush.bf16.msra.mxu0 0
    %4607 = vmatpush.bf16.msra.mxu0 0
    %4608 = vmatpush.bf16.msra.mxu0 0
    %4609 = vmatpush.bf16.msra.mxu0 %v4597
    %4610 = vmatmul.bf16.gmra.mxu0 %v4600
    %v4611 = vpop.f32.mrf.mxu0
    %v4612 = vadd.f32 0.0, %v4611
    %v4613 = vpop.f32.mrf.mxu0
    %v4614 = vadd.f32 0.0, %v4613
    %4615 = vdwg.mxu0
    %v4618 = vunpack.c.l.b16 %v3928
    %v4619 = vunpack.c.l.b16 %v3929
    %v4620 = vpack.c.b16 %v4619, %v4618
    %v4623 = vunpack.c.l.b16 %v2326
    %v4624 = vunpack.c.l.b16 %v2327
    %v4625 = vpack.c.b16 %v4624, %v4623
    %v4628 = vsel %vm3303, %v4620, 0
    %4630 = vmatpush.bf16.msra.mxu0 0
    %4631 = vmatpush.bf16.msra.mxu0 0
    %4632 = vmatpush.bf16.msra.mxu0 0
    %4633 = vmatpush.bf16.msra.mxu0 0
    %4634 = vmatpush.bf16.msra.mxu0 0
    %4635 = vmatpush.bf16.msra.mxu0 0
    %4636 = vmatpush.bf16.msra.mxu0 0
    %4637 = vmatpush.bf16.msra.mxu0 %v4625
    %4638 = vmatmul.bf16.gmra.mxu0 %v4628
    %v4639 = vpop.f32.mrf.mxu0
    %v4640 = vadd.f32 0.0, %v4639
    %v4641 = vpop.f32.mrf.mxu0
    %v4642 = vadd.f32 0.0, %v4641
    %4643 = vdwg.mxu0
    %v4646 = vunpack.c.l.b16 %v3930
    %v4647 = vunpack.c.l.b16 %v3931
    %v4648 = vpack.c.b16 %v4647, %v4646
    %v4651 = vunpack.c.l.b16 %v2328
    %v4652 = vunpack.c.l.b16 %v2329
    %v4653 = vpack.c.b16 %v4652, %v4651
    %v4656 = vsel %vm3303, %v4648, 0
    %4658 = vmatpush.bf16.msra.mxu0 0
    %4659 = vmatpush.bf16.msra.mxu0 0
    %4660 = vmatpush.bf16.msra.mxu0 0
    %4661 = vmatpush.bf16.msra.mxu0 0
    %4662 = vmatpush.bf16.msra.mxu0 0
    %4663 = vmatpush.bf16.msra.mxu0 0
    %4664 = vmatpush.bf16.msra.mxu0 0
    %4665 = vmatpush.bf16.msra.mxu0 %v4653
    %4666 = vmatmul.bf16.gmra.mxu0 %v4656
    %v4667 = vpop.f32.mrf.mxu0
    %v4668 = vadd.f32 0.0, %v4667
    %v4669 = vpop.f32.mrf.mxu0
    %v4670 = vadd.f32 0.0, %v4669
    %4671 = vdwg.mxu0
    %v4674 = vunpack.c.l.b16 %v3932
    %v4675 = vunpack.c.l.b16 %v3933
    %v4676 = vpack.c.b16 %v4675, %v4674
    %v4679 = vunpack.c.l.b16 %v2330
    %v4680 = vunpack.c.l.b16 %v2331
    %v4681 = vpack.c.b16 %v4680, %v4679
    %v4684 = vsel %vm3303, %v4676, 0
    %4686 = vmatpush.bf16.msra.mxu0 0
    %4687 = vmatpush.bf16.msra.mxu0 0
    %4688 = vmatpush.bf16.msra.mxu0 0
    %4689 = vmatpush.bf16.msra.mxu0 0
    %4690 = vmatpush.bf16.msra.mxu0 0
    %4691 = vmatpush.bf16.msra.mxu0 0
    %4692 = vmatpush.bf16.msra.mxu0 0
    %4693 = vmatpush.bf16.msra.mxu0 %v4681
    %4694 = vmatmul.bf16.gmra.mxu0 %v4684
    %v4695 = vpop.f32.mrf.mxu0
    %v4696 = vadd.f32 0.0, %v4695
    %v4697 = vpop.f32.mrf.mxu0
    %v4698 = vadd.f32 0.0, %v4697
    %4699 = vdwg.mxu0
    %v4702 = vunpack.c.l.b16 %v3934
    %v4703 = vunpack.c.l.b16 %v3935
    %v4704 = vpack.c.b16 %v4703, %v4702
    %v4707 = vunpack.c.l.b16 %v2332
    %v4708 = vunpack.c.l.b16 %v2333
    %v4709 = vpack.c.b16 %v4708, %v4707
    %v4712 = vsel %vm3303, %v4704, 0
    %4714 = vmatpush.bf16.msra.mxu0 0
    %4715 = vmatpush.bf16.msra.mxu0 0
    %4716 = vmatpush.bf16.msra.mxu0 0
    %4717 = vmatpush.bf16.msra.mxu0 0
    %4718 = vmatpush.bf16.msra.mxu0 0
    %4719 = vmatpush.bf16.msra.mxu0 0
    %4720 = vmatpush.bf16.msra.mxu0 0
    %4721 = vmatpush.bf16.msra.mxu0 %v4709
    %4722 = vmatmul.bf16.gmra.mxu0 %v4712
    %v4723 = vpop.f32.mrf.mxu0
    %v4724 = vadd.f32 0.0, %v4723
    %v4725 = vpop.f32.mrf.mxu0
    %v4726 = vadd.f32 0.0, %v4725
    %4727 = vdwg.mxu0
    %v4730 = vunpack.c.l.b16 %v3936
    %v4731 = vunpack.c.l.b16 %v3937
    %v4732 = vpack.c.b16 %v4731, %v4730
    %v4735 = vunpack.c.l.b16 %v2334
    %v4736 = vunpack.c.l.b16 %v2335
    %v4737 = vpack.c.b16 %v4736, %v4735
    %v4740 = vsel %vm3303, %v4732, 0
    %4742 = vmatpush.bf16.msra.mxu0 0
    %4743 = vmatpush.bf16.msra.mxu0 0
    %4744 = vmatpush.bf16.msra.mxu0 0
    %4745 = vmatpush.bf16.msra.mxu0 0
    %4746 = vmatpush.bf16.msra.mxu0 0
    %4747 = vmatpush.bf16.msra.mxu0 0
    %4748 = vmatpush.bf16.msra.mxu0 0
    %4749 = vmatpush.bf16.msra.mxu0 %v4737
    %4750 = vmatmul.bf16.gmra.mxu0 %v4740
    %v4751 = vpop.f32.mrf.mxu0
    %v4752 = vadd.f32 0.0, %v4751
    %v4753 = vpop.f32.mrf.mxu0
    %v4754 = vadd.f32 0.0, %v4753
    %4755 = vdwg.mxu0
    %v4758 = vunpack.c.l.b16 %v3938
    %v4759 = vunpack.c.l.b16 %v3939
    %v4760 = vpack.c.b16 %v4759, %v4758
    %v4763 = vunpack.c.l.b16 %v2336
    %v4764 = vunpack.c.l.b16 %v2337
    %v4765 = vpack.c.b16 %v4764, %v4763
    %v4768 = vsel %vm3303, %v4760, 0
    %4770 = vmatpush.bf16.msra.mxu0 0
    %4771 = vmatpush.bf16.msra.mxu0 0
    %4772 = vmatpush.bf16.msra.mxu0 0
    %4773 = vmatpush.bf16.msra.mxu0 0
    %4774 = vmatpush.bf16.msra.mxu0 0
    %4775 = vmatpush.bf16.msra.mxu0 0
    %4776 = vmatpush.bf16.msra.mxu0 0
    %4777 = vmatpush.bf16.msra.mxu0 %v4765
    %4778 = vmatmul.bf16.gmra.mxu0 %v4768
    %v4779 = vpop.f32.mrf.mxu0
    %v4780 = vadd.f32 0.0, %v4779
    %v4781 = vpop.f32.mrf.mxu0
    %v4782 = vadd.f32 0.0, %v4781
    %4783 = vdwg.mxu0
    %v4786 = vunpack.c.l.b16 %v3940
    %v4787 = vunpack.c.l.b16 %v3941
    %v4788 = vpack.c.b16 %v4787, %v4786
    %v4791 = vunpack.c.l.b16 %v2338
    %v4792 = vunpack.c.l.b16 %v2339
    %v4793 = vpack.c.b16 %v4792, %v4791
    %v4796 = vsel %vm3303, %v4788, 0
    %4798 = vmatpush.bf16.msra.mxu0 0
    %4799 = vmatpush.bf16.msra.mxu0 0
    %4800 = vmatpush.bf16.msra.mxu0 0
    %4801 = vmatpush.bf16.msra.mxu0 0
    %4802 = vmatpush.bf16.msra.mxu0 0
    %4803 = vmatpush.bf16.msra.mxu0 0
    %4804 = vmatpush.bf16.msra.mxu0 0
    %4805 = vmatpush.bf16.msra.mxu0 %v4793
    %4806 = vmatmul.bf16.gmra.mxu0 %v4796
    %v4807 = vpop.f32.mrf.mxu0
    %v4808 = vadd.f32 0.0, %v4807
    %v4809 = vpop.f32.mrf.mxu0
    %v4810 = vadd.f32 0.0, %v4809
    %4811 = vdwg.mxu0
    %v4814 = vunpack.c.l.b16 %v3942
    %v4815 = vunpack.c.l.b16 %v3943
    %v4816 = vpack.c.b16 %v4815, %v4814
    %v4819 = vunpack.c.l.b16 %v2340
    %v4820 = vunpack.c.l.b16 %v2341
    %v4821 = vpack.c.b16 %v4820, %v4819
    %v4824 = vsel %vm3303, %v4816, 0
    %4826 = vmatpush.bf16.msra.mxu0 0
    %4827 = vmatpush.bf16.msra.mxu0 0
    %4828 = vmatpush.bf16.msra.mxu0 0
    %4829 = vmatpush.bf16.msra.mxu0 0
    %4830 = vmatpush.bf16.msra.mxu0 0
    %4831 = vmatpush.bf16.msra.mxu0 0
    %4832 = vmatpush.bf16.msra.mxu0 0
    %4833 = vmatpush.bf16.msra.mxu0 %v4821
    %4834 = vmatmul.bf16.gmra.mxu0 %v4824
    %v4835 = vpop.f32.mrf.mxu0
    %v4836 = vadd.f32 0.0, %v4835
    %v4837 = vpop.f32.mrf.mxu0
    %v4838 = vadd.f32 0.0, %v4837
    %4839 = vdwg.mxu0
    %v4840 = vrcp.pop %v3690
    %v4841 = vrcp.pop %v3693
    %v4842 = vrcp.pop %v3696
    %v4843 = vrcp.pop %v3699
    %v4844 = vrcp.pop %v3702
    %v4845 = vrcp.pop %v3705
    %v4846 = vrcp.pop %v3708
    %v4847 = vrcp.pop %v3711
    %v4848 = vrcp.pop %v3714
    %v4849 = vrcp.pop %v3717
    %v4850 = vrcp.pop %v3720
    %v4851 = vrcp.pop %v3723
    %v4852 = vrcp.pop %v3726
    %v4853 = vrcp.pop %v3729
    %v4854 = vrcp.pop %v3732
    %v4855 = vrcp.pop %v3735
    %v4856 = vrcp.pop %v3738
    %v4857 = vrcp.pop %v3741
    %v4858 = vrcp.pop %v3744
    %v4859 = vrcp.pop %v3747
    %v4860 = vrcp.pop %v3750
    %v4861 = vrcp.pop %v3753
    %v4862 = vrcp.pop %v3756
    %v4863 = vrcp.pop %v3759
    %v4864 = vrcp.pop %v3762
    %v4865 = vrcp.pop %v3765
    %v4866 = vrcp.pop %v3768
    %v4867 = vrcp.pop %v3771
    %v4868 = vrcp.pop %v3774
    %v4869 = vrcp.pop %v3777
    %v4870 = vrcp.pop %v3780
    %v4871 = vrcp.pop %v3783
    %v4872 = vrcp.pop %v3786
    %v4873 = vrcp.pop %v3789
    %v4874 = vrcp.pop %v3792
    %v4875 = vrcp.pop %v3795
    %v4876 = vrcp.pop %v3798
    %v4877 = vrcp.pop %v3801
    %v4878 = vrcp.pop %v3804
    %v4879 = vrcp.pop %v3807
    %v4880 = vrcp.pop %v3810
    %v4881 = vrcp.pop %v3813
    %v4882 = vrcp.pop %v3816
    %v4883 = vrcp.pop %v3819
    %v4884 = vrcp.pop %v3822
    %v4885 = vrcp.pop %v3825
    %v4886 = vrcp.pop %v3828
    %v4887 = vrcp.pop %v3831
    %v4888 = vrcp.pop %v3834
    %v4889 = vrcp.pop %v3837
    %v4890 = vrcp.pop %v3840
    %v4891 = vrcp.pop %v3843
    %v4892 = vrcp.pop %v3846
    %v4893 = vrcp.pop %v3849
    %v4894 = vrcp.pop %v3852
    %v4895 = vrcp.pop %v3855
    %v4896 = vrcp.pop %v3858
    %v4897 = vrcp.pop %v3861
    %v4898 = vrcp.pop %v3864
    %v4899 = vrcp.pop %v3867
    %v4900 = vrcp.pop %v3870
    %v4901 = vrcp.pop %v3873
    %v4902 = vrcp.pop %v3876
    %v4903 = vrcp.pop %v3879
    %v4904 = vmul.f32 %v3968, %v4840
    %v4905 = vmul.f32 %v3970, %v4841
    %v4906 = vmul.f32 %v3996, %v4842
    %v4907 = vmul.f32 %v3998, %v4843
    %v4908 = vmul.f32 %v4024, %v4844
    %v4909 = vmul.f32 %v4026, %v4845
    %v4910 = vmul.f32 %v4052, %v4846
    %v4911 = vmul.f32 %v4054, %v4847
    %v4912 = vmul.f32 %v4080, %v4848
    %v4913 = vmul.f32 %v4082, %v4849
    %v4914 = vmul.f32 %v4108, %v4850
    %v4915 = vmul.f32 %v4110, %v4851
    %v4916 = vmul.f32 %v4136, %v4852
    %v4917 = vmul.f32 %v4138, %v4853
    %v4918 = vmul.f32 %v4164, %v4854
    %v4919 = vmul.f32 %v4166, %v4855
    %v4920 = vmul.f32 %v4192, %v4856
    %v4921 = vmul.f32 %v4194, %v4857
    %v4922 = vmul.f32 %v4220, %v4858
    %v4923 = vmul.f32 %v4222, %v4859
    %v4924 = vmul.f32 %v4248, %v4860
    %v4925 = vmul.f32 %v4250, %v4861
    %v4926 = vmul.f32 %v4276, %v4862
    %v4927 = vmul.f32 %v4278, %v4863
    %v4928 = vmul.f32 %v4304, %v4864
    %v4929 = vmul.f32 %v4306, %v4865
    %v4930 = vmul.f32 %v4332, %v4866
    %v4931 = vmul.f32 %v4334, %v4867
    %v4932 = vmul.f32 %v4360, %v4868
    %v4933 = vmul.f32 %v4362, %v4869
    %v4934 = vmul.f32 %v4388, %v4870
    %v4935 = vmul.f32 %v4390, %v4871
    %v4936 = vmul.f32 %v4416, %v4872
    %v4937 = vmul.f32 %v4418, %v4873
    %v4938 = vmul.f32 %v4444, %v4874
    %v4939 = vmul.f32 %v4446, %v4875
    %v4940 = vmul.f32 %v4472, %v4876
    %v4941 = vmul.f32 %v4474, %v4877
    %v4942 = vmul.f32 %v4500, %v4878
    %v4943 = vmul.f32 %v4502, %v4879
    %v4944 = vmul.f32 %v4528, %v4880
    %v4945 = vmul.f32 %v4530, %v4881
    %v4946 = vmul.f32 %v4556, %v4882
    %v4947 = vmul.f32 %v4558, %v4883
    %v4948 = vmul.f32 %v4584, %v4884
    %v4949 = vmul.f32 %v4586, %v4885
    %v4950 = vmul.f32 %v4612, %v4886
    %v4951 = vmul.f32 %v4614, %v4887
    %v4952 = vmul.f32 %v4640, %v4888
    %v4953 = vmul.f32 %v4642, %v4889
    %v4954 = vmul.f32 %v4668, %v4890
    %v4955 = vmul.f32 %v4670, %v4891
    %v4956 = vmul.f32 %v4696, %v4892
    %v4957 = vmul.f32 %v4698, %v4893
    %v4958 = vmul.f32 %v4724, %v4894
    %v4959 = vmul.f32 %v4726, %v4895
    %v4960 = vmul.f32 %v4752, %v4896
    %v4961 = vmul.f32 %v4754, %v4897
    %v4962 = vmul.f32 %v4780, %v4898
    %v4963 = vmul.f32 %v4782, %v4899
    %v4964 = vmul.f32 %v4808, %v4900
    %v4965 = vmul.f32 %v4810, %v4901
    %v4966 = vmul.f32 %v4836, %v4902
    %v4967 = vmul.f32 %v4838, %v4903
    %v4968 = vpack.c.bf16 %v4905, %v4904
    %v4969 = vpack.c.bf16 %v4907, %v4906
    %v4970 = vpack.c.bf16 %v4909, %v4908
    %v4971 = vpack.c.bf16 %v4911, %v4910
    %v4972 = vpack.c.bf16 %v4913, %v4912
    %v4973 = vpack.c.bf16 %v4915, %v4914
    %v4974 = vpack.c.bf16 %v4917, %v4916
    %v4975 = vpack.c.bf16 %v4919, %v4918
    %v4976 = vld [vmem:[%s8] sm:$0xf]
    %v4977 = vpack.c.bf16 %v4921, %v4920
    %v4978 = vpack.c.bf16 %v4923, %v4922
    %v4979 = vpack.c.bf16 %v4925, %v4924
    %v4980 = vpack.c.bf16 %v4927, %v4926
    %v4981 = vpack.c.bf16 %v4929, %v4928
    %v4982 = vpack.c.bf16 %v4931, %v4930
    %v4983 = vpack.c.bf16 %v4933, %v4932
    %v4984 = vpack.c.bf16 %v4935, %v4934
    %s4985 = scalar_lea.vmem %s8, 4
    %v4986 = vld [vmem:[%s4985] sm:$0xf]
    %v4988 = vsel %vm2352, %v4977, 0
    %v4991 = vsel %vm2352, %v4978, 0
    %v4994 = vsel %vm2352, %v4979, 0
    %v4997 = vsel %vm2352, %v4980, 0
    %v5000 = vsel %vm2352, %v4981, 0
    %v5003 = vsel %vm2352, %v4982, 0
    %v5006 = vsel %vm2352, %v4983, 0
    %v5009 = vsel %vm2352, %v4984, 0
    %vm5011 = vcmask 1043456
    %v5013 = vsel %vm5011, %v4986, 0
    %5015 = vmatpush.bf16.msra.mxu0 0
    %5016 = vmatpush.bf16.msra.mxu0 0
    %5017 = vmatpush.bf16.msra.mxu0 0
    %5018 = vmatpush.bf16.msra.mxu0 0
    %5019 = vmatpush.bf16.msra.mxu0 0
    %5020 = vmatpush.bf16.msra.mxu0 0
    %5021 = vmatpush.bf16.msra.mxu0 0
    %5022 = vmatpush.bf16.msra.mxu0 %v5013
    %5023 = vmatmul.bf16.gmra.mxu0 %v4988
    %v5024 = vpop.f32.mrf.mxu0
    %v5025 = vadd.f32 0.0, %v5024
    %v5026 = vpop.f32.mrf.mxu0
    %v5027 = vadd.f32 0.0, %v5026
    %5028 = vmatmul.bf16.gmra.mxu0 %v4991
    %v5029 = vpop.f32.mrf.mxu0
    %v5030 = vadd.f32 0.0, %v5029
    %v5031 = vpop.f32.mrf.mxu0
    %v5032 = vadd.f32 0.0, %v5031
    %5033 = vmatmul.bf16.gmra.mxu0 %v4994
    %v5034 = vpop.f32.mrf.mxu0
    %v5035 = vadd.f32 0.0, %v5034
    %v5036 = vpop.f32.mrf.mxu0
    %v5037 = vadd.f32 0.0, %v5036
    %5038 = vmatmul.bf16.gmra.mxu0 %v4997
    %v5039 = vpop.f32.mrf.mxu0
    %v5040 = vadd.f32 0.0, %v5039
    %v5041 = vpop.f32.mrf.mxu0
    %v5042 = vadd.f32 0.0, %v5041
    %5043 = vmatmul.bf16.gmra.mxu0 %v5000
    %v5044 = vpop.f32.mrf.mxu0
    %v5045 = vadd.f32 0.0, %v5044
    %v5046 = vpop.f32.mrf.mxu0
    %v5047 = vadd.f32 0.0, %v5046
    %5048 = vmatmul.bf16.gmra.mxu0 %v5003
    %v5049 = vpop.f32.mrf.mxu0
    %v5050 = vadd.f32 0.0, %v5049
    %v5051 = vpop.f32.mrf.mxu0
    %v5052 = vadd.f32 0.0, %v5051
    %5053 = vmatmul.bf16.gmra.mxu0 %v5006
    %v5054 = vpop.f32.mrf.mxu0
    %v5055 = vadd.f32 0.0, %v5054
    %v5056 = vpop.f32.mrf.mxu0
    %v5057 = vadd.f32 0.0, %v5056
    %5058 = vmatmul.bf16.gmra.mxu0 %v5009
    %v5059 = vpop.f32.mrf.mxu0
    %v5060 = vadd.f32 0.0, %v5059
    %v5061 = vpop.f32.mrf.mxu0
    %v5062 = vadd.f32 0.0, %v5061
    %5063 = vdwg.mxu0
    %v5065 = vsel %vm2352, %v4968, 0
    %v5068 = vsel %vm2352, %v4969, 0
    %v5071 = vsel %vm2352, %v4970, 0
    %v5074 = vsel %vm2352, %v4971, 0
    %v5077 = vsel %vm2352, %v4972, 0
    %v5080 = vsel %vm2352, %v4973, 0
    %v5083 = vsel %vm2352, %v4974, 0
    %v5086 = vsel %vm2352, %v4975, 0
    %v5089 = vsel %vm5011, %v4976, 0
    %5091 = vmatpush.bf16.msra.mxu0 0
    %5092 = vmatpush.bf16.msra.mxu0 0
    %5093 = vmatpush.bf16.msra.mxu0 0
    %5094 = vmatpush.bf16.msra.mxu0 0
    %5095 = vmatpush.bf16.msra.mxu0 0
    %5096 = vmatpush.bf16.msra.mxu0 0
    %5097 = vmatpush.bf16.msra.mxu0 0
    %5098 = vmatpush.bf16.msra.mxu0 %v5089
    %5099 = vmatmul.bf16.gmra.mxu0 %v5065
    %v5100 = vpop.f32.mrf.mxu0
    %v5101 = vadd.f32 %v5025, %v5100
    %v5102 = vpop.f32.mrf.mxu0
    %v5103 = vadd.f32 %v5027, %v5102
    %5104 = vmatmul.bf16.gmra.mxu0 %v5068
    %v5105 = vpop.f32.mrf.mxu0
    %v5106 = vadd.f32 %v5030, %v5105
    %v5107 = vpop.f32.mrf.mxu0
    %v5108 = vadd.f32 %v5032, %v5107
    %5109 = vmatmul.bf16.gmra.mxu0 %v5071
    %v5110 = vpop.f32.mrf.mxu0
    %v5111 = vadd.f32 %v5035, %v5110
    %v5112 = vpop.f32.mrf.mxu0
    %v5113 = vadd.f32 %v5037, %v5112
    %5114 = vmatmul.bf16.gmra.mxu0 %v5074
    %v5115 = vpop.f32.mrf.mxu0
    %v5116 = vadd.f32 %v5040, %v5115
    %v5117 = vpop.f32.mrf.mxu0
    %v5118 = vadd.f32 %v5042, %v5117
    %5119 = vmatmul.bf16.gmra.mxu0 %v5077
    %v5120 = vpop.f32.mrf.mxu0
    %v5121 = vadd.f32 %v5045, %v5120
    %v5122 = vpop.f32.mrf.mxu0
    %v5123 = vadd.f32 %v5047, %v5122
    %5124 = vmatmul.bf16.gmra.mxu0 %v5080
    %v5125 = vpop.f32.mrf.mxu0
    %v5126 = vadd.f32 %v5050, %v5125
    %v5127 = vpop.f32.mrf.mxu0
    %v5128 = vadd.f32 %v5052, %v5127
    %5129 = vmatmul.bf16.gmra.mxu0 %v5083
    %v5130 = vpop.f32.mrf.mxu0
    %v5131 = vadd.f32 %v5055, %v5130
    %v5132 = vpop.f32.mrf.mxu0
    %v5133 = vadd.f32 %v5057, %v5132
    %5134 = vmatmul.bf16.gmra.mxu0 %v5086
    %v5135 = vpop.f32.mrf.mxu0
    %v5136 = vadd.f32 %v5060, %v5135
    %v5137 = vpop.f32.mrf.mxu0
    %v5138 = vadd.f32 %v5062, %v5137
    %5139 = vdwg.mxu0
    %v5140 = vpack.c.bf16 %v4937, %v4936
    %v5141 = vpack.c.bf16 %v4939, %v4938
    %v5142 = vpack.c.bf16 %v4941, %v4940
    %v5143 = vpack.c.bf16 %v4943, %v4942
    %v5144 = vpack.c.bf16 %v4945, %v4944
    %v5145 = vpack.c.bf16 %v4947, %v4946
    %v5146 = vpack.c.bf16 %v4949, %v4948
    %v5147 = vpack.c.bf16 %v4951, %v4950
    %s5148 = scalar_lea.vmem %s8, 8
    %v5149 = vld [vmem:[%s5148] sm:$0xf]
    %v5151 = vsel %vm2352, %v5140, 0
    %v5154 = vsel %vm2352, %v5141, 0
    %v5157 = vsel %vm2352, %v5142, 0
    %v5160 = vsel %vm2352, %v5143, 0
    %v5163 = vsel %vm2352, %v5144, 0
    %v5166 = vsel %vm2352, %v5145, 0
    %v5169 = vsel %vm2352, %v5146, 0
    %v5172 = vsel %vm2352, %v5147, 0
    %v5175 = vsel %vm5011, %v5149, 0
    %5177 = vmatpush.bf16.msra.mxu0 0
    %5178 = vmatpush.bf16.msra.mxu0 0
    %5179 = vmatpush.bf16.msra.mxu0 0
    %5180 = vmatpush.bf16.msra.mxu0 0
    %5181 = vmatpush.bf16.msra.mxu0 0
    %5182 = vmatpush.bf16.msra.mxu0 0
    %5183 = vmatpush.bf16.msra.mxu0 0
    %5184 = vmatpush.bf16.msra.mxu0 %v5175
    %5185 = vmatmul.bf16.gmra.mxu0 %v5151
    %v5186 = vpop.f32.mrf.mxu0
    %v5187 = vadd.f32 0.0, %v5186
    %v5188 = vpop.f32.mrf.mxu0
    %v5189 = vadd.f32 0.0, %v5188
    %5190 = vmatmul.bf16.gmra.mxu0 %v5154
    %v5191 = vpop.f32.mrf.mxu0
    %v5192 = vadd.f32 0.0, %v5191
    %v5193 = vpop.f32.mrf.mxu0
    %v5194 = vadd.f32 0.0, %v5193
    %5195 = vmatmul.bf16.gmra.mxu0 %v5157
    %v5196 = vpop.f32.mrf.mxu0
    %v5197 = vadd.f32 0.0, %v5196
    %v5198 = vpop.f32.mrf.mxu0
    %v5199 = vadd.f32 0.0, %v5198
    %5200 = vmatmul.bf16.gmra.mxu0 %v5160
    %v5201 = vpop.f32.mrf.mxu0
    %v5202 = vadd.f32 0.0, %v5201
    %v5203 = vpop.f32.mrf.mxu0
    %v5204 = vadd.f32 0.0, %v5203
    %5205 = vmatmul.bf16.gmra.mxu0 %v5163
    %v5206 = vpop.f32.mrf.mxu0
    %v5207 = vadd.f32 0.0, %v5206
    %v5208 = vpop.f32.mrf.mxu0
    %v5209 = vadd.f32 0.0, %v5208
    %5210 = vmatmul.bf16.gmra.mxu0 %v5166
    %v5211 = vpop.f32.mrf.mxu0
    %v5212 = vadd.f32 0.0, %v5211
    %v5213 = vpop.f32.mrf.mxu0
    %v5214 = vadd.f32 0.0, %v5213
    %5215 = vmatmul.bf16.gmra.mxu0 %v5169
    %v5216 = vpop.f32.mrf.mxu0
    %v5217 = vadd.f32 0.0, %v5216
    %v5218 = vpop.f32.mrf.mxu0
    %v5219 = vadd.f32 0.0, %v5218
    %5220 = vmatmul.bf16.gmra.mxu0 %v5172
    %v5221 = vpop.f32.mrf.mxu0
    %v5222 = vadd.f32 0.0, %v5221
    %v5223 = vpop.f32.mrf.mxu0
    %v5224 = vadd.f32 0.0, %v5223
    %5225 = vdwg.mxu0
    %v5226 = vadd.f32 %v5101, %v5187
    %v5227 = vadd.f32 %v5103, %v5189
    %v5228 = vadd.f32 %v5106, %v5192
    %v5229 = vadd.f32 %v5108, %v5194
    %v5230 = vadd.f32 %v5111, %v5197
    %v5231 = vadd.f32 %v5113, %v5199
    %v5232 = vadd.f32 %v5116, %v5202
    %v5233 = vadd.f32 %v5118, %v5204
    %v5234 = vadd.f32 %v5121, %v5207
    %v5235 = vadd.f32 %v5123, %v5209
    %v5236 = vadd.f32 %v5126, %v5212
    %v5237 = vadd.f32 %v5128, %v5214
    %v5238 = vadd.f32 %v5131, %v5217
    %v5239 = vadd.f32 %v5133, %v5219
    %v5240 = vadd.f32 %v5136, %v5222
    %v5241 = vadd.f32 %v5138, %v5224
    %v5242 = vpack.c.bf16 %v4953, %v4952
    %v5243 = vpack.c.bf16 %v4955, %v4954
    %v5244 = vpack.c.bf16 %v4957, %v4956
    %v5245 = vpack.c.bf16 %v4959, %v4958
    %v5246 = vpack.c.bf16 %v4961, %v4960
    %v5247 = vpack.c.bf16 %v4963, %v4962
    %v5248 = vpack.c.bf16 %v4965, %v4964
    %v5249 = vpack.c.bf16 %v4967, %v4966
    %s5250 = scalar_lea.vmem %s8, 12
    %v5251 = vld [vmem:[%s5250] sm:$0xf]
    %v5253 = vsel %vm2352, %v5242, 0
    %v5256 = vsel %vm2352, %v5243, 0
    %v5259 = vsel %vm2352, %v5244, 0
    %v5262 = vsel %vm2352, %v5245, 0
    %v5265 = vsel %vm2352, %v5246, 0
    %v5268 = vsel %vm2352, %v5247, 0
    %v5271 = vsel %vm2352, %v5248, 0
    %v5274 = vsel %vm2352, %v5249, 0
    %v5277 = vsel %vm5011, %v5251, 0
    %5279 = vmatpush.bf16.msra.mxu0 0
    %5280 = vmatpush.bf16.msra.mxu0 0
    %5281 = vmatpush.bf16.msra.mxu0 0
    %5282 = vmatpush.bf16.msra.mxu0 0
    %5283 = vmatpush.bf16.msra.mxu0 0
    %5284 = vmatpush.bf16.msra.mxu0 0
    %5285 = vmatpush.bf16.msra.mxu0 0
    %5286 = vmatpush.bf16.msra.mxu0 %v5277
    %5287 = vmatmul.bf16.gmra.mxu0 %v5253
    %v5288 = vpop.f32.mrf.mxu0
    %v5289 = vadd.f32 0.0, %v5288
    %v5290 = vpop.f32.mrf.mxu0
    %v5291 = vadd.f32 0.0, %v5290
    %5292 = vmatmul.bf16.gmra.mxu0 %v5256
    %v5293 = vpop.f32.mrf.mxu0
    %v5294 = vadd.f32 0.0, %v5293
    %v5295 = vpop.f32.mrf.mxu0
    %v5296 = vadd.f32 0.0, %v5295
    %5297 = vmatmul.bf16.gmra.mxu0 %v5259
    %v5298 = vpop.f32.mrf.mxu0
    %v5299 = vadd.f32 0.0, %v5298
    %v5300 = vpop.f32.mrf.mxu0
    %v5301 = vadd.f32 0.0, %v5300
    %5302 = vmatmul.bf16.gmra.mxu0 %v5262
    %v5303 = vpop.f32.mrf.mxu0
    %v5304 = vadd.f32 0.0, %v5303
    %v5305 = vpop.f32.mrf.mxu0
    %v5306 = vadd.f32 0.0, %v5305
    %5307 = vmatmul.bf16.gmra.mxu0 %v5265
    %v5308 = vpop.f32.mrf.mxu0
    %v5309 = vadd.f32 0.0, %v5308
    %v5310 = vpop.f32.mrf.mxu0
    %v5311 = vadd.f32 0.0, %v5310
    %5312 = vmatmul.bf16.gmra.mxu0 %v5268
    %v5313 = vpop.f32.mrf.mxu0
    %v5314 = vadd.f32 0.0, %v5313
    %v5315 = vpop.f32.mrf.mxu0
    %v5316 = vadd.f32 0.0, %v5315
    %5317 = vmatmul.bf16.gmra.mxu0 %v5271
    %v5318 = vpop.f32.mrf.mxu0
    %v5319 = vadd.f32 0.0, %v5318
    %v5320 = vpop.f32.mrf.mxu0
    %v5321 = vadd.f32 0.0, %v5320
    %5322 = vmatmul.bf16.gmra.mxu0 %v5274
    %v5323 = vpop.f32.mrf.mxu0
    %v5324 = vadd.f32 0.0, %v5323
    %v5325 = vpop.f32.mrf.mxu0
    %v5326 = vadd.f32 0.0, %v5325
    %5327 = vdwg.mxu0
    %v5328 = vadd.f32 %v5226, %v5289
    %v5329 = vadd.f32 %v5227, %v5291
    %v5330 = vadd.f32 %v5228, %v5294
    %v5331 = vadd.f32 %v5229, %v5296
    %v5332 = vadd.f32 %v5230, %v5299
    %v5333 = vadd.f32 %v5231, %v5301
    %v5334 = vadd.f32 %v5232, %v5304
    %v5335 = vadd.f32 %v5233, %v5306
    %v5336 = vadd.f32 %v5234, %v5309
    %v5337 = vadd.f32 %v5235, %v5311
    %v5338 = vadd.f32 %v5236, %v5314
    %v5339 = vadd.f32 %v5237, %v5316
    %v5340 = vadd.f32 %v5238, %v5319
    %v5341 = vadd.f32 %v5239, %v5321
    %v5342 = vadd.f32 %v5240, %v5324
    %v5343 = vadd.f32 %v5241, %v5326
    %v5344 = vld [vmem:[%s9] sm:$0x1]
    %v5346 = vperm.slane %v5344, 0
    %v5348 = vadd.f32 %v5328, %v5346
    %v5349 = vadd.f32 %v5329, %v5346
    %v5350 = vadd.f32 %v5330, %v5346
    %v5351 = vadd.f32 %v5331, %v5346
    %v5352 = vadd.f32 %v5332, %v5346
    %v5353 = vadd.f32 %v5333, %v5346
    %v5354 = vadd.f32 %v5334, %v5346
    %v5355 = vadd.f32 %v5335, %v5346
    %v5356 = vadd.f32 %v5336, %v5346
    %v5357 = vadd.f32 %v5337, %v5346
    %v5358 = vadd.f32 %v5338, %v5346
    %v5359 = vadd.f32 %v5339, %v5346
    %v5360 = vadd.f32 %v5340, %v5346
    %v5361 = vadd.f32 %v5341, %v5346
    %v5362 = vadd.f32 %v5342, %v5346
    %v5363 = vadd.f32 %v5343, %v5346
    %v5364 = vmax.f32 %v5348, 0.0
    %v5365 = vmax.f32 %v5349, 0.0
    %v5366 = vmax.f32 %v5350, 0.0
    %v5367 = vmax.f32 %v5351, 0.0
    %v5368 = vmax.f32 %v5352, 0.0
    %v5369 = vmax.f32 %v5353, 0.0
    %v5370 = vmax.f32 %v5354, 0.0
    %v5371 = vmax.f32 %v5355, 0.0
    %v5372 = vmax.f32 %v5356, 0.0
    %v5373 = vmax.f32 %v5357, 0.0
    %v5374 = vmax.f32 %v5358, 0.0
    %v5375 = vmax.f32 %v5359, 0.0
    %v5376 = vmax.f32 %v5360, 0.0
    %v5377 = vmax.f32 %v5361, 0.0
    %v5378 = vmax.f32 %v5362, 0.0
    %v5379 = vmax.f32 %v5363, 0.0
    %v5380 = vpack.c.bf16 %v5365, %v5364
    %v5381 = vpack.c.bf16 %v5367, %v5366
    %v5382 = vpack.c.bf16 %v5369, %v5368
    %v5383 = vpack.c.bf16 %v5371, %v5370
    %v5384 = vpack.c.bf16 %v5373, %v5372
    %v5385 = vpack.c.bf16 %v5375, %v5374
    %v5386 = vpack.c.bf16 %v5377, %v5376
    %v5387 = vpack.c.bf16 %v5379, %v5378
    %v5388 = vld [vmem:[%s10] sm:$0xf]
    %v5389 = vld [vmem:[%s10 + $0x4] sm:$0xf]
    %v5390 = vld [vmem:[%s10 + $0x8] sm:$0xf]
    %v5391 = vld [vmem:[%s10 + $0xc] sm:$0xf]
    %v5392 = vld [vmem:[%s11] sm:$0x1]
    %v5394 = vperm.slane %v5392, 0
    %v5400 = vunpack.c.l.b16 %v5388
    %v5401 = vunpack.c.l.b16 %v5389
    %v5402 = vunpack.c.l.b16 %v5390
    %v5403 = vunpack.c.l.b16 %v5391
    %v5404 = vpack.c.b16 %v5401, %v5400
    %v5405 = vpack.c.b16 %v5403, %v5402
    %v5409 = vsel %vm111, %v5380, 0
    %v5412 = vsel %vm111, %v5381, 0
    %v5415 = vsel %vm111, %v5382, 0
    %v5418 = vsel %vm111, %v5383, 0
    %v5421 = vsel %vm111, %v5384, 0
    %v5424 = vsel %vm111, %v5385, 0
    %v5427 = vsel %vm111, %v5386, 0
    %v5430 = vsel %vm111, %v5387, 0
    %5432 = vmatpush.bf16.msra.mxu0 0
    %5433 = vmatpush.bf16.msra.mxu0 0
    %5434 = vmatpush.bf16.msra.mxu0 0
    %5435 = vmatpush.bf16.msra.mxu0 0
    %5436 = vmatpush.bf16.msra.mxu0 0
    %5437 = vmatpush.bf16.msra.mxu0 0
    %5438 = vmatpush.bf16.msra.mxu0 %v5405
    %5439 = vmatpush.bf16.msra.mxu0 %v5404
    %5440 = vmatmul.bf16.gmra.mxu0 %v5409
    %v5441 = vpop.f32.mrf.mxu0
    %v5442 = vadd.f32 %v5394, %v5441
    %v5443 = vpop.f32.mrf.mxu0
    %v5444 = vadd.f32 %v5394, %v5443
    %5445 = vmatmul.bf16.gmra.mxu0 %v5412
    %v5446 = vpop.f32.mrf.mxu0
    %v5447 = vadd.f32 %v5394, %v5446
    %v5448 = vpop.f32.mrf.mxu0
    %v5449 = vadd.f32 %v5394, %v5448
    %5450 = vmatmul.bf16.gmra.mxu0 %v5415
    %v5451 = vpop.f32.mrf.mxu0
    %v5452 = vadd.f32 %v5394, %v5451
    %v5453 = vpop.f32.mrf.mxu0
    %v5454 = vadd.f32 %v5394, %v5453
    %5455 = vmatmul.bf16.gmra.mxu0 %v5418
    %v5456 = vpop.f32.mrf.mxu0
    %v5457 = vadd.f32 %v5394, %v5456
    %v5458 = vpop.f32.mrf.mxu0
    %v5459 = vadd.f32 %v5394, %v5458
    %5460 = vmatmul.bf16.gmra.mxu0 %v5421
    %v5461 = vpop.f32.mrf.mxu0
    %v5462 = vadd.f32 %v5394, %v5461
    %v5463 = vpop.f32.mrf.mxu0
    %v5464 = vadd.f32 %v5394, %v5463
    %5465 = vmatmul.bf16.gmra.mxu0 %v5424
    %v5466 = vpop.f32.mrf.mxu0
    %v5467 = vadd.f32 %v5394, %v5466
    %v5468 = vpop.f32.mrf.mxu0
    %v5469 = vadd.f32 %v5394, %v5468
    %5470 = vmatmul.bf16.gmra.mxu0 %v5427
    %v5471 = vpop.f32.mrf.mxu0
    %v5472 = vadd.f32 %v5394, %v5471
    %v5473 = vpop.f32.mrf.mxu0
    %v5474 = vadd.f32 %v5394, %v5473
    %5475 = vmatmul.bf16.gmra.mxu0 %v5430
    %v5476 = vpop.f32.mrf.mxu0
    %v5477 = vadd.f32 %v5394, %v5476
    %v5478 = vpop.f32.mrf.mxu0
    %v5479 = vadd.f32 %v5394, %v5478
    %5480 = vdwg.mxu0
    %5481 = vst.msk [vmem:[#allocation2] sm:$0xff] %vm111, %v5442
    %5482 = vst.msk [vmem:[#allocation2 + $0x8] sm:$0xff] %vm111, %v5444
    %5483 = vst.msk [vmem:[#allocation2 + $0x10] sm:$0xff] %vm111, %v5447
    %5484 = vst.msk [vmem:[#allocation2 + $0x18] sm:$0xff] %vm111, %v5449
    %5485 = vst.msk [vmem:[#allocation2 + $0x20] sm:$0xff] %vm111, %v5452
    %5486 = vst.msk [vmem:[#allocation2 + $0x28] sm:$0xff] %vm111, %v5454
    %5487 = vst.msk [vmem:[#allocation2 + $0x30] sm:$0xff] %vm111, %v5457
    %5488 = vst.msk [vmem:[#allocation2 + $0x38] sm:$0xff] %vm111, %v5459
    %5489 = vst.msk [vmem:[#allocation2 + $0x40] sm:$0xff] %vm111, %v5462
    %5490 = vst.msk [vmem:[#allocation2 + $0x48] sm:$0xff] %vm111, %v5464
    %5491 = vst.msk [vmem:[#allocation2 + $0x50] sm:$0xff] %vm111, %v5467
    %5492 = vst.msk [vmem:[#allocation2 + $0x58] sm:$0xff] %vm111, %v5469
    %5493 = vst.msk [vmem:[#allocation2 + $0x60] sm:$0xff] %vm111, %v5472
    %5494 = vst.msk [vmem:[#allocation2 + $0x68] sm:$0xff] %vm111, %v5474
    %5495 = vst.msk [vmem:[#allocation2 + $0x70] sm:$0xff] %vm111, %v5477
    %5496 = vst.msk [vmem:[#allocation2 + $0x78] sm:$0xff] %vm111, %v5479
    // Predicated region
    $region50: #{tpu_custom_call.1} parent=1 // pred_check
      _
    $region51: #{tpu_custom_call.1} parent=1 // pred_check_branch
      %5498 = sbr.rel (0) target = $region53
    $region52: #{tpu_custom_call.1} parent=1 // pred_region
      %5500 = vsyncadd [#allocation3], 0
      %s5501 = sshll.u32 [#allocation2], 4
      %s5502 = int_to_ptr.vmem [resolvable:$true] %s5501
      %s5503 = sshll.u32 %s12, 4
      %s5504 = int_to_ptr.hbm [resolvable:$true] %s5503
      %5509 = dma.vmem_to_hbm [thread:$0]  %s5502, 2048, %s5504, [#allocation3], 128, 128, 8
    $region53: #{tpu_custom_call.1} parent=1 // pred_fallthru
      _
    // Predicated region
    $region54: #{tpu_custom_call.1} parent=1 // pred_check
      _
    $region55: #{tpu_custom_call.1} parent=1 // pred_check_branch
      %5511 = sbr.rel (0) target = $region57
    $region56: #{tpu_custom_call.1} parent=1 // pred_region
      %5513 = dma.done [#allocation3], 2048
    $region57: #{tpu_custom_call.1} parent=1 // pred_fallthru
      _
    %5514 = vsyncpa [#allocation3], 1

</llo_original>
